<compile_context>
chip_gen: v6e
topology: v6e:2x2x1
jax: 0.10.0
libtpu: 0.0.40
codegen_flags: <defaults>
</compile_context>

<pallas_src>
import jax
import jax.numpy as jnp
from jax.experimental import pallas as pl
from jax.experimental.pallas import tpu as pltpu

C = 128  # lane-padded channel width used for every layer


# ---------------------------------------------------------------------------
# In-kernel helpers
# ---------------------------------------------------------------------------
def _conv3x3_bias_relu(pad_ref, w_ref, b_ref, n, h, w):
    """3x3 conv (stride 1) over a spatially pre-padded VMEM scratch buffer.

    pad_ref: (n, h+2, w+2, C) bf16 scratch with zeroed halo
    w_ref:   (9*C, C) bf16 tap-major weights, BN scale folded in
    b_ref:   (1, C)   f32 folded BN bias
    returns  (n, h, w, C) f32 after bias + ReLU
    """
    # im2col: 9 shifted views concatenated on the lane axis -> one matmul
    # with K = 9*C instead of 9 tiny matmuls.
    taps = [pad_ref[:, kh:kh + h, kw:kw + w, :]
            for kh in range(3) for kw in range(3)]
    patches = jnp.concatenate(taps, axis=-1).reshape(n * h * w, 9 * C)
    acc = jnp.dot(patches, w_ref[...], preferred_element_type=jnp.float32)
    acc = jnp.maximum(acc + b_ref[...], 0.0)
    return acc.reshape(n, h, w, C)


def _maxpool2x2(v, n, h, w):
    ho, wo = h // 2, w // 2
    v = jnp.max(v.reshape(n, h, wo, 2, C), axis=3)   # pool along W
    v = jnp.max(v.reshape(n, ho, 2, wo, C), axis=2)  # pool along H
    return v                                         # (n, ho, wo, C)


# ---------------------------------------------------------------------------
# Fused kernel: conv/bn/relu/pool x3 + flatten + linear, all in VMEM
# ---------------------------------------------------------------------------
def svhn_fused_kernel(x_ref, w1_ref, b1_ref, w2_ref, b2_ref, w3_ref, b3_ref,
                      fcw_ref, fcb_ref, o_ref, pad1, pad2, pad3):
    n, h1, w1, _ = x_ref.shape

    # ---- block 1: zero halo scratch, write interior, conv+BN+ReLU, pool ----
    pad1[...] = jnp.zeros_like(pad1)
    pad1[:, 1:1 + h1, 1:1 + w1, :] = x_ref[...].astype(pad1.dtype)
    y = _conv3x3_bias_relu(pad1, w1_ref, b1_ref, n, h1, w1)
    y = _maxpool2x2(y, n, h1, w1)                       # (n, h1/2, w1/2, C)

    # ---- block 2 ----
    h2, w2 = h1 // 2, w1 // 2
    pad2[...] = jnp.zeros_like(pad2)
    pad2[:, 1:1 + h2, 1:1 + w2, :] = y.astype(pad2.dtype)
    y = _conv3x3_bias_relu(pad2, w2_ref, b2_ref, n, h2, w2)
    y = _maxpool2x2(y, n, h2, w2)                       # (n, h1/4, w1/4, C)

    # ---- block 3 ----
    h3, w3 = h2 // 2, w2 // 2
    pad3[...] = jnp.zeros_like(pad3)
    pad3[:, 1:1 + h3, 1:1 + w3, :] = y.astype(pad3.dtype)
    y = _conv3x3_bias_relu(pad3, w3_ref, b3_ref, n, h3, w3)
    y = _maxpool2x2(y, n, h3, w3)                       # (n, 1, 1, C)

    # ---- classifier (flatten is trivial: final spatial is 1x1) ----
    feat = y.reshape(n, C).astype(fcw_ref.dtype)
    logits = jnp.dot(feat, fcw_ref[...], preferred_element_type=jnp.float32)
    o_ref[...] = (logits + fcb_ref[...]).astype(o_ref.dtype)


def svhn_forward_fused(x_nhwc, packed, *, batch_block=None):
    """x_nhwc: (N, 8, 8, C) bf16, channel-padded to C=128."""
    N, H, W, _ = x_nhwc.shape
    # Three 2x2 pools + Linear(n_channel, ...) require final spatial == 1x1.
    assert H == 8 and W == 8, (H, W)
    NB = N if batch_block is None else batch_block
    assert N % NB == 0
    w1, b1, w2, b2, w3, b3, fcw, fcb = packed

    return pl.pallas_call(
        svhn_fused_kernel,
        out_shape=jax.ShapeDtypeStruct((N, C), jnp.float32),
        grid=(N // NB,),
        in_specs=[
            pl.BlockSpec((NB, H, W, C), lambda n: (n, 0, 0, 0)),
            pl.BlockSpec((9 * C, C), lambda n: (0, 0)),
            pl.BlockSpec((1, C), lambda n: (0, 0)),
            pl.BlockSpec((9 * C, C), lambda n: (0, 0)),
            pl.BlockSpec((1, C), lambda n: (0, 0)),
            pl.BlockSpec((9 * C, C), lambda n: (0, 0)),
            pl.BlockSpec((1, C), lambda n: (0, 0)),
            pl.BlockSpec((C, C), lambda n: (0, 0)),
            pl.BlockSpec((1, C), lambda n: (0, 0)),
        ],
        out_specs=pl.BlockSpec((NB, C), lambda n: (n, 0)),
        scratch_shapes=[
            pltpu.VMEM((NB, H + 2, W + 2, C), jnp.bfloat16),
            pltpu.VMEM((NB, H // 2 + 2, W // 2 + 2, C), jnp.bfloat16),
            pltpu.VMEM((NB, H // 4 + 2, W // 4 + 2, C), jnp.bfloat16),
        ],
        compiler_params=pltpu.CompilerParams(
            dimension_semantics=("parallel",)),
    )(x_nhwc, w1, b1, w2, b2, w3, b3, fcw, fcb)


# ---------------------------------------------------------------------------
# Parameters: scaled-down SVHN feature stack  cfg = [c, 'M', 2c, 'M', 4c, 'M']
# with batch_norm=True (inference mode), followed by flatten + Linear.
# ---------------------------------------------------------------------------
def init_params(key, in_ch=3, c=8, num_classes=10):
    chans = [in_ch, c, 2 * c, 4 * c]
    blocks = []
    for i in range(3):
        key, kw = jax.random.split(key)
        cin, cout = chans[i], chans[i + 1]
        w = jax.random.normal(kw, (3, 3, cin, cout), jnp.float32) * 0.1
        # PyTorch BatchNorm2d defaults: gamma=1, beta=0, mean=0, var=1
        gamma = jnp.ones((cout,), jnp.float32)
        beta = jnp.zeros((cout,), jnp.float32)
        r_mean = jnp.zeros((cout,), jnp.float32)
        r_var = jnp.ones((cout,), jnp.float32)
        blocks.append((w, gamma, beta, r_mean, r_var))
    key, kfw, kfb = jax.random.split(key, 3)
    n_channel = 4 * c  # final spatial is 1x1 -> flatten size == 4c
    fc_w = jax.random.normal(kfw, (n_channel, num_classes), jnp.float32) * 0.1
    fc_b = jax.random.normal(kfb, (num_classes,), jnp.float32) * 0.1
    return {"blocks": blocks, "fc_w": fc_w, "fc_b": fc_b}


def prepare_params(params, eps=1e-5):
    """Fold BN scale into conv weights, pad all channel dims to C=128, bf16."""
    packed = []
    for (w, gamma, beta, mean, var) in params["blocks"]:
        cin, cout = w.shape[2], w.shape[3]
        scale = gamma / jnp.sqrt(var + eps)
        bias = beta - mean * scale
        w_folded = w * scale[None, None, None, :]
        w_pad = jnp.zeros((3, 3, C, C), jnp.float32)
        w_pad = w_pad.at[:, :, :cin, :cout].set(w_folded)
        packed.append(w_pad.reshape(9 * C, C).astype(jnp.bfloat16))
        packed.append(jnp.zeros((1, C), jnp.float32).at[0, :cout].set(bias))
    fcw, fcb = params["fc_w"], params["fc_b"]
    f_in, ncls = fcw.shape
    fcw_pad = jnp.zeros((C, C), jnp.float32).at[:f_in, :ncls].set(fcw)
    packed.append(fcw_pad.astype(jnp.bfloat16))
    packed.append(jnp.zeros((1, C), jnp.float32).at[0, :ncls].set(fcb))
    return tuple(packed)


@jax.jit
def svhn_forward(params, x_nchw):
    # NCHW (PyTorch) -> NHWC, bf16, channel-padded to 128 lanes.
    x = jnp.transpose(x_nchw, (0, 2, 3, 1)).astype(jnp.bfloat16)
    cin = x.shape[-1]
    x = jnp.pad(x, ((0, 0), (0, 0), (0, 0), (0, C - cin)))
    packed = prepare_params(params)
    logits = svhn_forward_fused(x, packed)
    ncls = params["fc_b"].shape[0]
    return logits[:, :ncls]


if __name__ == "__main__":
    key = jax.random.PRNGKey(0)
    key, kx = jax.random.split(key)
    # small SVHN-like input: batch=2, 3 channels, 8x8 spatial (NCHW)
    x = jax.random.normal(kx, (2, 3, 8, 8), jnp.float32)
    params = init_params(key, in_ch=3, c=8, num_classes=10)
    out = svhn_forward(params, x)
    out = jax.block_until_ready(out)
    assert out.shape == (2, 10), out.shape
    print("KERNEL_OK")
</pallas_src>

<mosaic_0001>
module attributes {stable_mosaic.version = 11 : i64} {
  func.func @svhn_fused_kernel(%arg0: i32, %arg1: memref<2x8x8x128xbf16, #tpu.memory_space<vmem>>, %arg2: memref<1152x128xbf16, #tpu.memory_space<vmem>>, %arg3: memref<1x128xf32, #tpu.memory_space<vmem>>, %arg4: memref<1152x128xbf16, #tpu.memory_space<vmem>>, %arg5: memref<1x128xf32, #tpu.memory_space<vmem>>, %arg6: memref<1152x128xbf16, #tpu.memory_space<vmem>>, %arg7: memref<1x128xf32, #tpu.memory_space<vmem>>, %arg8: memref<128x128xbf16, #tpu.memory_space<vmem>>, %arg9: memref<1x128xf32, #tpu.memory_space<vmem>>, %arg10: memref<2x128xf32, #tpu.memory_space<vmem>>, %arg11: memref<2x10x10x128xbf16, #tpu.memory_space<vmem>>, %arg12: memref<2x6x6x128xbf16, #tpu.memory_space<vmem>>, %arg13: memref<2x4x4x128xbf16, #tpu.memory_space<vmem>>) attributes {dimension_semantics = [#tpu.dimension_semantics<parallel>], iteration_bounds = array<i64: 1>, scalar_prefetch = 0 : i64, scratch_operands = 3 : i64, tpu.core_type = #tpu.core_type<tc>, window_params = [{transform_indices = @transform_0, window_bounds = array<i64: 2, 8, 8, 128>}, {pipeline_mode = #tpu.pipeline_mode<synchronous>, transform_indices = @transform_1, window_bounds = array<i64: 1152, 128>}, {pipeline_mode = #tpu.pipeline_mode<synchronous>, transform_indices = @transform_2, window_bounds = array<i64: 1, 128>}, {pipeline_mode = #tpu.pipeline_mode<synchronous>, transform_indices = @transform_3, window_bounds = array<i64: 1152, 128>}, {pipeline_mode = #tpu.pipeline_mode<synchronous>, transform_indices = @transform_4, window_bounds = array<i64: 1, 128>}, {pipeline_mode = #tpu.pipeline_mode<synchronous>, transform_indices = @transform_5, window_bounds = array<i64: 1152, 128>}, {pipeline_mode = #tpu.pipeline_mode<synchronous>, transform_indices = @transform_6, window_bounds = array<i64: 1, 128>}, {pipeline_mode = #tpu.pipeline_mode<synchronous>, transform_indices = @transform_7, window_bounds = array<i64: 128, 128>}, {pipeline_mode = #tpu.pipeline_mode<synchronous>, transform_indices = @transform_8, window_bounds = array<i64: 1, 128>}, {transform_indices = @transform_9, window_bounds = array<i64: 2, 128>}]} {
    %cst = arith.constant 0.000000e+00 : bf16
    %0 = vector.broadcast %cst : bf16 to vector<2x10x10x128xbf16>
    %c0 = arith.constant 0 : index
    %c0_0 = arith.constant 0 : index
    %c0_1 = arith.constant 0 : index
    %c0_2 = arith.constant 0 : index
    %1 = vector.load %arg11[%c0, %c0_0, %c0_1, %c0_2] : memref<2x10x10x128xbf16, #tpu.memory_space<vmem>>, vector<2x10x10x128xbf16>
    tpu.vector_store %arg11[%c0, %c0_0, %c0_1, %c0_2], %0 {strides = array<i32>} : memref<2x10x10x128xbf16, #tpu.memory_space<vmem>>, vector<2x10x10x128xbf16>,
    %c0_3 = arith.constant 0 : index
    %c0_4 = arith.constant 0 : index
    %c0_5 = arith.constant 0 : index
    %c0_6 = arith.constant 0 : index
    %2 = vector.load %arg1[%c0_3, %c0_4, %c0_5, %c0_6] : memref<2x8x8x128xbf16, #tpu.memory_space<vmem>>, vector<2x8x8x128xbf16>
    %c0_7 = arith.constant 0 : index
    %c1 = arith.constant 1 : index
    %c1_8 = arith.constant 1 : index
    %c0_9 = arith.constant 0 : index
    %3 = vector.load %arg11[%c0_7, %c1, %c1_8, %c0_9] : memref<2x10x10x128xbf16, #tpu.memory_space<vmem>>, vector<2x8x8x128xbf16>
    tpu.vector_store %arg11[%c0_7, %c1, %c1_8, %c0_9], %2 {strides = array<i32>} : memref<2x10x10x128xbf16, #tpu.memory_space<vmem>>, vector<2x8x8x128xbf16>,
    %c0_10 = arith.constant 0 : index
    %c0_11 = arith.constant 0 : index
    %c0_12 = arith.constant 0 : index
    %c0_13 = arith.constant 0 : index
    %4 = vector.load %arg11[%c0_10, %c0_11, %c0_12, %c0_13] : memref<2x10x10x128xbf16, #tpu.memory_space<vmem>>, vector<2x8x8x128xbf16>
    %c0_14 = arith.constant 0 : index
    %c0_15 = arith.constant 0 : index
    %c1_16 = arith.constant 1 : index
    %c0_17 = arith.constant 0 : index
    %5 = vector.load %arg11[%c0_14, %c0_15, %c1_16, %c0_17] : memref<2x10x10x128xbf16, #tpu.memory_space<vmem>>, vector<2x8x8x128xbf16>
    %c0_18 = arith.constant 0 : index
    %c0_19 = arith.constant 0 : index
    %c2 = arith.constant 2 : index
    %c0_20 = arith.constant 0 : index
    %6 = vector.load %arg11[%c0_18, %c0_19, %c2, %c0_20] : memref<2x10x10x128xbf16, #tpu.memory_space<vmem>>, vector<2x8x8x128xbf16>
    %c0_21 = arith.constant 0 : index
    %c1_22 = arith.constant 1 : index
    %c0_23 = arith.constant 0 : index
    %c0_24 = arith.constant 0 : index
    %7 = vector.load %arg11[%c0_21, %c1_22, %c0_23, %c0_24] : memref<2x10x10x128xbf16, #tpu.memory_space<vmem>>, vector<2x8x8x128xbf16>
    %c0_25 = arith.constant 0 : index
    %c1_26 = arith.constant 1 : index
    %c1_27 = arith.constant 1 : index
    %c0_28 = arith.constant 0 : index
    %8 = vector.load %arg11[%c0_25, %c1_26, %c1_27, %c0_28] : memref<2x10x10x128xbf16, #tpu.memory_space<vmem>>, vector<2x8x8x128xbf16>
    %c0_29 = arith.constant 0 : index
    %c1_30 = arith.constant 1 : index
    %c2_31 = arith.constant 2 : index
    %c0_32 = arith.constant 0 : index
    %9 = vector.load %arg11[%c0_29, %c1_30, %c2_31, %c0_32] : memref<2x10x10x128xbf16, #tpu.memory_space<vmem>>, vector<2x8x8x128xbf16>
    %c0_33 = arith.constant 0 : index
    %c2_34 = arith.constant 2 : index
    %c0_35 = arith.constant 0 : index
    %c0_36 = arith.constant 0 : index
    %10 = vector.load %arg11[%c0_33, %c2_34, %c0_35, %c0_36] : memref<2x10x10x128xbf16, #tpu.memory_space<vmem>>, vector<2x8x8x128xbf16>
    %c0_37 = arith.constant 0 : index
    %c2_38 = arith.constant 2 : index
    %c1_39 = arith.constant 1 : index
    %c0_40 = arith.constant 0 : index
    %11 = vector.load %arg11[%c0_37, %c2_38, %c1_39, %c0_40] : memref<2x10x10x128xbf16, #tpu.memory_space<vmem>>, vector<2x8x8x128xbf16>
    %c0_41 = arith.constant 0 : index
    %c2_42 = arith.constant 2 : index
    %c2_43 = arith.constant 2 : index
    %c0_44 = arith.constant 0 : index
    %12 = vector.load %arg11[%c0_41, %c2_42, %c2_43, %c0_44] : memref<2x10x10x128xbf16, #tpu.memory_space<vmem>>, vector<2x8x8x128xbf16>
    %13 = tpu.concatenate %4, %5, %6, %7, %8, %9, %10, %11, %12 in 3 : vector<2x8x8x128xbf16>, vector<2x8x8x128xbf16>, vector<2x8x8x128xbf16>, vector<2x8x8x128xbf16>, vector<2x8x8x128xbf16>, vector<2x8x8x128xbf16>, vector<2x8x8x128xbf16>, vector<2x8x8x128xbf16>, vector<2x8x8x128xbf16> -> vector<2x8x8x1152xbf16>
    %14 = vector.shape_cast %13 : vector<2x8x8x1152xbf16> to vector<128x1152xbf16>
    %c0_45 = arith.constant 0 : index
    %c0_46 = arith.constant 0 : index
    %15 = vector.load %arg2[%c0_45, %c0_46] : memref<1152x128xbf16, #tpu.memory_space<vmem>>, vector<1152x128xbf16>
    %cst_47 = arith.constant dense<0.000000e+00> : vector<128x128xf32>
    %16 = tpu.matmul %14, %15, %cst_47 {dimension_numbers = #tpu.dot_dimension_numbers<[1], [0], [0], [1], [0, 0, 1, 1], [], []>} : vector<128x1152xbf16>, vector<1152x128xbf16>, vector<128x128xf32> -> vector<128x128xf32>
    %c0_48 = arith.constant 0 : index
    %c0_49 = arith.constant 0 : index
    %17 = vector.load %arg3[%c0_48, %c0_49] : memref<1x128xf32, #tpu.memory_space<vmem>>, vector<1x128xf32>
    %18 = vector.broadcast %17 : vector<1x128xf32> to vector<128x128xf32>
    %19 = arith.addf %16, %18 : vector<128x128xf32>
    %cst_50 = arith.constant 0.000000e+00 : f32
    %20 = vector.broadcast %cst_50 : f32 to vector<128x128xf32>
    %21 = arith.maximumf %19, %20 : vector<128x128xf32>
    %22 = vector.shape_cast %21 : vector<128x128xf32> to vector<2x8x8x128xf32>
    %23 = vector.shape_cast %22 : vector<2x8x8x128xf32> to vector<2x8x4x2x128xf32>
    %cst_51 = arith.constant dense<0xFF800000> : vector<2x8x4x128xf32>
    %24 = vector.multi_reduction <maximumf>, %23, %cst_51 [3] : vector<2x8x4x2x128xf32> to vector<2x8x4x128xf32>
    %25 = vector.shape_cast %24 : vector<2x8x4x128xf32> to vector<2x4x2x4x128xf32>
    %cst_52 = arith.constant dense<0xFF800000> : vector<2x4x4x128xf32>
    %26 = vector.multi_reduction <maximumf>, %25, %cst_52 [2] : vector<2x4x2x4x128xf32> to vector<2x4x4x128xf32>
    %cst_53 = arith.constant 0.000000e+00 : bf16
    %27 = vector.broadcast %cst_53 : bf16 to vector<2x6x6x128xbf16>
    %c0_54 = arith.constant 0 : index
    %c0_55 = arith.constant 0 : index
    %c0_56 = arith.constant 0 : index
    %c0_57 = arith.constant 0 : index
    %28 = vector.load %arg12[%c0_54, %c0_55, %c0_56, %c0_57] : memref<2x6x6x128xbf16, #tpu.memory_space<vmem>>, vector<2x6x6x128xbf16>
    tpu.vector_store %arg12[%c0_54, %c0_55, %c0_56, %c0_57], %27 {strides = array<i32>} : memref<2x6x6x128xbf16, #tpu.memory_space<vmem>>, vector<2x6x6x128xbf16>,
    %29 = arith.truncf %26 : vector<2x4x4x128xf32> to vector<2x4x4x128xbf16>
    %c0_58 = arith.constant 0 : index
    %c1_59 = arith.constant 1 : index
    %c1_60 = arith.constant 1 : index
    %c0_61 = arith.constant 0 : index
    %30 = vector.load %arg12[%c0_58, %c1_59, %c1_60, %c0_61] : memref<2x6x6x128xbf16, #tpu.memory_space<vmem>>, vector<2x4x4x128xbf16>
    tpu.vector_store %arg12[%c0_58, %c1_59, %c1_60, %c0_61], %29 {strides = array<i32>} : memref<2x6x6x128xbf16, #tpu.memory_space<vmem>>, vector<2x4x4x128xbf16>,
    %c0_62 = arith.constant 0 : index
    %c0_63 = arith.constant 0 : index
    %c0_64 = arith.constant 0 : index
    %c0_65 = arith.constant 0 : index
    %31 = vector.load %arg12[%c0_62, %c0_63, %c0_64, %c0_65] : memref<2x6x6x128xbf16, #tpu.memory_space<vmem>>, vector<2x4x4x128xbf16>
    %c0_66 = arith.constant 0 : index
    %c0_67 = arith.constant 0 : index
    %c1_68 = arith.constant 1 : index
    %c0_69 = arith.constant 0 : index
    %32 = vector.load %arg12[%c0_66, %c0_67, %c1_68, %c0_69] : memref<2x6x6x128xbf16, #tpu.memory_space<vmem>>, vector<2x4x4x128xbf16>
    %c0_70 = arith.constant 0 : index
    %c0_71 = arith.constant 0 : index
    %c2_72 = arith.constant 2 : index
    %c0_73 = arith.constant 0 : index
    %33 = vector.load %arg12[%c0_70, %c0_71, %c2_72, %c0_73] : memref<2x6x6x128xbf16, #tpu.memory_space<vmem>>, vector<2x4x4x128xbf16>
    %c0_74 = arith.constant 0 : index
    %c1_75 = arith.constant 1 : index
    %c0_76 = arith.constant 0 : index
    %c0_77 = arith.constant 0 : index
    %34 = vector.load %arg12[%c0_74, %c1_75, %c0_76, %c0_77] : memref<2x6x6x128xbf16, #tpu.memory_space<vmem>>, vector<2x4x4x128xbf16>
    %c0_78 = arith.constant 0 : index
    %c1_79 = arith.constant 1 : index
    %c1_80 = arith.constant 1 : index
    %c0_81 = arith.constant 0 : index
    %35 = vector.load %arg12[%c0_78, %c1_79, %c1_80, %c0_81] : memref<2x6x6x128xbf16, #tpu.memory_space<vmem>>, vector<2x4x4x128xbf16>
    %c0_82 = arith.constant 0 : index
    %c1_83 = arith.constant 1 : index
    %c2_84 = arith.constant 2 : index
    %c0_85 = arith.constant 0 : index
    %36 = vector.load %arg12[%c0_82, %c1_83, %c2_84, %c0_85] : memref<2x6x6x128xbf16, #tpu.memory_space<vmem>>, vector<2x4x4x128xbf16>
    %c0_86 = arith.constant 0 : index
    %c2_87 = arith.constant 2 : index
    %c0_88 = arith.constant 0 : index
    %c0_89 = arith.constant 0 : index
    %37 = vector.load %arg12[%c0_86, %c2_87, %c0_88, %c0_89] : memref<2x6x6x128xbf16, #tpu.memory_space<vmem>>, vector<2x4x4x128xbf16>
    %c0_90 = arith.constant 0 : index
    %c2_91 = arith.constant 2 : index
    %c1_92 = arith.constant 1 : index
    %c0_93 = arith.constant 0 : index
    %38 = vector.load %arg12[%c0_90, %c2_91, %c1_92, %c0_93] : memref<2x6x6x128xbf16, #tpu.memory_space<vmem>>, vector<2x4x4x128xbf16>
    %c0_94 = arith.constant 0 : index
    %c2_95 = arith.constant 2 : index
    %c2_96 = arith.constant 2 : index
    %c0_97 = arith.constant 0 : index
    %39 = vector.load %arg12[%c0_94, %c2_95, %c2_96, %c0_97] : memref<2x6x6x128xbf16, #tpu.memory_space<vmem>>, vector<2x4x4x128xbf16>
    %40 = tpu.concatenate %31, %32, %33, %34, %35, %36, %37, %38, %39 in 3 : vector<2x4x4x128xbf16>, vector<2x4x4x128xbf16>, vector<2x4x4x128xbf16>, vector<2x4x4x128xbf16>, vector<2x4x4x128xbf16>, vector<2x4x4x128xbf16>, vector<2x4x4x128xbf16>, vector<2x4x4x128xbf16>, vector<2x4x4x128xbf16> -> vector<2x4x4x1152xbf16>
    %41 = vector.shape_cast %40 : vector<2x4x4x1152xbf16> to vector<32x1152xbf16>
    %c0_98 = arith.constant 0 : index
    %c0_99 = arith.constant 0 : index
    %42 = vector.load %arg4[%c0_98, %c0_99] : memref<1152x128xbf16, #tpu.memory_space<vmem>>, vector<1152x128xbf16>
    %cst_100 = arith.constant dense<0.000000e+00> : vector<32x128xf32>
    %43 = tpu.matmul %41, %42, %cst_100 {dimension_numbers = #tpu.dot_dimension_numbers<[1], [0], [0], [1], [0, 0, 1, 1], [], []>} : vector<32x1152xbf16>, vector<1152x128xbf16>, vector<32x128xf32> -> vector<32x128xf32>
    %c0_101 = arith.constant 0 : index
    %c0_102 = arith.constant 0 : index
    %44 = vector.load %arg5[%c0_101, %c0_102] : memref<1x128xf32, #tpu.memory_space<vmem>>, vector<1x128xf32>
    %45 = vector.broadcast %44 : vector<1x128xf32> to vector<32x128xf32>
    %46 = arith.addf %43, %45 : vector<32x128xf32>
    %cst_103 = arith.constant 0.000000e+00 : f32
    %47 = vector.broadcast %cst_103 : f32 to vector<32x128xf32>
    %48 = arith.maximumf %46, %47 : vector<32x128xf32>
    %49 = vector.shape_cast %48 : vector<32x128xf32> to vector<2x4x4x128xf32>
    %50 = vector.shape_cast %49 : vector<2x4x4x128xf32> to vector<2x4x2x2x128xf32>
    %cst_104 = arith.constant dense<0xFF800000> : vector<2x4x2x128xf32>
    %51 = vector.multi_reduction <maximumf>, %50, %cst_104 [3] : vector<2x4x2x2x128xf32> to vector<2x4x2x128xf32>
    %52 = vector.shape_cast %51 : vector<2x4x2x128xf32> to vector<2x2x2x2x128xf32>
    %cst_105 = arith.constant dense<0xFF800000> : vector<2x2x2x128xf32>
    %53 = vector.multi_reduction <maximumf>, %52, %cst_105 [2] : vector<2x2x2x2x128xf32> to vector<2x2x2x128xf32>
    %cst_106 = arith.constant 0.000000e+00 : bf16
    %54 = vector.broadcast %cst_106 : bf16 to vector<2x4x4x128xbf16>
    %c0_107 = arith.constant 0 : index
    %c0_108 = arith.constant 0 : index
    %c0_109 = arith.constant 0 : index
    %c0_110 = arith.constant 0 : index
    %55 = vector.load %arg13[%c0_107, %c0_108, %c0_109, %c0_110] : memref<2x4x4x128xbf16, #tpu.memory_space<vmem>>, vector<2x4x4x128xbf16>
    tpu.vector_store %arg13[%c0_107, %c0_108, %c0_109, %c0_110], %54 {strides = array<i32>} : memref<2x4x4x128xbf16, #tpu.memory_space<vmem>>, vector<2x4x4x128xbf16>,
    %56 = arith.truncf %53 : vector<2x2x2x128xf32> to vector<2x2x2x128xbf16>
    %c0_111 = arith.constant 0 : index
    %c1_112 = arith.constant 1 : index
    %c1_113 = arith.constant 1 : index
    %c0_114 = arith.constant 0 : index
    %57 = vector.load %arg13[%c0_111, %c1_112, %c1_113, %c0_114] : memref<2x4x4x128xbf16, #tpu.memory_space<vmem>>, vector<2x2x2x128xbf16>
    tpu.vector_store %arg13[%c0_111, %c1_112, %c1_113, %c0_114], %56 {strides = array<i32>} : memref<2x4x4x128xbf16, #tpu.memory_space<vmem>>, vector<2x2x2x128xbf16>,
    %c0_115 = arith.constant 0 : index
    %c0_116 = arith.constant 0 : index
    %c0_117 = arith.constant 0 : index
    %c0_118 = arith.constant 0 : index
    %58 = vector.load %arg13[%c0_115, %c0_116, %c0_117, %c0_118] : memref<2x4x4x128xbf16, #tpu.memory_space<vmem>>, vector<2x2x2x128xbf16>
    %c0_119 = arith.constant 0 : index
    %c0_120 = arith.constant 0 : index
    %c1_121 = arith.constant 1 : index
    %c0_122 = arith.constant 0 : index
    %59 = vector.load %arg13[%c0_119, %c0_120, %c1_121, %c0_122] : memref<2x4x4x128xbf16, #tpu.memory_space<vmem>>, vector<2x2x2x128xbf16>
    %c0_123 = arith.constant 0 : index
    %c0_124 = arith.constant 0 : index
    %c2_125 = arith.constant 2 : index
    %c0_126 = arith.constant 0 : index
    %60 = vector.load %arg13[%c0_123, %c0_124, %c2_125, %c0_126] : memref<2x4x4x128xbf16, #tpu.memory_space<vmem>>, vector<2x2x2x128xbf16>
    %c0_127 = arith.constant 0 : index
    %c1_128 = arith.constant 1 : index
    %c0_129 = arith.constant 0 : index
    %c0_130 = arith.constant 0 : index
    %61 = vector.load %arg13[%c0_127, %c1_128, %c0_129, %c0_130] : memref<2x4x4x128xbf16, #tpu.memory_space<vmem>>, vector<2x2x2x128xbf16>
    %c0_131 = arith.constant 0 : index
    %c1_132 = arith.constant 1 : index
    %c1_133 = arith.constant 1 : index
    %c0_134 = arith.constant 0 : index
    %62 = vector.load %arg13[%c0_131, %c1_132, %c1_133, %c0_134] : memref<2x4x4x128xbf16, #tpu.memory_space<vmem>>, vector<2x2x2x128xbf16>
    %c0_135 = arith.constant 0 : index
    %c1_136 = arith.constant 1 : index
    %c2_137 = arith.constant 2 : index
    %c0_138 = arith.constant 0 : index
    %63 = vector.load %arg13[%c0_135, %c1_136, %c2_137, %c0_138] : memref<2x4x4x128xbf16, #tpu.memory_space<vmem>>, vector<2x2x2x128xbf16>
    %c0_139 = arith.constant 0 : index
    %c2_140 = arith.constant 2 : index
    %c0_141 = arith.constant 0 : index
    %c0_142 = arith.constant 0 : index
    %64 = vector.load %arg13[%c0_139, %c2_140, %c0_141, %c0_142] : memref<2x4x4x128xbf16, #tpu.memory_space<vmem>>, vector<2x2x2x128xbf16>
    %c0_143 = arith.constant 0 : index
    %c2_144 = arith.constant 2 : index
    %c1_145 = arith.constant 1 : index
    %c0_146 = arith.constant 0 : index
    %65 = vector.load %arg13[%c0_143, %c2_144, %c1_145, %c0_146] : memref<2x4x4x128xbf16, #tpu.memory_space<vmem>>, vector<2x2x2x128xbf16>
    %c0_147 = arith.constant 0 : index
    %c2_148 = arith.constant 2 : index
    %c2_149 = arith.constant 2 : index
    %c0_150 = arith.constant 0 : index
    %66 = vector.load %arg13[%c0_147, %c2_148, %c2_149, %c0_150] : memref<2x4x4x128xbf16, #tpu.memory_space<vmem>>, vector<2x2x2x128xbf16>
    %67 = tpu.concatenate %58, %59, %60, %61, %62, %63, %64, %65, %66 in 3 : vector<2x2x2x128xbf16>, vector<2x2x2x128xbf16>, vector<2x2x2x128xbf16>, vector<2x2x2x128xbf16>, vector<2x2x2x128xbf16>, vector<2x2x2x128xbf16>, vector<2x2x2x128xbf16>, vector<2x2x2x128xbf16>, vector<2x2x2x128xbf16> -> vector<2x2x2x1152xbf16>
    %68 = vector.shape_cast %67 : vector<2x2x2x1152xbf16> to vector<8x1152xbf16>
    %c0_151 = arith.constant 0 : index
    %c0_152 = arith.constant 0 : index
    %69 = vector.load %arg6[%c0_151, %c0_152] : memref<1152x128xbf16, #tpu.memory_space<vmem>>, vector<1152x128xbf16>
    %cst_153 = arith.constant dense<0.000000e+00> : vector<8x128xf32>
    %70 = tpu.matmul %68, %69, %cst_153 {dimension_numbers = #tpu.dot_dimension_numbers<[1], [0], [0], [1], [0, 0, 1, 1], [], []>} : vector<8x1152xbf16>, vector<1152x128xbf16>, vector<8x128xf32> -> vector<8x128xf32>
    %c0_154 = arith.constant 0 : index
    %c0_155 = arith.constant 0 : index
    %71 = vector.load %arg7[%c0_154, %c0_155] : memref<1x128xf32, #tpu.memory_space<vmem>>, vector<1x128xf32>
    %72 = vector.broadcast %71 : vector<1x128xf32> to vector<8x128xf32>
    %73 = arith.addf %70, %72 : vector<8x128xf32>
    %cst_156 = arith.constant 0.000000e+00 : f32
    %74 = vector.broadcast %cst_156 : f32 to vector<8x128xf32>
    %75 = arith.maximumf %73, %74 : vector<8x128xf32>
    %76 = vector.shape_cast %75 : vector<8x128xf32> to vector<2x2x2x128xf32>
    %77 = vector.shape_cast %76 : vector<2x2x2x128xf32> to vector<2x2x1x2x128xf32>
    %cst_157 = arith.constant dense<0xFF800000> : vector<2x2x1x128xf32>
    %78 = vector.multi_reduction <maximumf>, %77, %cst_157 [3] : vector<2x2x1x2x128xf32> to vector<2x2x1x128xf32>
    %79 = vector.shape_cast %78 : vector<2x2x1x128xf32> to vector<2x1x2x1x128xf32>
    %cst_158 = arith.constant dense<0xFF800000> : vector<2x1x1x128xf32>
    %80 = vector.multi_reduction <maximumf>, %79, %cst_158 [2] : vector<2x1x2x1x128xf32> to vector<2x1x1x128xf32>
    %81 = vector.shape_cast %80 : vector<2x1x1x128xf32> to vector<2x128xf32>
    %82 = arith.truncf %81 : vector<2x128xf32> to vector<2x128xbf16>
    %c0_159 = arith.constant 0 : index
    %c0_160 = arith.constant 0 : index
    %83 = vector.load %arg8[%c0_159, %c0_160] : memref<128x128xbf16, #tpu.memory_space<vmem>>, vector<128x128xbf16>
    %cst_161 = arith.constant dense<0.000000e+00> : vector<2x128xf32>
    %84 = tpu.matmul %82, %83, %cst_161 {dimension_numbers = #tpu.dot_dimension_numbers<[1], [0], [0], [1], [0, 0, 1, 1], [], []>} : vector<2x128xbf16>, vector<128x128xbf16>, vector<2x128xf32> -> vector<2x128xf32>
    %c0_162 = arith.constant 0 : index
    %c0_163 = arith.constant 0 : index
    %85 = vector.load %arg9[%c0_162, %c0_163] : memref<1x128xf32, #tpu.memory_space<vmem>>, vector<1x128xf32>
    %86 = vector.broadcast %85 : vector<1x128xf32> to vector<2x128xf32>
    %87 = arith.addf %84, %86 : vector<2x128xf32>
    %c0_164 = arith.constant 0 : index
    %c0_165 = arith.constant 0 : index
    %88 = vector.load %arg10[%c0_164, %c0_165] : memref<2x128xf32, #tpu.memory_space<vmem>>, vector<2x128xf32>
    tpu.vector_store %arg10[%c0_164, %c0_165], %87 {strides = array<i32>} : memref<2x128xf32, #tpu.memory_space<vmem>>, vector<2x128xf32>,
    return
  }
  func.func @transform_0(%arg0: i32) -> (i32, i32, i32, i32) {
    %c0_i32 = arith.constant 0 : i32
    %c0_i32_0 = arith.constant 0 : i32
    %c0_i32_1 = arith.constant 0 : i32
    %c0_i32_2 = arith.constant 0 : i32
    return %arg0, %c0_i32, %c0_i32_0, %c0_i32_1 : i32, i32, i32, i32
  }
  func.func @transform_1(%arg0: i32) -> (i32, i32) {
    %c0_i32 = arith.constant 0 : i32
    %c0_i32_0 = arith.constant 0 : i32
    %c0_i32_1 = arith.constant 0 : i32
    return %c0_i32, %c0_i32_0 : i32, i32
  }
  func.func @transform_2(%arg0: i32) -> (i32, i32) {
    %c0_i32 = arith.constant 0 : i32
    %c0_i32_0 = arith.constant 0 : i32
    %c0_i32_1 = arith.constant 0 : i32
    return %c0_i32, %c0_i32_0 : i32, i32
  }
  func.func @transform_3(%arg0: i32) -> (i32, i32) {
    %c0_i32 = arith.constant 0 : i32
    %c0_i32_0 = arith.constant 0 : i32
    %c0_i32_1 = arith.constant 0 : i32
    return %c0_i32, %c0_i32_0 : i32, i32
  }
  func.func @transform_4(%arg0: i32) -> (i32, i32) {
    %c0_i32 = arith.constant 0 : i32
    %c0_i32_0 = arith.constant 0 : i32
    %c0_i32_1 = arith.constant 0 : i32
    return %c0_i32, %c0_i32_0 : i32, i32
  }
  func.func @transform_5(%arg0: i32) -> (i32, i32) {
    %c0_i32 = arith.constant 0 : i32
    %c0_i32_0 = arith.constant 0 : i32
    %c0_i32_1 = arith.constant 0 : i32
    return %c0_i32, %c0_i32_0 : i32, i32
  }
  func.func @transform_6(%arg0: i32) -> (i32, i32) {
    %c0_i32 = arith.constant 0 : i32
    %c0_i32_0 = arith.constant 0 : i32
    %c0_i32_1 = arith.constant 0 : i32
    return %c0_i32, %c0_i32_0 : i32, i32
  }
  func.func @transform_7(%arg0: i32) -> (i32, i32) {
    %c0_i32 = arith.constant 0 : i32
    %c0_i32_0 = arith.constant 0 : i32
    %c0_i32_1 = arith.constant 0 : i32
    return %c0_i32, %c0_i32_0 : i32, i32
  }
  func.func @transform_8(%arg0: i32) -> (i32, i32) {
    %c0_i32 = arith.constant 0 : i32
    %c0_i32_0 = arith.constant 0 : i32
    %c0_i32_1 = arith.constant 0 : i32
    return %c0_i32, %c0_i32_0 : i32, i32
  }
  func.func @transform_9(%arg0: i32) -> (i32, i32) {
    %c0_i32 = arith.constant 0 : i32
    %c0_i32_0 = arith.constant 0 : i32
    return %arg0, %c0_i32 : i32, i32
  }
}

</mosaic_0001>

<llo_original>
// kernel: svhn_forward.1
$region0: #{svhn_forward.1}
  #allocation0 [shape = 'u32[]', space=smem, size = 0x4, offset = 0x4, fixed_abs, tag = 'smem constant byte address 0x4 - core index']
  #allocation1 [shape = 'u32[144,128]{1,0:T(1,128)}', space=vmem, size = 0x12000, scoped, tag = 'internal scratch']
  #allocation2 [shape = 'bf16[2,10,10,128]{3,2,1,0:T(8,128)(2,1)}', space=vmem, size = 0x14000, scoped, tag = 'scratch operand']
  #allocation3 [shape = 'bf16[2,6,6,128]{3,2,1,0:T(8,128)(2,1)}', space=vmem, size = 0x6000, scoped, tag = 'scratch operand']
  #allocation4 [shape = 'bf16[2,4,4,128]{3,2,1,0:T(4,128)(2,1)}', space=vmem, size = 0x2000, scoped, tag = 'scratch operand']
  %s0 = inlined_call_operand.vmem [shape: bf16[2,8,8,128], index: 0, kind: input, shape index: {}]
  %s1 = inlined_call_operand.vmem [shape: bf16[1152,128], index: 1, kind: input, shape index: {}]
  %s2 = inlined_call_operand.vmem [shape: f32[1,128], index: 2, kind: input, shape index: {}]
  %s3 = inlined_call_operand.vmem [shape: bf16[1152,128], index: 3, kind: input, shape index: {}]
  %s4 = inlined_call_operand.vmem [shape: f32[1,128], index: 4, kind: input, shape index: {}]
  %s5 = inlined_call_operand.vmem [shape: bf16[1152,128], index: 5, kind: input, shape index: {}]
  %s6 = inlined_call_operand.vmem [shape: f32[1,128], index: 6, kind: input, shape index: {}]
  %s7 = inlined_call_operand.vmem [shape: bf16[128,128], index: 7, kind: input, shape index: {}]
  %s8 = inlined_call_operand.vmem [shape: f32[1,128], index: 8, kind: input, shape index: {}]
  %s9 = inlined_call_operand.hbm [shape: f32[2,128], index: 9, kind: output, shape index: {}]
  %s10 = sld [smem:[#allocation0]]
  $region46: #{svhn_forward.1} parent=0
    _
  %s12 = ssub.s32 1, %s10
  %s13 = scalar_select 0, %s12, %s10
  $region1: #{svhn_forward.1} parent=0
    #allocation5 [shape = 'u8[1024]{0}', space=vmem, size = 0x400, scoped, tag = 'output window, operand 0, single buffered']
    #allocation6 [shape = 's32[1]{0}', space=sflag, size = 0x4, scoped, tag = 'scoped memory for svhn_forward.1']
    %14 = vsyncpa [#allocation6], 0
    // Predicated region
    $region2: #{svhn_forward.1} parent=1 // pred_check
      _
    $region3: #{svhn_forward.1} parent=1 // pred_check_branch
      %16 = sbr.rel (0) target = $region5
    $region4: #{svhn_forward.1} parent=1 // pred_region
      _
    $region5: #{svhn_forward.1} parent=1 // pred_fallthru
      _
    // Predicated region
    $region6: #{svhn_forward.1} parent=1 // pred_check
      _
    $region7: #{svhn_forward.1} parent=1 // pred_check_branch
      %18 = sbr.rel (0) target = $region9
    $region8: #{svhn_forward.1} parent=1 // pred_region
      _
    $region9: #{svhn_forward.1} parent=1 // pred_fallthru
      _
    // Predicated region
    $region10: #{svhn_forward.1} parent=1 // pred_check
      _
    $region11: #{svhn_forward.1} parent=1 // pred_check_branch
      %20 = sbr.rel (0) target = $region13
    $region12: #{svhn_forward.1} parent=1 // pred_region
      _
    $region13: #{svhn_forward.1} parent=1 // pred_fallthru
      _
    // Predicated region
    $region14: #{svhn_forward.1} parent=1 // pred_check
      _
    $region15: #{svhn_forward.1} parent=1 // pred_check_branch
      %22 = sbr.rel (0) target = $region17
    $region16: #{svhn_forward.1} parent=1 // pred_region
      _
    $region17: #{svhn_forward.1} parent=1 // pred_fallthru
      _
    // Predicated region
    $region18: #{svhn_forward.1} parent=1 // pred_check
      _
    $region19: #{svhn_forward.1} parent=1 // pred_check_branch
      %24 = sbr.rel (0) target = $region21
    $region20: #{svhn_forward.1} parent=1 // pred_region
      _
    $region21: #{svhn_forward.1} parent=1 // pred_fallthru
      _
    // Predicated region
    $region22: #{svhn_forward.1} parent=1 // pred_check
      _
    $region23: #{svhn_forward.1} parent=1 // pred_check_branch
      %26 = sbr.rel (0) target = $region25
    $region24: #{svhn_forward.1} parent=1 // pred_region
      _
    $region25: #{svhn_forward.1} parent=1 // pred_fallthru
      _
    // Predicated region
    $region26: #{svhn_forward.1} parent=1 // pred_check
      _
    $region27: #{svhn_forward.1} parent=1 // pred_check_branch
      %28 = sbr.rel (0) target = $region29
    $region28: #{svhn_forward.1} parent=1 // pred_region
      _
    $region29: #{svhn_forward.1} parent=1 // pred_fallthru
      _
    // Predicated region
    $region30: #{svhn_forward.1} parent=1 // pred_check
      _
    $region31: #{svhn_forward.1} parent=1 // pred_check_branch
      %30 = sbr.rel (0) target = $region33
    $region32: #{svhn_forward.1} parent=1 // pred_region
      _
    $region33: #{svhn_forward.1} parent=1 // pred_fallthru
      _
    // Predicated region
    $region34: #{svhn_forward.1} parent=1 // pred_check
      _
    $region35: #{svhn_forward.1} parent=1 // pred_check_branch
      %32 = sbr.rel (0) target = $region37
    $region36: #{svhn_forward.1} parent=1 // pred_region
      _
    $region37: #{svhn_forward.1} parent=1 // pred_fallthru
      _
    %34 = vst [vmem:[#allocation2] sm:$0xf] 0
    %35 = vst [vmem:[#allocation2 + $0x4] sm:$0x1] 0
    %36 = vst [vmem:[#allocation2 + $0x8] sm:$0xf] 0
    %37 = vst [vmem:[#allocation2 + $0xc] sm:$0x1] 0
    %38 = vst [vmem:[#allocation2 + $0x10] sm:$0xf] 0
    %39 = vst [vmem:[#allocation2 + $0x14] sm:$0x1] 0
    %40 = vst [vmem:[#allocation2 + $0x18] sm:$0xf] 0
    %41 = vst [vmem:[#allocation2 + $0x1c] sm:$0x1] 0
    %42 = vst [vmem:[#allocation2 + $0x20] sm:$0xf] 0
    %43 = vst [vmem:[#allocation2 + $0x24] sm:$0x1] 0
    %44 = vst [vmem:[#allocation2 + $0x28] sm:$0xf] 0
    %45 = vst [vmem:[#allocation2 + $0x2c] sm:$0x1] 0
    %46 = vst [vmem:[#allocation2 + $0x30] sm:$0xf] 0
    %47 = vst [vmem:[#allocation2 + $0x34] sm:$0x1] 0
    %48 = vst [vmem:[#allocation2 + $0x38] sm:$0xf] 0
    %49 = vst [vmem:[#allocation2 + $0x3c] sm:$0x1] 0
    %50 = vst [vmem:[#allocation2 + $0x40] sm:$0xf] 0
    %51 = vst [vmem:[#allocation2 + $0x44] sm:$0x1] 0
    %52 = vst [vmem:[#allocation2 + $0x48] sm:$0xf] 0
    %53 = vst [vmem:[#allocation2 + $0x4c] sm:$0x1] 0
    %54 = vst [vmem:[#allocation2 + $0x50] sm:$0xf] 0
    %55 = vst [vmem:[#allocation2 + $0x54] sm:$0x1] 0
    %56 = vst [vmem:[#allocation2 + $0x58] sm:$0xf] 0
    %57 = vst [vmem:[#allocation2 + $0x5c] sm:$0x1] 0
    %58 = vst [vmem:[#allocation2 + $0x60] sm:$0xf] 0
    %59 = vst [vmem:[#allocation2 + $0x64] sm:$0x1] 0
    %60 = vst [vmem:[#allocation2 + $0x68] sm:$0xf] 0
    %61 = vst [vmem:[#allocation2 + $0x6c] sm:$0x1] 0
    %62 = vst [vmem:[#allocation2 + $0x70] sm:$0xf] 0
    %63 = vst [vmem:[#allocation2 + $0x74] sm:$0x1] 0
    %64 = vst [vmem:[#allocation2 + $0x78] sm:$0xf] 0
    %65 = vst [vmem:[#allocation2 + $0x7c] sm:$0x1] 0
    %66 = vst [vmem:[#allocation2 + $0x80] sm:$0xf] 0
    %67 = vst [vmem:[#allocation2 + $0x84] sm:$0x1] 0
    %68 = vst [vmem:[#allocation2 + $0x88] sm:$0xf] 0
    %69 = vst [vmem:[#allocation2 + $0x8c] sm:$0x1] 0
    %70 = vst [vmem:[#allocation2 + $0x90] sm:$0xf] 0
    %71 = vst [vmem:[#allocation2 + $0x94] sm:$0x1] 0
    %72 = vst [vmem:[#allocation2 + $0x98] sm:$0xf] 0
    %73 = vst [vmem:[#allocation2 + $0x9c] sm:$0x1] 0
    %v74 = vld [vmem:[%s0] sm:$0xf]
    %v75 = vld [vmem:[%s0 + $0x4] sm:$0xf]
    %v76 = vld [vmem:[%s0 + $0x8] sm:$0xf]
    %v77 = vld [vmem:[%s0 + $0xc] sm:$0xf]
    %v78 = vld [vmem:[%s0 + $0x10] sm:$0xf]
    %v79 = vld [vmem:[%s0 + $0x14] sm:$0xf]
    %v80 = vld [vmem:[%s0 + $0x18] sm:$0xf]
    %v81 = vld [vmem:[%s0 + $0x1c] sm:$0xf]
    %v82 = vld [vmem:[%s0 + $0x20] sm:$0xf]
    %v83 = vld [vmem:[%s0 + $0x24] sm:$0xf]
    %v84 = vld [vmem:[%s0 + $0x28] sm:$0xf]
    %v85 = vld [vmem:[%s0 + $0x2c] sm:$0xf]
    %v86 = vld [vmem:[%s0 + $0x30] sm:$0xf]
    %v87 = vld [vmem:[%s0 + $0x34] sm:$0xf]
    %v88 = vld [vmem:[%s0 + $0x38] sm:$0xf]
    %v89 = vld [vmem:[%s0 + $0x3c] sm:$0xf]
    %v91 = vshrl.u32 %v74, 16
    %v93 = vrot.slane %v91, 7
    %v94 = vshll.u32 %v74, 16
    %v96 = vor.u32 %v93, %v94
    %v97 = vrot.slane %v93, 4
    %v99 = vshrl.u32 %v75, 16
    %v101 = vrot.slane %v99, 7
    %v102 = vshll.u32 %v75, 16
    %v104 = vor.u32 %v101, %v102
    %v105 = vrot.slane %v101, 4
    %v107 = vshrl.u32 %v76, 16
    %v109 = vrot.slane %v107, 7
    %v110 = vshll.u32 %v76, 16
    %v112 = vor.u32 %v109, %v110
    %v113 = vrot.slane %v109, 4
    %v115 = vshrl.u32 %v77, 16
    %v117 = vrot.slane %v115, 7
    %v118 = vshll.u32 %v77, 16
    %v120 = vor.u32 %v117, %v118
    %v121 = vrot.slane %v117, 4
    %v123 = vshrl.u32 %v78, 16
    %v125 = vrot.slane %v123, 7
    %v126 = vshll.u32 %v78, 16
    %v128 = vor.u32 %v125, %v126
    %v129 = vrot.slane %v125, 4
    %v131 = vshrl.u32 %v79, 16
    %v133 = vrot.slane %v131, 7
    %v134 = vshll.u32 %v79, 16
    %v136 = vor.u32 %v133, %v134
    %v137 = vrot.slane %v133, 4
    %v139 = vshrl.u32 %v80, 16
    %v141 = vrot.slane %v139, 7
    %v142 = vshll.u32 %v80, 16
    %v144 = vor.u32 %v141, %v142
    %v145 = vrot.slane %v141, 4
    %v147 = vshrl.u32 %v81, 16
    %v149 = vrot.slane %v147, 7
    %v150 = vshll.u32 %v81, 16
    %v152 = vor.u32 %v149, %v150
    %v153 = vrot.slane %v149, 4
    %v155 = vshrl.u32 %v82, 16
    %v157 = vrot.slane %v155, 7
    %v158 = vshll.u32 %v82, 16
    %v160 = vor.u32 %v157, %v158
    %v161 = vrot.slane %v157, 4
    %v163 = vshrl.u32 %v83, 16
    %v165 = vrot.slane %v163, 7
    %v166 = vshll.u32 %v83, 16
    %v168 = vor.u32 %v165, %v166
    %v169 = vrot.slane %v165, 4
    %v171 = vshrl.u32 %v84, 16
    %v173 = vrot.slane %v171, 7
    %v174 = vshll.u32 %v84, 16
    %v176 = vor.u32 %v173, %v174
    %v177 = vrot.slane %v173, 4
    %v179 = vshrl.u32 %v85, 16
    %v181 = vrot.slane %v179, 7
    %v182 = vshll.u32 %v85, 16
    %v184 = vor.u32 %v181, %v182
    %v185 = vrot.slane %v181, 4
    %v187 = vshrl.u32 %v86, 16
    %v189 = vrot.slane %v187, 7
    %v190 = vshll.u32 %v86, 16
    %v192 = vor.u32 %v189, %v190
    %v193 = vrot.slane %v189, 4
    %v195 = vshrl.u32 %v87, 16
    %v197 = vrot.slane %v195, 7
    %v198 = vshll.u32 %v87, 16
    %v200 = vor.u32 %v197, %v198
    %v201 = vrot.slane %v197, 4
    %v203 = vshrl.u32 %v88, 16
    %v205 = vrot.slane %v203, 7
    %v206 = vshll.u32 %v88, 16
    %v208 = vor.u32 %v205, %v206
    %v209 = vrot.slane %v205, 4
    %v211 = vshrl.u32 %v89, 16
    %v213 = vrot.slane %v211, 7
    %v214 = vshll.u32 %v89, 16
    %v216 = vor.u32 %v213, %v214
    %v217 = vrot.slane %v213, 4
    %s250 = scalar_lea.vmem [#allocation2], 8
    %vm251 = vcmask 1043456
    %vm252 = vsmask.f32 7938
    %vm253 = vmand %vm251, %vm252
    %v254 = vld [vmem:[%s250] sm:$0xf]
    %v255 = vsel %vm253, %v96, %v254
    %256 = vst [vmem:[%s250] sm:$0xf] %v255
    %vm257 = vcmask 1040384
    %vm258 = vsmask.f32 256
    %vm259 = vmand %vm257, %vm258
    %v260 = vld [vmem:[%s250 + $0x4] sm:$0x1]
    %v261 = vsel %vm259, %v97, %v260
    %262 = vst [vmem:[%s250 + $0x4] sm:$0x1] %v261
    %v263 = vld [vmem:[%s250 + $0x8] sm:$0xf]
    %v264 = vsel %vm253, %v104, %v263
    %265 = vst [vmem:[%s250 + $0x8] sm:$0xf] %v264
    %v266 = vld [vmem:[%s250 + $0xc] sm:$0x1]
    %v267 = vsel %vm259, %v105, %v266
    %268 = vst [vmem:[%s250 + $0xc] sm:$0x1] %v267
    %v269 = vld [vmem:[%s250 + $0x10] sm:$0xf]
    %v270 = vsel %vm253, %v112, %v269
    %271 = vst [vmem:[%s250 + $0x10] sm:$0xf] %v270
    %v272 = vld [vmem:[%s250 + $0x14] sm:$0x1]
    %v273 = vsel %vm259, %v113, %v272
    %274 = vst [vmem:[%s250 + $0x14] sm:$0x1] %v273
    %v275 = vld [vmem:[%s250 + $0x18] sm:$0xf]
    %v276 = vsel %vm253, %v120, %v275
    %277 = vst [vmem:[%s250 + $0x18] sm:$0xf] %v276
    %v278 = vld [vmem:[%s250 + $0x1c] sm:$0x1]
    %v279 = vsel %vm259, %v121, %v278
    %280 = vst [vmem:[%s250 + $0x1c] sm:$0x1] %v279
    %v281 = vld [vmem:[%s250 + $0x20] sm:$0xf]
    %v282 = vsel %vm253, %v128, %v281
    %283 = vst [vmem:[%s250 + $0x20] sm:$0xf] %v282
    %v284 = vld [vmem:[%s250 + $0x24] sm:$0x1]
    %v285 = vsel %vm259, %v129, %v284
    %286 = vst [vmem:[%s250 + $0x24] sm:$0x1] %v285
    %v287 = vld [vmem:[%s250 + $0x28] sm:$0xf]
    %v288 = vsel %vm253, %v136, %v287
    %289 = vst [vmem:[%s250 + $0x28] sm:$0xf] %v288
    %v290 = vld [vmem:[%s250 + $0x2c] sm:$0x1]
    %v291 = vsel %vm259, %v137, %v290
    %292 = vst [vmem:[%s250 + $0x2c] sm:$0x1] %v291
    %v293 = vld [vmem:[%s250 + $0x30] sm:$0xf]
    %v294 = vsel %vm253, %v144, %v293
    %295 = vst [vmem:[%s250 + $0x30] sm:$0xf] %v294
    %v296 = vld [vmem:[%s250 + $0x34] sm:$0x1]
    %v297 = vsel %vm259, %v145, %v296
    %298 = vst [vmem:[%s250 + $0x34] sm:$0x1] %v297
    %v299 = vld [vmem:[%s250 + $0x38] sm:$0xf]
    %v300 = vsel %vm253, %v152, %v299
    %301 = vst [vmem:[%s250 + $0x38] sm:$0xf] %v300
    %v302 = vld [vmem:[%s250 + $0x3c] sm:$0x1]
    %v303 = vsel %vm259, %v153, %v302
    %304 = vst [vmem:[%s250 + $0x3c] sm:$0x1] %v303
    %v305 = vld [vmem:[%s250 + $0x50] sm:$0xf]
    %v306 = vsel %vm253, %v160, %v305
    %307 = vst [vmem:[%s250 + $0x50] sm:$0xf] %v306
    %v308 = vld [vmem:[%s250 + $0x54] sm:$0x1]
    %v309 = vsel %vm259, %v161, %v308
    %310 = vst [vmem:[%s250 + $0x54] sm:$0x1] %v309
    %v311 = vld [vmem:[%s250 + $0x58] sm:$0xf]
    %v312 = vsel %vm253, %v168, %v311
    %313 = vst [vmem:[%s250 + $0x58] sm:$0xf] %v312
    %v314 = vld [vmem:[%s250 + $0x5c] sm:$0x1]
    %v315 = vsel %vm259, %v169, %v314
    %316 = vst [vmem:[%s250 + $0x5c] sm:$0x1] %v315
    %v317 = vld [vmem:[%s250 + $0x60] sm:$0xf]
    %v318 = vsel %vm253, %v176, %v317
    %319 = vst [vmem:[%s250 + $0x60] sm:$0xf] %v318
    %v320 = vld [vmem:[%s250 + $0x64] sm:$0x1]
    %v321 = vsel %vm259, %v177, %v320
    %322 = vst [vmem:[%s250 + $0x64] sm:$0x1] %v321
    %v323 = vld [vmem:[%s250 + $0x68] sm:$0xf]
    %v324 = vsel %vm253, %v184, %v323
    %325 = vst [vmem:[%s250 + $0x68] sm:$0xf] %v324
    %v326 = vld [vmem:[%s250 + $0x6c] sm:$0x1]
    %v327 = vsel %vm259, %v185, %v326
    %328 = vst [vmem:[%s250 + $0x6c] sm:$0x1] %v327
    %v329 = vld [vmem:[%s250 + $0x70] sm:$0xf]
    %v330 = vsel %vm253, %v192, %v329
    %331 = vst [vmem:[%s250 + $0x70] sm:$0xf] %v330
    %v332 = vld [vmem:[%s250 + $0x74] sm:$0x1]
    %v333 = vsel %vm259, %v193, %v332
    %334 = vst [vmem:[%s250 + $0x74] sm:$0x1] %v333
    %v335 = vld [vmem:[%s250 + $0x78] sm:$0xf]
    %v336 = vsel %vm253, %v200, %v335
    %337 = vst [vmem:[%s250 + $0x78] sm:$0xf] %v336
    %v338 = vld [vmem:[%s250 + $0x7c] sm:$0x1]
    %v339 = vsel %vm259, %v201, %v338
    %340 = vst [vmem:[%s250 + $0x7c] sm:$0x1] %v339
    %v341 = vld [vmem:[%s250 + $0x80] sm:$0xf]
    %v342 = vsel %vm253, %v208, %v341
    %343 = vst [vmem:[%s250 + $0x80] sm:$0xf] %v342
    %v344 = vld [vmem:[%s250 + $0x84] sm:$0x1]
    %v345 = vsel %vm259, %v209, %v344
    %346 = vst [vmem:[%s250 + $0x84] sm:$0x1] %v345
    %v347 = vld [vmem:[%s250 + $0x88] sm:$0xf]
    %v348 = vsel %vm253, %v216, %v347
    %349 = vst [vmem:[%s250 + $0x88] sm:$0xf] %v348
    %v350 = vld [vmem:[%s250 + $0x8c] sm:$0x1]
    %v351 = vsel %vm259, %v217, %v350
    %352 = vst [vmem:[%s250 + $0x8c] sm:$0x1] %v351
    %v353 = vld [vmem:[#allocation2] sm:$0xf]
    %v354 = vld [vmem:[#allocation2 + $0x8] sm:$0xf]
    %v355 = vld [vmem:[#allocation2 + $0x10] sm:$0xf]
    %v356 = vld [vmem:[#allocation2 + $0x18] sm:$0xf]
    %v357 = vld [vmem:[#allocation2 + $0x20] sm:$0xf]
    %v358 = vld [vmem:[#allocation2 + $0x28] sm:$0xf]
    %v359 = vld [vmem:[#allocation2 + $0x30] sm:$0xf]
    %v360 = vld [vmem:[#allocation2 + $0x38] sm:$0xf]
    %v361 = vld [vmem:[#allocation2 + $0x50] sm:$0xf]
    %v362 = vld [vmem:[#allocation2 + $0x58] sm:$0xf]
    %v363 = vld [vmem:[#allocation2 + $0x60] sm:$0xf]
    %v364 = vld [vmem:[#allocation2 + $0x68] sm:$0xf]
    %v365 = vld [vmem:[#allocation2 + $0x70] sm:$0xf]
    %v366 = vld [vmem:[#allocation2 + $0x78] sm:$0xf]
    %v367 = vld [vmem:[#allocation2 + $0x80] sm:$0xf]
    %v368 = vld [vmem:[#allocation2 + $0x88] sm:$0xf]
    %v369 = vld [vmem:[#allocation2 + $0x4] sm:$0x1]
    %v370 = vld [vmem:[#allocation2 + $0xc] sm:$0x1]
    %v371 = vld [vmem:[#allocation2 + $0x14] sm:$0x1]
    %v372 = vld [vmem:[#allocation2 + $0x1c] sm:$0x1]
    %v373 = vld [vmem:[#allocation2 + $0x24] sm:$0x1]
    %v374 = vld [vmem:[#allocation2 + $0x2c] sm:$0x1]
    %v375 = vld [vmem:[#allocation2 + $0x34] sm:$0x1]
    %v376 = vld [vmem:[#allocation2 + $0x3c] sm:$0x1]
    %v377 = vld [vmem:[#allocation2 + $0x54] sm:$0x1]
    %v378 = vld [vmem:[#allocation2 + $0x5c] sm:$0x1]
    %v379 = vld [vmem:[#allocation2 + $0x64] sm:$0x1]
    %v380 = vld [vmem:[#allocation2 + $0x6c] sm:$0x1]
    %v381 = vld [vmem:[#allocation2 + $0x74] sm:$0x1]
    %v382 = vld [vmem:[#allocation2 + $0x7c] sm:$0x1]
    %v383 = vld [vmem:[#allocation2 + $0x84] sm:$0x1]
    %v384 = vld [vmem:[#allocation2 + $0x8c] sm:$0x1]
    %v385 = vld [vmem:[#allocation2] sm:$0xe]
    %v386 = vld [vmem:[#allocation2 + $0x8] sm:$0xe]
    %v387 = vld [vmem:[#allocation2 + $0x10] sm:$0xe]
    %v388 = vld [vmem:[#allocation2 + $0x18] sm:$0xe]
    %v389 = vld [vmem:[#allocation2 + $0x20] sm:$0xe]
    %v390 = vld [vmem:[#allocation2 + $0x28] sm:$0xe]
    %v391 = vld [vmem:[#allocation2 + $0x30] sm:$0xe]
    %v392 = vld [vmem:[#allocation2 + $0x38] sm:$0xe]
    %v393 = vld [vmem:[#allocation2 + $0x50] sm:$0xe]
    %v394 = vld [vmem:[#allocation2 + $0x58] sm:$0xe]
    %v395 = vld [vmem:[#allocation2 + $0x60] sm:$0xe]
    %v396 = vld [vmem:[#allocation2 + $0x68] sm:$0xe]
    %v397 = vld [vmem:[#allocation2 + $0x70] sm:$0xe]
    %v398 = vld [vmem:[#allocation2 + $0x78] sm:$0xe]
    %v399 = vld [vmem:[#allocation2 + $0x80] sm:$0xe]
    %v400 = vld [vmem:[#allocation2 + $0x88] sm:$0xe]
    %v401 = vld [vmem:[%s250] sm:$0xf]
    %v402 = vld [vmem:[%s250 + $0x8] sm:$0xf]
    %v403 = vld [vmem:[%s250 + $0x10] sm:$0xf]
    %v404 = vld [vmem:[%s250 + $0x18] sm:$0xf]
    %v405 = vld [vmem:[%s250 + $0x20] sm:$0xf]
    %v406 = vld [vmem:[%s250 + $0x28] sm:$0xf]
    %v407 = vld [vmem:[%s250 + $0x30] sm:$0xf]
    %v408 = vld [vmem:[%s250 + $0x38] sm:$0xf]
    %v409 = vld [vmem:[%s250 + $0x50] sm:$0xf]
    %v410 = vld [vmem:[%s250 + $0x58] sm:$0xf]
    %v411 = vld [vmem:[%s250 + $0x60] sm:$0xf]
    %v412 = vld [vmem:[%s250 + $0x68] sm:$0xf]
    %v413 = vld [vmem:[%s250 + $0x70] sm:$0xf]
    %v414 = vld [vmem:[%s250 + $0x78] sm:$0xf]
    %v415 = vld [vmem:[%s250 + $0x80] sm:$0xf]
    %v416 = vld [vmem:[%s250 + $0x88] sm:$0xf]
    %v417 = vld [vmem:[%s250 + $0x4] sm:$0x1]
    %v418 = vld [vmem:[%s250 + $0xc] sm:$0x1]
    %v419 = vld [vmem:[%s250 + $0x14] sm:$0x1]
    %v420 = vld [vmem:[%s250 + $0x1c] sm:$0x1]
    %v421 = vld [vmem:[%s250 + $0x24] sm:$0x1]
    %v422 = vld [vmem:[%s250 + $0x2c] sm:$0x1]
    %v423 = vld [vmem:[%s250 + $0x34] sm:$0x1]
    %v424 = vld [vmem:[%s250 + $0x3c] sm:$0x1]
    %v425 = vld [vmem:[%s250 + $0x54] sm:$0x1]
    %v426 = vld [vmem:[%s250 + $0x5c] sm:$0x1]
    %v427 = vld [vmem:[%s250 + $0x64] sm:$0x1]
    %v428 = vld [vmem:[%s250 + $0x6c] sm:$0x1]
    %v429 = vld [vmem:[%s250 + $0x74] sm:$0x1]
    %v430 = vld [vmem:[%s250 + $0x7c] sm:$0x1]
    %v431 = vld [vmem:[%s250 + $0x84] sm:$0x1]
    %v432 = vld [vmem:[%s250 + $0x8c] sm:$0x1]
    %v433 = vld [vmem:[%s250] sm:$0xe]
    %v434 = vld [vmem:[%s250 + $0x8] sm:$0xe]
    %v435 = vld [vmem:[%s250 + $0x10] sm:$0xe]
    %v436 = vld [vmem:[%s250 + $0x18] sm:$0xe]
    %v437 = vld [vmem:[%s250 + $0x20] sm:$0xe]
    %v438 = vld [vmem:[%s250 + $0x28] sm:$0xe]
    %v439 = vld [vmem:[%s250 + $0x30] sm:$0xe]
    %v440 = vld [vmem:[%s250 + $0x38] sm:$0xe]
    %v441 = vld [vmem:[%s250 + $0x50] sm:$0xe]
    %v442 = vld [vmem:[%s250 + $0x58] sm:$0xe]
    %v443 = vld [vmem:[%s250 + $0x60] sm:$0xe]
    %v444 = vld [vmem:[%s250 + $0x68] sm:$0xe]
    %v445 = vld [vmem:[%s250 + $0x70] sm:$0xe]
    %v446 = vld [vmem:[%s250 + $0x78] sm:$0xe]
    %v447 = vld [vmem:[%s250 + $0x80] sm:$0xe]
    %v448 = vld [vmem:[%s250 + $0x88] sm:$0xe]
    %s449 = scalar_lea.vmem [#allocation2], 16
    %v450 = vld [vmem:[%s449] sm:$0xf]
    %v451 = vld [vmem:[%s449 + $0x8] sm:$0xf]
    %v452 = vld [vmem:[%s449 + $0x10] sm:$0xf]
    %v453 = vld [vmem:[%s449 + $0x18] sm:$0xf]
    %v454 = vld [vmem:[%s449 + $0x20] sm:$0xf]
    %v455 = vld [vmem:[%s449 + $0x28] sm:$0xf]
    %v456 = vld [vmem:[%s449 + $0x30] sm:$0xf]
    %v457 = vld [vmem:[%s449 + $0x38] sm:$0xf]
    %v458 = vld [vmem:[%s449 + $0x50] sm:$0xf]
    %v459 = vld [vmem:[%s449 + $0x58] sm:$0xf]
    %v460 = vld [vmem:[%s449 + $0x60] sm:$0xf]
    %v461 = vld [vmem:[%s449 + $0x68] sm:$0xf]
    %v462 = vld [vmem:[%s449 + $0x70] sm:$0xf]
    %v463 = vld [vmem:[%s449 + $0x78] sm:$0xf]
    %v464 = vld [vmem:[%s449 + $0x80] sm:$0xf]
    %v465 = vld [vmem:[%s449 + $0x88] sm:$0xf]
    %v466 = vld [vmem:[%s449 + $0x4] sm:$0x1]
    %v467 = vld [vmem:[%s449 + $0xc] sm:$0x1]
    %v468 = vld [vmem:[%s449 + $0x14] sm:$0x1]
    %v469 = vld [vmem:[%s449 + $0x1c] sm:$0x1]
    %v470 = vld [vmem:[%s449 + $0x24] sm:$0x1]
    %v471 = vld [vmem:[%s449 + $0x2c] sm:$0x1]
    %v472 = vld [vmem:[%s449 + $0x34] sm:$0x1]
    %v473 = vld [vmem:[%s449 + $0x3c] sm:$0x1]
    %v474 = vld [vmem:[%s449 + $0x54] sm:$0x1]
    %v475 = vld [vmem:[%s449 + $0x5c] sm:$0x1]
    %v476 = vld [vmem:[%s449 + $0x64] sm:$0x1]
    %v477 = vld [vmem:[%s449 + $0x6c] sm:$0x1]
    %v478 = vld [vmem:[%s449 + $0x74] sm:$0x1]
    %v479 = vld [vmem:[%s449 + $0x7c] sm:$0x1]
    %v480 = vld [vmem:[%s449 + $0x84] sm:$0x1]
    %v481 = vld [vmem:[%s449 + $0x8c] sm:$0x1]
    %v482 = vld [vmem:[%s449] sm:$0xe]
    %v483 = vld [vmem:[%s449 + $0x8] sm:$0xe]
    %v484 = vld [vmem:[%s449 + $0x10] sm:$0xe]
    %v485 = vld [vmem:[%s449 + $0x18] sm:$0xe]
    %v486 = vld [vmem:[%s449 + $0x20] sm:$0xe]
    %v487 = vld [vmem:[%s449 + $0x28] sm:$0xe]
    %v488 = vld [vmem:[%s449 + $0x30] sm:$0xe]
    %v489 = vld [vmem:[%s449 + $0x38] sm:$0xe]
    %v490 = vld [vmem:[%s449 + $0x50] sm:$0xe]
    %v491 = vld [vmem:[%s449 + $0x58] sm:$0xe]
    %v492 = vld [vmem:[%s449 + $0x60] sm:$0xe]
    %v493 = vld [vmem:[%s449 + $0x68] sm:$0xe]
    %v494 = vld [vmem:[%s449 + $0x70] sm:$0xe]
    %v495 = vld [vmem:[%s449 + $0x78] sm:$0xe]
    %v496 = vld [vmem:[%s449 + $0x80] sm:$0xe]
    %v497 = vld [vmem:[%s449 + $0x88] sm:$0xe]
    %v530 = vunpack.c.l.b16 %v353
    %v531 = vunpack.c.l.b16 %v369
    %v532 = vunpack.c.l.b16 %v354
    %v533 = vunpack.c.l.b16 %v370
    %v534 = vunpack.c.l.b16 %v355
    %v535 = vunpack.c.l.b16 %v371
    %v536 = vunpack.c.l.b16 %v356
    %v537 = vunpack.c.l.b16 %v372
    %v538 = vunpack.c.l.b16 %v357
    %v539 = vunpack.c.l.b16 %v373
    %v540 = vunpack.c.l.b16 %v358
    %v541 = vunpack.c.l.b16 %v374
    %v542 = vunpack.c.l.b16 %v359
    %v543 = vunpack.c.l.b16 %v375
    %v544 = vunpack.c.l.b16 %v360
    %v545 = vunpack.c.l.b16 %v376
    %v546 = vunpack.c.l.b16 %v361
    %v547 = vunpack.c.l.b16 %v377
    %v548 = vunpack.c.l.b16 %v362
    %v549 = vunpack.c.l.b16 %v378
    %v550 = vunpack.c.l.b16 %v363
    %v551 = vunpack.c.l.b16 %v379
    %v552 = vunpack.c.l.b16 %v364
    %v553 = vunpack.c.l.b16 %v380
    %v554 = vunpack.c.l.b16 %v365
    %v555 = vunpack.c.l.b16 %v381
    %v556 = vunpack.c.l.b16 %v366
    %v557 = vunpack.c.l.b16 %v382
    %v558 = vunpack.c.l.b16 %v367
    %v559 = vunpack.c.l.b16 %v383
    %v560 = vunpack.c.l.b16 %v368
    %v561 = vunpack.c.l.b16 %v384
    %v562 = vpack.c.b16 %v531, %v530
    %v563 = vpack.c.b16 %v533, %v532
    %v564 = vpack.c.b16 %v535, %v534
    %v565 = vpack.c.b16 %v537, %v536
    %v566 = vpack.c.b16 %v539, %v538
    %v567 = vpack.c.b16 %v541, %v540
    %v568 = vpack.c.b16 %v543, %v542
    %v569 = vpack.c.b16 %v545, %v544
    %v570 = vpack.c.b16 %v547, %v546
    %v571 = vpack.c.b16 %v549, %v548
    %v572 = vpack.c.b16 %v551, %v550
    %v573 = vpack.c.b16 %v553, %v552
    %v574 = vpack.c.b16 %v555, %v554
    %v575 = vpack.c.b16 %v557, %v556
    %v576 = vpack.c.b16 %v559, %v558
    %v577 = vpack.c.b16 %v561, %v560
    %v579 = vshrl.u32 %v562, 16
    %v581 = vshll.u32 %v562, 16
    %v583 = vrot.slane %v581, 1
    %v584 = vor.u32 %v579, %v583
    %v586 = vshrl.u32 %v563, 16
    %v588 = vshll.u32 %v563, 16
    %v590 = vrot.slane %v588, 1
    %v591 = vor.u32 %v586, %v590
    %v593 = vshrl.u32 %v564, 16
    %v595 = vshll.u32 %v564, 16
    %v597 = vrot.slane %v595, 1
    %v598 = vor.u32 %v593, %v597
    %v600 = vshrl.u32 %v565, 16
    %v602 = vshll.u32 %v565, 16
    %v604 = vrot.slane %v602, 1
    %v605 = vor.u32 %v600, %v604
    %v607 = vshrl.u32 %v566, 16
    %v609 = vshll.u32 %v566, 16
    %v611 = vrot.slane %v609, 1
    %v612 = vor.u32 %v607, %v611
    %v614 = vshrl.u32 %v567, 16
    %v616 = vshll.u32 %v567, 16
    %v618 = vrot.slane %v616, 1
    %v619 = vor.u32 %v614, %v618
    %v621 = vshrl.u32 %v568, 16
    %v623 = vshll.u32 %v568, 16
    %v625 = vrot.slane %v623, 1
    %v626 = vor.u32 %v621, %v625
    %v628 = vshrl.u32 %v569, 16
    %v630 = vshll.u32 %v569, 16
    %v632 = vrot.slane %v630, 1
    %v633 = vor.u32 %v628, %v632
    %v635 = vshrl.u32 %v570, 16
    %v637 = vshll.u32 %v570, 16
    %v639 = vrot.slane %v637, 1
    %v640 = vor.u32 %v635, %v639
    %v642 = vshrl.u32 %v571, 16
    %v644 = vshll.u32 %v571, 16
    %v646 = vrot.slane %v644, 1
    %v647 = vor.u32 %v642, %v646
    %v649 = vshrl.u32 %v572, 16
    %v651 = vshll.u32 %v572, 16
    %v653 = vrot.slane %v651, 1
    %v654 = vor.u32 %v649, %v653
    %v656 = vshrl.u32 %v573, 16
    %v658 = vshll.u32 %v573, 16
    %v660 = vrot.slane %v658, 1
    %v661 = vor.u32 %v656, %v660
    %v663 = vshrl.u32 %v574, 16
    %v665 = vshll.u32 %v574, 16
    %v667 = vrot.slane %v665, 1
    %v668 = vor.u32 %v663, %v667
    %v670 = vshrl.u32 %v575, 16
    %v672 = vshll.u32 %v575, 16
    %v674 = vrot.slane %v672, 1
    %v675 = vor.u32 %v670, %v674
    %v677 = vshrl.u32 %v576, 16
    %v679 = vshll.u32 %v576, 16
    %v681 = vrot.slane %v679, 1
    %v682 = vor.u32 %v677, %v681
    %v684 = vshrl.u32 %v577, 16
    %v686 = vshll.u32 %v577, 16
    %v688 = vrot.slane %v686, 1
    %v689 = vor.u32 %v684, %v688
    %v706 = vunpack.c.l.b16 %v385
    %v707 = vunpack.c.l.b16 %v386
    %v708 = vunpack.c.l.b16 %v387
    %v709 = vunpack.c.l.b16 %v388
    %v710 = vunpack.c.l.b16 %v389
    %v711 = vunpack.c.l.b16 %v390
    %v712 = vunpack.c.l.b16 %v391
    %v713 = vunpack.c.l.b16 %v392
    %v714 = vunpack.c.l.b16 %v393
    %v715 = vunpack.c.l.b16 %v394
    %v716 = vunpack.c.l.b16 %v395
    %v717 = vunpack.c.l.b16 %v396
    %v718 = vunpack.c.l.b16 %v397
    %v719 = vunpack.c.l.b16 %v398
    %v720 = vunpack.c.l.b16 %v399
    %v721 = vunpack.c.l.b16 %v400
    %v722 = vpack.c.b16 %v531, %v706
    %v723 = vpack.c.b16 %v533, %v707
    %v724 = vpack.c.b16 %v535, %v708
    %v725 = vpack.c.b16 %v537, %v709
    %v726 = vpack.c.b16 %v539, %v710
    %v727 = vpack.c.b16 %v541, %v711
    %v728 = vpack.c.b16 %v543, %v712
    %v729 = vpack.c.b16 %v545, %v713
    %v730 = vpack.c.b16 %v547, %v714
    %v731 = vpack.c.b16 %v549, %v715
    %v732 = vpack.c.b16 %v551, %v716
    %v733 = vpack.c.b16 %v553, %v717
    %v734 = vpack.c.b16 %v555, %v718
    %v735 = vpack.c.b16 %v557, %v719
    %v736 = vpack.c.b16 %v559, %v720
    %v737 = vpack.c.b16 %v561, %v721
    %v738 = vrot.slane %v722, 1
    %v739 = vrot.slane %v723, 1
    %v740 = vrot.slane %v724, 1
    %v741 = vrot.slane %v725, 1
    %v742 = vrot.slane %v726, 1
    %v743 = vrot.slane %v727, 1
    %v744 = vrot.slane %v728, 1
    %v745 = vrot.slane %v729, 1
    %v746 = vrot.slane %v730, 1
    %v747 = vrot.slane %v731, 1
    %v748 = vrot.slane %v732, 1
    %v749 = vrot.slane %v733, 1
    %v750 = vrot.slane %v734, 1
    %v751 = vrot.slane %v735, 1
    %v752 = vrot.slane %v736, 1
    %v753 = vrot.slane %v737, 1
    %v786 = vunpack.c.l.b16 %v401
    %v787 = vunpack.c.l.b16 %v417
    %v788 = vunpack.c.l.b16 %v402
    %v789 = vunpack.c.l.b16 %v418
    %v790 = vunpack.c.l.b16 %v403
    %v791 = vunpack.c.l.b16 %v419
    %v792 = vunpack.c.l.b16 %v404
    %v793 = vunpack.c.l.b16 %v420
    %v794 = vunpack.c.l.b16 %v405
    %v795 = vunpack.c.l.b16 %v421
    %v796 = vunpack.c.l.b16 %v406
    %v797 = vunpack.c.l.b16 %v422
    %v798 = vunpack.c.l.b16 %v407
    %v799 = vunpack.c.l.b16 %v423
    %v800 = vunpack.c.l.b16 %v408
    %v801 = vunpack.c.l.b16 %v424
    %v802 = vunpack.c.l.b16 %v409
    %v803 = vunpack.c.l.b16 %v425
    %v804 = vunpack.c.l.b16 %v410
    %v805 = vunpack.c.l.b16 %v426
    %v806 = vunpack.c.l.b16 %v411
    %v807 = vunpack.c.l.b16 %v427
    %v808 = vunpack.c.l.b16 %v412
    %v809 = vunpack.c.l.b16 %v428
    %v810 = vunpack.c.l.b16 %v413
    %v811 = vunpack.c.l.b16 %v429
    %v812 = vunpack.c.l.b16 %v414
    %v813 = vunpack.c.l.b16 %v430
    %v814 = vunpack.c.l.b16 %v415
    %v815 = vunpack.c.l.b16 %v431
    %v816 = vunpack.c.l.b16 %v416
    %v817 = vunpack.c.l.b16 %v432
    %v818 = vpack.c.b16 %v787, %v786
    %v819 = vpack.c.b16 %v789, %v788
    %v820 = vpack.c.b16 %v791, %v790
    %v821 = vpack.c.b16 %v793, %v792
    %v822 = vpack.c.b16 %v795, %v794
    %v823 = vpack.c.b16 %v797, %v796
    %v824 = vpack.c.b16 %v799, %v798
    %v825 = vpack.c.b16 %v801, %v800
    %v826 = vpack.c.b16 %v803, %v802
    %v827 = vpack.c.b16 %v805, %v804
    %v828 = vpack.c.b16 %v807, %v806
    %v829 = vpack.c.b16 %v809, %v808
    %v830 = vpack.c.b16 %v811, %v810
    %v831 = vpack.c.b16 %v813, %v812
    %v832 = vpack.c.b16 %v815, %v814
    %v833 = vpack.c.b16 %v817, %v816
    %v835 = vshrl.u32 %v818, 16
    %v837 = vshll.u32 %v818, 16
    %v839 = vrot.slane %v837, 1
    %v840 = vor.u32 %v835, %v839
    %v842 = vshrl.u32 %v819, 16
    %v844 = vshll.u32 %v819, 16
    %v846 = vrot.slane %v844, 1
    %v847 = vor.u32 %v842, %v846
    %v849 = vshrl.u32 %v820, 16
    %v851 = vshll.u32 %v820, 16
    %v853 = vrot.slane %v851, 1
    %v854 = vor.u32 %v849, %v853
    %v856 = vshrl.u32 %v821, 16
    %v858 = vshll.u32 %v821, 16
    %v860 = vrot.slane %v858, 1
    %v861 = vor.u32 %v856, %v860
    %v863 = vshrl.u32 %v822, 16
    %v865 = vshll.u32 %v822, 16
    %v867 = vrot.slane %v865, 1
    %v868 = vor.u32 %v863, %v867
    %v870 = vshrl.u32 %v823, 16
    %v872 = vshll.u32 %v823, 16
    %v874 = vrot.slane %v872, 1
    %v875 = vor.u32 %v870, %v874
    %v877 = vshrl.u32 %v824, 16
    %v879 = vshll.u32 %v824, 16
    %v881 = vrot.slane %v879, 1
    %v882 = vor.u32 %v877, %v881
    %v884 = vshrl.u32 %v825, 16
    %v886 = vshll.u32 %v825, 16
    %v888 = vrot.slane %v886, 1
    %v889 = vor.u32 %v884, %v888
    %v891 = vshrl.u32 %v826, 16
    %v893 = vshll.u32 %v826, 16
    %v895 = vrot.slane %v893, 1
    %v896 = vor.u32 %v891, %v895
    %v898 = vshrl.u32 %v827, 16
    %v900 = vshll.u32 %v827, 16
    %v902 = vrot.slane %v900, 1
    %v903 = vor.u32 %v898, %v902
    %v905 = vshrl.u32 %v828, 16
    %v907 = vshll.u32 %v828, 16
    %v909 = vrot.slane %v907, 1
    %v910 = vor.u32 %v905, %v909
    %v912 = vshrl.u32 %v829, 16
    %v914 = vshll.u32 %v829, 16
    %v916 = vrot.slane %v914, 1
    %v917 = vor.u32 %v912, %v916
    %v919 = vshrl.u32 %v830, 16
    %v921 = vshll.u32 %v830, 16
    %v923 = vrot.slane %v921, 1
    %v924 = vor.u32 %v919, %v923
    %v926 = vshrl.u32 %v831, 16
    %v928 = vshll.u32 %v831, 16
    %v930 = vrot.slane %v928, 1
    %v931 = vor.u32 %v926, %v930
    %v933 = vshrl.u32 %v832, 16
    %v935 = vshll.u32 %v832, 16
    %v937 = vrot.slane %v935, 1
    %v938 = vor.u32 %v933, %v937
    %v940 = vshrl.u32 %v833, 16
    %v942 = vshll.u32 %v833, 16
    %v944 = vrot.slane %v942, 1
    %v945 = vor.u32 %v940, %v944
    %v962 = vunpack.c.l.b16 %v433
    %v963 = vunpack.c.l.b16 %v434
    %v964 = vunpack.c.l.b16 %v435
    %v965 = vunpack.c.l.b16 %v436
    %v966 = vunpack.c.l.b16 %v437
    %v967 = vunpack.c.l.b16 %v438
    %v968 = vunpack.c.l.b16 %v439
    %v969 = vunpack.c.l.b16 %v440
    %v970 = vunpack.c.l.b16 %v441
    %v971 = vunpack.c.l.b16 %v442
    %v972 = vunpack.c.l.b16 %v443
    %v973 = vunpack.c.l.b16 %v444
    %v974 = vunpack.c.l.b16 %v445
    %v975 = vunpack.c.l.b16 %v446
    %v976 = vunpack.c.l.b16 %v447
    %v977 = vunpack.c.l.b16 %v448
    %v978 = vpack.c.b16 %v787, %v962
    %v979 = vpack.c.b16 %v789, %v963
    %v980 = vpack.c.b16 %v791, %v964
    %v981 = vpack.c.b16 %v793, %v965
    %v982 = vpack.c.b16 %v795, %v966
    %v983 = vpack.c.b16 %v797, %v967
    %v984 = vpack.c.b16 %v799, %v968
    %v985 = vpack.c.b16 %v801, %v969
    %v986 = vpack.c.b16 %v803, %v970
    %v987 = vpack.c.b16 %v805, %v971
    %v988 = vpack.c.b16 %v807, %v972
    %v989 = vpack.c.b16 %v809, %v973
    %v990 = vpack.c.b16 %v811, %v974
    %v991 = vpack.c.b16 %v813, %v975
    %v992 = vpack.c.b16 %v815, %v976
    %v993 = vpack.c.b16 %v817, %v977
    %v994 = vrot.slane %v978, 1
    %v995 = vrot.slane %v979, 1
    %v996 = vrot.slane %v980, 1
    %v997 = vrot.slane %v981, 1
    %v998 = vrot.slane %v982, 1
    %v999 = vrot.slane %v983, 1
    %v1000 = vrot.slane %v984, 1
    %v1001 = vrot.slane %v985, 1
    %v1002 = vrot.slane %v986, 1
    %v1003 = vrot.slane %v987, 1
    %v1004 = vrot.slane %v988, 1
    %v1005 = vrot.slane %v989, 1
    %v1006 = vrot.slane %v990, 1
    %v1007 = vrot.slane %v991, 1
    %v1008 = vrot.slane %v992, 1
    %v1009 = vrot.slane %v993, 1
    %v1042 = vunpack.c.l.b16 %v450
    %v1043 = vunpack.c.l.b16 %v466
    %v1044 = vunpack.c.l.b16 %v451
    %v1045 = vunpack.c.l.b16 %v467
    %v1046 = vunpack.c.l.b16 %v452
    %v1047 = vunpack.c.l.b16 %v468
    %v1048 = vunpack.c.l.b16 %v453
    %v1049 = vunpack.c.l.b16 %v469
    %v1050 = vunpack.c.l.b16 %v454
    %v1051 = vunpack.c.l.b16 %v470
    %v1052 = vunpack.c.l.b16 %v455
    %v1053 = vunpack.c.l.b16 %v471
    %v1054 = vunpack.c.l.b16 %v456
    %v1055 = vunpack.c.l.b16 %v472
    %v1056 = vunpack.c.l.b16 %v457
    %v1057 = vunpack.c.l.b16 %v473
    %v1058 = vunpack.c.l.b16 %v458
    %v1059 = vunpack.c.l.b16 %v474
    %v1060 = vunpack.c.l.b16 %v459
    %v1061 = vunpack.c.l.b16 %v475
    %v1062 = vunpack.c.l.b16 %v460
    %v1063 = vunpack.c.l.b16 %v476
    %v1064 = vunpack.c.l.b16 %v461
    %v1065 = vunpack.c.l.b16 %v477
    %v1066 = vunpack.c.l.b16 %v462
    %v1067 = vunpack.c.l.b16 %v478
    %v1068 = vunpack.c.l.b16 %v463
    %v1069 = vunpack.c.l.b16 %v479
    %v1070 = vunpack.c.l.b16 %v464
    %v1071 = vunpack.c.l.b16 %v480
    %v1072 = vunpack.c.l.b16 %v465
    %v1073 = vunpack.c.l.b16 %v481
    %v1074 = vpack.c.b16 %v1043, %v1042
    %v1075 = vpack.c.b16 %v1045, %v1044
    %v1076 = vpack.c.b16 %v1047, %v1046
    %v1077 = vpack.c.b16 %v1049, %v1048
    %v1078 = vpack.c.b16 %v1051, %v1050
    %v1079 = vpack.c.b16 %v1053, %v1052
    %v1080 = vpack.c.b16 %v1055, %v1054
    %v1081 = vpack.c.b16 %v1057, %v1056
    %v1082 = vpack.c.b16 %v1059, %v1058
    %v1083 = vpack.c.b16 %v1061, %v1060
    %v1084 = vpack.c.b16 %v1063, %v1062
    %v1085 = vpack.c.b16 %v1065, %v1064
    %v1086 = vpack.c.b16 %v1067, %v1066
    %v1087 = vpack.c.b16 %v1069, %v1068
    %v1088 = vpack.c.b16 %v1071, %v1070
    %v1089 = vpack.c.b16 %v1073, %v1072
    %v1091 = vshrl.u32 %v1074, 16
    %v1093 = vshll.u32 %v1074, 16
    %v1095 = vrot.slane %v1093, 1
    %v1096 = vor.u32 %v1091, %v1095
    %v1098 = vshrl.u32 %v1075, 16
    %v1100 = vshll.u32 %v1075, 16
    %v1102 = vrot.slane %v1100, 1
    %v1103 = vor.u32 %v1098, %v1102
    %v1105 = vshrl.u32 %v1076, 16
    %v1107 = vshll.u32 %v1076, 16
    %v1109 = vrot.slane %v1107, 1
    %v1110 = vor.u32 %v1105, %v1109
    %v1112 = vshrl.u32 %v1077, 16
    %v1114 = vshll.u32 %v1077, 16
    %v1116 = vrot.slane %v1114, 1
    %v1117 = vor.u32 %v1112, %v1116
    %v1119 = vshrl.u32 %v1078, 16
    %v1121 = vshll.u32 %v1078, 16
    %v1123 = vrot.slane %v1121, 1
    %v1124 = vor.u32 %v1119, %v1123
    %v1126 = vshrl.u32 %v1079, 16
    %v1128 = vshll.u32 %v1079, 16
    %v1130 = vrot.slane %v1128, 1
    %v1131 = vor.u32 %v1126, %v1130
    %v1133 = vshrl.u32 %v1080, 16
    %v1135 = vshll.u32 %v1080, 16
    %v1137 = vrot.slane %v1135, 1
    %v1138 = vor.u32 %v1133, %v1137
    %v1140 = vshrl.u32 %v1081, 16
    %v1142 = vshll.u32 %v1081, 16
    %v1144 = vrot.slane %v1142, 1
    %v1145 = vor.u32 %v1140, %v1144
    %v1147 = vshrl.u32 %v1082, 16
    %v1149 = vshll.u32 %v1082, 16
    %v1151 = vrot.slane %v1149, 1
    %v1152 = vor.u32 %v1147, %v1151
    %v1154 = vshrl.u32 %v1083, 16
    %v1156 = vshll.u32 %v1083, 16
    %v1158 = vrot.slane %v1156, 1
    %v1159 = vor.u32 %v1154, %v1158
    %v1161 = vshrl.u32 %v1084, 16
    %v1163 = vshll.u32 %v1084, 16
    %v1165 = vrot.slane %v1163, 1
    %v1166 = vor.u32 %v1161, %v1165
    %v1168 = vshrl.u32 %v1085, 16
    %v1170 = vshll.u32 %v1085, 16
    %v1172 = vrot.slane %v1170, 1
    %v1173 = vor.u32 %v1168, %v1172
    %v1175 = vshrl.u32 %v1086, 16
    %v1177 = vshll.u32 %v1086, 16
    %v1179 = vrot.slane %v1177, 1
    %v1180 = vor.u32 %v1175, %v1179
    %v1182 = vshrl.u32 %v1087, 16
    %v1184 = vshll.u32 %v1087, 16
    %v1186 = vrot.slane %v1184, 1
    %v1187 = vor.u32 %v1182, %v1186
    %v1189 = vshrl.u32 %v1088, 16
    %v1191 = vshll.u32 %v1088, 16
    %v1193 = vrot.slane %v1191, 1
    %v1194 = vor.u32 %v1189, %v1193
    %v1196 = vshrl.u32 %v1089, 16
    %v1198 = vshll.u32 %v1089, 16
    %v1200 = vrot.slane %v1198, 1
    %v1201 = vor.u32 %v1196, %v1200
    %v1218 = vunpack.c.l.b16 %v482
    %v1219 = vunpack.c.l.b16 %v483
    %v1220 = vunpack.c.l.b16 %v484
    %v1221 = vunpack.c.l.b16 %v485
    %v1222 = vunpack.c.l.b16 %v486
    %v1223 = vunpack.c.l.b16 %v487
    %v1224 = vunpack.c.l.b16 %v488
    %v1225 = vunpack.c.l.b16 %v489
    %v1226 = vunpack.c.l.b16 %v490
    %v1227 = vunpack.c.l.b16 %v491
    %v1228 = vunpack.c.l.b16 %v492
    %v1229 = vunpack.c.l.b16 %v493
    %v1230 = vunpack.c.l.b16 %v494
    %v1231 = vunpack.c.l.b16 %v495
    %v1232 = vunpack.c.l.b16 %v496
    %v1233 = vunpack.c.l.b16 %v497
    %v1234 = vpack.c.b16 %v1043, %v1218
    %v1235 = vpack.c.b16 %v1045, %v1219
    %v1236 = vpack.c.b16 %v1047, %v1220
    %v1237 = vpack.c.b16 %v1049, %v1221
    %v1238 = vpack.c.b16 %v1051, %v1222
    %v1239 = vpack.c.b16 %v1053, %v1223
    %v1240 = vpack.c.b16 %v1055, %v1224
    %v1241 = vpack.c.b16 %v1057, %v1225
    %v1242 = vpack.c.b16 %v1059, %v1226
    %v1243 = vpack.c.b16 %v1061, %v1227
    %v1244 = vpack.c.b16 %v1063, %v1228
    %v1245 = vpack.c.b16 %v1065, %v1229
    %v1246 = vpack.c.b16 %v1067, %v1230
    %v1247 = vpack.c.b16 %v1069, %v1231
    %v1248 = vpack.c.b16 %v1071, %v1232
    %v1249 = vpack.c.b16 %v1073, %v1233
    %v1250 = vrot.slane %v1234, 1
    %v1251 = vrot.slane %v1235, 1
    %v1252 = vrot.slane %v1236, 1
    %v1253 = vrot.slane %v1237, 1
    %v1254 = vrot.slane %v1238, 1
    %v1255 = vrot.slane %v1239, 1
    %v1256 = vrot.slane %v1240, 1
    %v1257 = vrot.slane %v1241, 1
    %v1258 = vrot.slane %v1242, 1
    %v1259 = vrot.slane %v1243, 1
    %v1260 = vrot.slane %v1244, 1
    %v1261 = vrot.slane %v1245, 1
    %v1262 = vrot.slane %v1246, 1
    %v1263 = vrot.slane %v1247, 1
    %v1264 = vrot.slane %v1248, 1
    %v1265 = vrot.slane %v1249, 1
    %v1266 = vunpack.c.l.b16 %v584
    %v1267 = vunpack.c.l.b16 %v738
    %v1268 = vunpack.c.l.b16 %v840
    %v1269 = vunpack.c.l.b16 %v994
    %v1270 = vunpack.c.l.b16 %v1096
    %v1271 = vunpack.c.l.b16 %v1250
    %v1272 = vunpack.c.l.b16 %v591
    %v1273 = vunpack.c.l.b16 %v739
    %v1274 = vunpack.c.l.b16 %v847
    %v1275 = vunpack.c.l.b16 %v995
    %v1276 = vunpack.c.l.b16 %v1103
    %v1277 = vunpack.c.l.b16 %v1251
    %v1278 = vunpack.c.l.b16 %v598
    %v1279 = vunpack.c.l.b16 %v740
    %v1280 = vunpack.c.l.b16 %v854
    %v1281 = vunpack.c.l.b16 %v996
    %v1282 = vunpack.c.l.b16 %v1110
    %v1283 = vunpack.c.l.b16 %v1252
    %v1284 = vunpack.c.l.b16 %v605
    %v1285 = vunpack.c.l.b16 %v741
    %v1286 = vunpack.c.l.b16 %v861
    %v1287 = vunpack.c.l.b16 %v997
    %v1288 = vunpack.c.l.b16 %v1117
    %v1289 = vunpack.c.l.b16 %v1253
    %v1290 = vunpack.c.l.b16 %v612
    %v1291 = vunpack.c.l.b16 %v742
    %v1292 = vunpack.c.l.b16 %v868
    %v1293 = vunpack.c.l.b16 %v998
    %v1294 = vunpack.c.l.b16 %v1124
    %v1295 = vunpack.c.l.b16 %v1254
    %v1296 = vunpack.c.l.b16 %v619
    %v1297 = vunpack.c.l.b16 %v743
    %v1298 = vunpack.c.l.b16 %v875
    %v1299 = vunpack.c.l.b16 %v999
    %v1300 = vunpack.c.l.b16 %v1131
    %v1301 = vunpack.c.l.b16 %v1255
    %v1302 = vunpack.c.l.b16 %v626
    %v1303 = vunpack.c.l.b16 %v744
    %v1304 = vunpack.c.l.b16 %v882
    %v1305 = vunpack.c.l.b16 %v1000
    %v1306 = vunpack.c.l.b16 %v1138
    %v1307 = vunpack.c.l.b16 %v1256
    %v1308 = vunpack.c.l.b16 %v633
    %v1309 = vunpack.c.l.b16 %v745
    %v1310 = vunpack.c.l.b16 %v889
    %v1311 = vunpack.c.l.b16 %v1001
    %v1312 = vunpack.c.l.b16 %v1145
    %v1313 = vunpack.c.l.b16 %v1257
    %v1314 = vunpack.c.l.b16 %v640
    %v1315 = vunpack.c.l.b16 %v746
    %v1316 = vunpack.c.l.b16 %v896
    %v1317 = vunpack.c.l.b16 %v1002
    %v1318 = vunpack.c.l.b16 %v1152
    %v1319 = vunpack.c.l.b16 %v1258
    %v1320 = vunpack.c.l.b16 %v647
    %v1321 = vunpack.c.l.b16 %v747
    %v1322 = vunpack.c.l.b16 %v903
    %v1323 = vunpack.c.l.b16 %v1003
    %v1324 = vunpack.c.l.b16 %v1159
    %v1325 = vunpack.c.l.b16 %v1259
    %v1326 = vunpack.c.l.b16 %v654
    %v1327 = vunpack.c.l.b16 %v748
    %v1328 = vunpack.c.l.b16 %v910
    %v1329 = vunpack.c.l.b16 %v1004
    %v1330 = vunpack.c.l.b16 %v1166
    %v1331 = vunpack.c.l.b16 %v1260
    %v1332 = vunpack.c.l.b16 %v661
    %v1333 = vunpack.c.l.b16 %v749
    %v1334 = vunpack.c.l.b16 %v917
    %v1335 = vunpack.c.l.b16 %v1005
    %v1336 = vunpack.c.l.b16 %v1173
    %v1337 = vunpack.c.l.b16 %v1261
    %v1338 = vunpack.c.l.b16 %v668
    %v1339 = vunpack.c.l.b16 %v750
    %v1340 = vunpack.c.l.b16 %v924
    %v1341 = vunpack.c.l.b16 %v1006
    %v1342 = vunpack.c.l.b16 %v1180
    %v1343 = vunpack.c.l.b16 %v1262
    %v1344 = vunpack.c.l.b16 %v675
    %v1345 = vunpack.c.l.b16 %v751
    %v1346 = vunpack.c.l.b16 %v931
    %v1347 = vunpack.c.l.b16 %v1007
    %v1348 = vunpack.c.l.b16 %v1187
    %v1349 = vunpack.c.l.b16 %v1263
    %v1350 = vunpack.c.l.b16 %v682
    %v1351 = vunpack.c.l.b16 %v752
    %v1352 = vunpack.c.l.b16 %v938
    %v1353 = vunpack.c.l.b16 %v1008
    %v1354 = vunpack.c.l.b16 %v1194
    %v1355 = vunpack.c.l.b16 %v1264
    %v1356 = vunpack.c.l.b16 %v689
    %v1357 = vunpack.c.l.b16 %v753
    %v1358 = vunpack.c.l.b16 %v945
    %v1359 = vunpack.c.l.b16 %v1009
    %v1360 = vunpack.c.l.b16 %v1201
    %v1361 = vunpack.c.l.b16 %v1265
    %v1362 = vld [vmem:[%s1] sm:$0xf]
    %v1363 = vld [vmem:[%s1 + $0x4] sm:$0xf]
    %v1364 = vld [vmem:[%s1 + $0x8] sm:$0xf]
    %v1365 = vld [vmem:[%s1 + $0xc] sm:$0xf]
    %v1366 = vld [vmem:[%s1 + $0x10] sm:$0xf]
    %v1367 = vld [vmem:[%s1 + $0x14] sm:$0xf]
    %v1368 = vld [vmem:[%s1 + $0x18] sm:$0xf]
    %v1369 = vld [vmem:[%s1 + $0x1c] sm:$0xf]
    %v1370 = vld [vmem:[%s1 + $0x20] sm:$0xf]
    %v1371 = vld [vmem:[%s1 + $0x24] sm:$0xf]
    %v1372 = vld [vmem:[%s1 + $0x28] sm:$0xf]
    %v1373 = vld [vmem:[%s1 + $0x2c] sm:$0xf]
    %v1374 = vld [vmem:[%s1 + $0x30] sm:$0xf]
    %v1375 = vld [vmem:[%s1 + $0x34] sm:$0xf]
    %v1376 = vld [vmem:[%s1 + $0x38] sm:$0xf]
    %v1377 = vld [vmem:[%s1 + $0x3c] sm:$0xf]
    %v1378 = vld [vmem:[%s1 + $0x40] sm:$0xf]
    %v1379 = vld [vmem:[%s1 + $0x44] sm:$0xf]
    %v1380 = vld [vmem:[%s1 + $0x48] sm:$0xf]
    %v1381 = vld [vmem:[%s1 + $0x4c] sm:$0xf]
    %v1382 = vld [vmem:[%s1 + $0x50] sm:$0xf]
    %v1383 = vld [vmem:[%s1 + $0x54] sm:$0xf]
    %v1384 = vld [vmem:[%s1 + $0x58] sm:$0xf]
    %v1385 = vld [vmem:[%s1 + $0x5c] sm:$0xf]
    %v1386 = vld [vmem:[%s1 + $0x60] sm:$0xf]
    %v1387 = vld [vmem:[%s1 + $0x64] sm:$0xf]
    %v1388 = vld [vmem:[%s1 + $0x68] sm:$0xf]
    %v1389 = vld [vmem:[%s1 + $0x6c] sm:$0xf]
    %v1390 = vld [vmem:[%s1 + $0x70] sm:$0xf]
    %v1391 = vld [vmem:[%s1 + $0x74] sm:$0xf]
    %v1392 = vld [vmem:[%s1 + $0x78] sm:$0xf]
    %v1393 = vld [vmem:[%s1 + $0x7c] sm:$0xf]
    %v1394 = vld [vmem:[%s1 + $0x80] sm:$0xf]
    %v1395 = vld [vmem:[%s1 + $0x84] sm:$0xf]
    %v1396 = vld [vmem:[%s1 + $0x88] sm:$0xf]
    %v1397 = vld [vmem:[%s1 + $0x8c] sm:$0xf]
    %v1398 = vld [vmem:[%s1 + $0x90] sm:$0xf]
    %v1399 = vld [vmem:[%s1 + $0x94] sm:$0xf]
    %v1400 = vld [vmem:[%s1 + $0x98] sm:$0xf]
    %v1401 = vld [vmem:[%s1 + $0x9c] sm:$0xf]
    %v1402 = vld [vmem:[%s1 + $0xa0] sm:$0xf]
    %v1403 = vld [vmem:[%s1 + $0xa4] sm:$0xf]
    %v1404 = vld [vmem:[%s1 + $0xa8] sm:$0xf]
    %v1405 = vld [vmem:[%s1 + $0xac] sm:$0xf]
    %v1406 = vld [vmem:[%s1 + $0xb0] sm:$0xf]
    %v1407 = vld [vmem:[%s1 + $0xb4] sm:$0xf]
    %v1408 = vld [vmem:[%s1 + $0xb8] sm:$0xf]
    %v1409 = vld [vmem:[%s1 + $0xbc] sm:$0xf]
    %v1410 = vld [vmem:[%s1 + $0xc0] sm:$0xf]
    %v1411 = vld [vmem:[%s1 + $0xc4] sm:$0xf]
    %v1412 = vld [vmem:[%s1 + $0xc8] sm:$0xf]
    %v1413 = vld [vmem:[%s1 + $0xcc] sm:$0xf]
    %v1414 = vld [vmem:[%s1 + $0xd0] sm:$0xf]
    %v1415 = vld [vmem:[%s1 + $0xd4] sm:$0xf]
    %v1416 = vld [vmem:[%s1 + $0xd8] sm:$0xf]
    %v1417 = vld [vmem:[%s1 + $0xdc] sm:$0xf]
    %v1418 = vld [vmem:[%s1 + $0xe0] sm:$0xf]
    %v1419 = vld [vmem:[%s1 + $0xe4] sm:$0xf]
    %v1420 = vld [vmem:[%s1 + $0xe8] sm:$0xf]
    %v1421 = vld [vmem:[%s1 + $0xec] sm:$0xf]
    %v1422 = vld [vmem:[%s1 + $0xf0] sm:$0xf]
    %v1423 = vld [vmem:[%s1 + $0xf4] sm:$0xf]
    %v1424 = vld [vmem:[%s1 + $0xf8] sm:$0xf]
    %v1425 = vld [vmem:[%s1 + $0xfc] sm:$0xf]
    %v1426 = vld [vmem:[%s1 + $0x100] sm:$0xf]
    %v1427 = vld [vmem:[%s1 + $0x104] sm:$0xf]
    %v1428 = vld [vmem:[%s1 + $0x108] sm:$0xf]
    %v1429 = vld [vmem:[%s1 + $0x10c] sm:$0xf]
    %v1430 = vld [vmem:[%s1 + $0x110] sm:$0xf]
    %v1431 = vld [vmem:[%s1 + $0x114] sm:$0xf]
    %v1432 = vld [vmem:[%s1 + $0x118] sm:$0xf]
    %v1433 = vld [vmem:[%s1 + $0x11c] sm:$0xf]
    %v1434 = vld [vmem:[%s1 + $0x120] sm:$0xf]
    %v1435 = vld [vmem:[%s1 + $0x124] sm:$0xf]
    %v1436 = vld [vmem:[%s1 + $0x128] sm:$0xf]
    %v1437 = vld [vmem:[%s1 + $0x12c] sm:$0xf]
    %v1438 = vld [vmem:[%s1 + $0x130] sm:$0xf]
    %v1439 = vld [vmem:[%s1 + $0x134] sm:$0xf]
    %v1440 = vld [vmem:[%s1 + $0x138] sm:$0xf]
    %v1441 = vld [vmem:[%s1 + $0x13c] sm:$0xf]
    %v1442 = vld [vmem:[%s1 + $0x140] sm:$0xf]
    %v1443 = vld [vmem:[%s1 + $0x144] sm:$0xf]
    %v1444 = vld [vmem:[%s1 + $0x148] sm:$0xf]
    %v1445 = vld [vmem:[%s1 + $0x14c] sm:$0xf]
    %v1446 = vld [vmem:[%s1 + $0x150] sm:$0xf]
    %v1447 = vld [vmem:[%s1 + $0x154] sm:$0xf]
    %v1448 = vld [vmem:[%s1 + $0x158] sm:$0xf]
    %v1449 = vld [vmem:[%s1 + $0x15c] sm:$0xf]
    %v1450 = vld [vmem:[%s1 + $0x160] sm:$0xf]
    %v1451 = vld [vmem:[%s1 + $0x164] sm:$0xf]
    %v1452 = vld [vmem:[%s1 + $0x168] sm:$0xf]
    %v1453 = vld [vmem:[%s1 + $0x16c] sm:$0xf]
    %v1454 = vld [vmem:[%s1 + $0x170] sm:$0xf]
    %v1455 = vld [vmem:[%s1 + $0x174] sm:$0xf]
    %v1456 = vld [vmem:[%s1 + $0x178] sm:$0xf]
    %v1457 = vld [vmem:[%s1 + $0x17c] sm:$0xf]
    %v1458 = vld [vmem:[%s1 + $0x180] sm:$0xf]
    %v1459 = vld [vmem:[%s1 + $0x184] sm:$0xf]
    %v1460 = vld [vmem:[%s1 + $0x188] sm:$0xf]
    %v1461 = vld [vmem:[%s1 + $0x18c] sm:$0xf]
    %v1462 = vld [vmem:[%s1 + $0x190] sm:$0xf]
    %v1463 = vld [vmem:[%s1 + $0x194] sm:$0xf]
    %v1464 = vld [vmem:[%s1 + $0x198] sm:$0xf]
    %v1465 = vld [vmem:[%s1 + $0x19c] sm:$0xf]
    %v1466 = vld [vmem:[%s1 + $0x1a0] sm:$0xf]
    %v1467 = vld [vmem:[%s1 + $0x1a4] sm:$0xf]
    %v1468 = vld [vmem:[%s1 + $0x1a8] sm:$0xf]
    %v1469 = vld [vmem:[%s1 + $0x1ac] sm:$0xf]
    %v1470 = vld [vmem:[%s1 + $0x1b0] sm:$0xf]
    %v1471 = vld [vmem:[%s1 + $0x1b4] sm:$0xf]
    %v1472 = vld [vmem:[%s1 + $0x1b8] sm:$0xf]
    %v1473 = vld [vmem:[%s1 + $0x1bc] sm:$0xf]
    %v1474 = vld [vmem:[%s1 + $0x1c0] sm:$0xf]
    %v1475 = vld [vmem:[%s1 + $0x1c4] sm:$0xf]
    %v1476 = vld [vmem:[%s1 + $0x1c8] sm:$0xf]
    %v1477 = vld [vmem:[%s1 + $0x1cc] sm:$0xf]
    %v1478 = vld [vmem:[%s1 + $0x1d0] sm:$0xf]
    %v1479 = vld [vmem:[%s1 + $0x1d4] sm:$0xf]
    %v1480 = vld [vmem:[%s1 + $0x1d8] sm:$0xf]
    %v1481 = vld [vmem:[%s1 + $0x1dc] sm:$0xf]
    %v1482 = vld [vmem:[%s1 + $0x1e0] sm:$0xf]
    %v1483 = vld [vmem:[%s1 + $0x1e4] sm:$0xf]
    %v1484 = vld [vmem:[%s1 + $0x1e8] sm:$0xf]
    %v1485 = vld [vmem:[%s1 + $0x1ec] sm:$0xf]
    %v1486 = vld [vmem:[%s1 + $0x1f0] sm:$0xf]
    %v1487 = vld [vmem:[%s1 + $0x1f4] sm:$0xf]
    %v1488 = vld [vmem:[%s1 + $0x1f8] sm:$0xf]
    %v1489 = vld [vmem:[%s1 + $0x1fc] sm:$0xf]
    %v1490 = vld [vmem:[%s1 + $0x200] sm:$0xf]
    %v1491 = vld [vmem:[%s1 + $0x204] sm:$0xf]
    %v1492 = vld [vmem:[%s1 + $0x208] sm:$0xf]
    %v1493 = vld [vmem:[%s1 + $0x20c] sm:$0xf]
    %v1494 = vld [vmem:[%s1 + $0x210] sm:$0xf]
    %v1495 = vld [vmem:[%s1 + $0x214] sm:$0xf]
    %v1496 = vld [vmem:[%s1 + $0x218] sm:$0xf]
    %v1497 = vld [vmem:[%s1 + $0x21c] sm:$0xf]
    %v1498 = vld [vmem:[%s1 + $0x220] sm:$0xf]
    %v1499 = vld [vmem:[%s1 + $0x224] sm:$0xf]
    %v1500 = vld [vmem:[%s1 + $0x228] sm:$0xf]
    %v1501 = vld [vmem:[%s1 + $0x22c] sm:$0xf]
    %v1502 = vld [vmem:[%s1 + $0x230] sm:$0xf]
    %v1503 = vld [vmem:[%s1 + $0x234] sm:$0xf]
    %v1504 = vld [vmem:[%s1 + $0x238] sm:$0xf]
    %v1505 = vld [vmem:[%s1 + $0x23c] sm:$0xf]
    %v1506 = vld [vmem:[%s2] sm:$0x1]
    %v1508 = vlaneseq
    %v1509 = vshrl.u32 %v1508, 7
    %v1510 = vsub.s32 0, %v1509
    %v1511 = vrot.slane %v1506, %v1510
    %v1513 = vpack.c.b16 %v532, %v530
    %v1514 = vpack.c.b16 %v1272, %v1266
    %v1515 = vpack.c.b16 %v1273, %v1267
    %v1516 = vpack.c.b16 %v788, %v786
    %v1517 = vpack.c.b16 %v1274, %v1268
    %v1518 = vpack.c.b16 %v1275, %v1269
    %v1519 = vpack.c.b16 %v1044, %v1042
    %v1520 = vpack.c.b16 %v1276, %v1270
    %v1521 = vpack.c.b16 %v1277, %v1271
    %v1522 = vpack.c.b16 %v536, %v534
    %v1523 = vpack.c.b16 %v1284, %v1278
    %v1524 = vpack.c.b16 %v1285, %v1279
    %v1525 = vpack.c.b16 %v792, %v790
    %v1526 = vpack.c.b16 %v1286, %v1280
    %v1527 = vpack.c.b16 %v1287, %v1281
    %v1528 = vpack.c.b16 %v1048, %v1046
    %v1529 = vpack.c.b16 %v1288, %v1282
    %v1530 = vpack.c.b16 %v1289, %v1283
    %v1531 = vpack.c.b16 %v540, %v538
    %v1532 = vpack.c.b16 %v1296, %v1290
    %v1533 = vpack.c.b16 %v1297, %v1291
    %v1534 = vpack.c.b16 %v796, %v794
    %v1535 = vpack.c.b16 %v1298, %v1292
    %v1536 = vpack.c.b16 %v1299, %v1293
    %v1537 = vpack.c.b16 %v1052, %v1050
    %v1538 = vpack.c.b16 %v1300, %v1294
    %v1539 = vpack.c.b16 %v1301, %v1295
    %v1540 = vpack.c.b16 %v544, %v542
    %v1541 = vpack.c.b16 %v1308, %v1302
    %v1542 = vpack.c.b16 %v1309, %v1303
    %v1543 = vpack.c.b16 %v800, %v798
    %v1544 = vpack.c.b16 %v1310, %v1304
    %v1545 = vpack.c.b16 %v1311, %v1305
    %v1546 = vpack.c.b16 %v1056, %v1054
    %v1547 = vpack.c.b16 %v1312, %v1306
    %v1548 = vpack.c.b16 %v1313, %v1307
    %v1549 = vpack.c.b16 %v548, %v546
    %v1550 = vpack.c.b16 %v1320, %v1314
    %v1551 = vpack.c.b16 %v1321, %v1315
    %v1552 = vpack.c.b16 %v804, %v802
    %v1553 = vpack.c.b16 %v1322, %v1316
    %v1554 = vpack.c.b16 %v1323, %v1317
    %v1555 = vpack.c.b16 %v1060, %v1058
    %v1556 = vpack.c.b16 %v1324, %v1318
    %v1557 = vpack.c.b16 %v1325, %v1319
    %v1558 = vpack.c.b16 %v552, %v550
    %v1559 = vpack.c.b16 %v1332, %v1326
    %v1560 = vpack.c.b16 %v1333, %v1327
    %v1561 = vpack.c.b16 %v808, %v806
    %v1562 = vpack.c.b16 %v1334, %v1328
    %v1563 = vpack.c.b16 %v1335, %v1329
    %v1564 = vpack.c.b16 %v1064, %v1062
    %v1565 = vpack.c.b16 %v1336, %v1330
    %v1566 = vpack.c.b16 %v1337, %v1331
    %v1567 = vpack.c.b16 %v556, %v554
    %v1568 = vpack.c.b16 %v1344, %v1338
    %v1569 = vpack.c.b16 %v1345, %v1339
    %v1570 = vpack.c.b16 %v812, %v810
    %v1571 = vpack.c.b16 %v1346, %v1340
    %v1572 = vpack.c.b16 %v1347, %v1341
    %v1573 = vpack.c.b16 %v1068, %v1066
    %v1574 = vpack.c.b16 %v1348, %v1342
    %v1575 = vpack.c.b16 %v1349, %v1343
    %v1576 = vpack.c.b16 %v560, %v558
    %v1577 = vpack.c.b16 %v1356, %v1350
    %v1578 = vpack.c.b16 %v1357, %v1351
    %v1579 = vpack.c.b16 %v816, %v814
    %v1580 = vpack.c.b16 %v1358, %v1352
    %v1581 = vpack.c.b16 %v1359, %v1353
    %v1582 = vpack.c.b16 %v1072, %v1070
    %v1583 = vpack.c.b16 %v1360, %v1354
    %v1584 = vpack.c.b16 %v1361, %v1355
    %v1801 = vunpack.c.l.b16 %v1362
    %v1802 = vunpack.c.l.b16 %v1363
    %v1803 = vunpack.c.l.b16 %v1364
    %v1804 = vunpack.c.l.b16 %v1365
    %v1805 = vunpack.c.l.b16 %v1366
    %v1806 = vunpack.c.l.b16 %v1367
    %v1807 = vunpack.c.l.b16 %v1368
    %v1808 = vunpack.c.l.b16 %v1369
    %v1809 = vunpack.c.l.b16 %v1370
    %v1810 = vunpack.c.l.b16 %v1371
    %v1811 = vunpack.c.l.b16 %v1372
    %v1812 = vunpack.c.l.b16 %v1373
    %v1813 = vunpack.c.l.b16 %v1374
    %v1814 = vunpack.c.l.b16 %v1375
    %v1815 = vunpack.c.l.b16 %v1376
    %v1816 = vunpack.c.l.b16 %v1377
    %v1817 = vunpack.c.l.b16 %v1378
    %v1818 = vunpack.c.l.b16 %v1379
    %v1819 = vunpack.c.l.b16 %v1380
    %v1820 = vunpack.c.l.b16 %v1381
    %v1821 = vunpack.c.l.b16 %v1382
    %v1822 = vunpack.c.l.b16 %v1383
    %v1823 = vunpack.c.l.b16 %v1384
    %v1824 = vunpack.c.l.b16 %v1385
    %v1825 = vunpack.c.l.b16 %v1386
    %v1826 = vunpack.c.l.b16 %v1387
    %v1827 = vunpack.c.l.b16 %v1388
    %v1828 = vunpack.c.l.b16 %v1389
    %v1829 = vunpack.c.l.b16 %v1390
    %v1830 = vunpack.c.l.b16 %v1391
    %v1831 = vunpack.c.l.b16 %v1392
    %v1832 = vunpack.c.l.b16 %v1393
    %v1833 = vunpack.c.l.b16 %v1394
    %v1834 = vunpack.c.l.b16 %v1395
    %v1835 = vunpack.c.l.b16 %v1396
    %v1836 = vunpack.c.l.b16 %v1397
    %v1837 = vunpack.c.l.b16 %v1398
    %v1838 = vunpack.c.l.b16 %v1399
    %v1839 = vunpack.c.l.b16 %v1400
    %v1840 = vunpack.c.l.b16 %v1401
    %v1841 = vunpack.c.l.b16 %v1402
    %v1842 = vunpack.c.l.b16 %v1403
    %v1843 = vunpack.c.l.b16 %v1404
    %v1844 = vunpack.c.l.b16 %v1405
    %v1845 = vunpack.c.l.b16 %v1406
    %v1846 = vunpack.c.l.b16 %v1407
    %v1847 = vunpack.c.l.b16 %v1408
    %v1848 = vunpack.c.l.b16 %v1409
    %v1849 = vunpack.c.l.b16 %v1410
    %v1850 = vunpack.c.l.b16 %v1411
    %v1851 = vunpack.c.l.b16 %v1412
    %v1852 = vunpack.c.l.b16 %v1413
    %v1853 = vunpack.c.l.b16 %v1414
    %v1854 = vunpack.c.l.b16 %v1415
    %v1855 = vunpack.c.l.b16 %v1416
    %v1856 = vunpack.c.l.b16 %v1417
    %v1857 = vunpack.c.l.b16 %v1418
    %v1858 = vunpack.c.l.b16 %v1419
    %v1859 = vunpack.c.l.b16 %v1420
    %v1860 = vunpack.c.l.b16 %v1421
    %v1861 = vunpack.c.l.b16 %v1422
    %v1862 = vunpack.c.l.b16 %v1423
    %v1863 = vunpack.c.l.b16 %v1424
    %v1864 = vunpack.c.l.b16 %v1425
    %v1865 = vunpack.c.l.b16 %v1426
    %v1866 = vunpack.c.l.b16 %v1427
    %v1867 = vunpack.c.l.b16 %v1428
    %v1868 = vunpack.c.l.b16 %v1429
    %v1869 = vunpack.c.l.b16 %v1430
    %v1870 = vunpack.c.l.b16 %v1431
    %v1871 = vunpack.c.l.b16 %v1432
    %v1872 = vunpack.c.l.b16 %v1433
    %v1873 = vunpack.c.l.b16 %v1434
    %v1874 = vunpack.c.l.b16 %v1435
    %v1875 = vunpack.c.l.b16 %v1436
    %v1876 = vunpack.c.l.b16 %v1437
    %v1877 = vunpack.c.l.b16 %v1438
    %v1878 = vunpack.c.l.b16 %v1439
    %v1879 = vunpack.c.l.b16 %v1440
    %v1880 = vunpack.c.l.b16 %v1441
    %v1881 = vunpack.c.l.b16 %v1442
    %v1882 = vunpack.c.l.b16 %v1443
    %v1883 = vunpack.c.l.b16 %v1444
    %v1884 = vunpack.c.l.b16 %v1445
    %v1885 = vunpack.c.l.b16 %v1446
    %v1886 = vunpack.c.l.b16 %v1447
    %v1887 = vunpack.c.l.b16 %v1448
    %v1888 = vunpack.c.l.b16 %v1449
    %v1889 = vunpack.c.l.b16 %v1450
    %v1890 = vunpack.c.l.b16 %v1451
    %v1891 = vunpack.c.l.b16 %v1452
    %v1892 = vunpack.c.l.b16 %v1453
    %v1893 = vunpack.c.l.b16 %v1454
    %v1894 = vunpack.c.l.b16 %v1455
    %v1895 = vunpack.c.l.b16 %v1456
    %v1896 = vunpack.c.l.b16 %v1457
    %v1897 = vunpack.c.l.b16 %v1458
    %v1898 = vunpack.c.l.b16 %v1459
    %v1899 = vunpack.c.l.b16 %v1460
    %v1900 = vunpack.c.l.b16 %v1461
    %v1901 = vunpack.c.l.b16 %v1462
    %v1902 = vunpack.c.l.b16 %v1463
    %v1903 = vunpack.c.l.b16 %v1464
    %v1904 = vunpack.c.l.b16 %v1465
    %v1905 = vunpack.c.l.b16 %v1466
    %v1906 = vunpack.c.l.b16 %v1467
    %v1907 = vunpack.c.l.b16 %v1468
    %v1908 = vunpack.c.l.b16 %v1469
    %v1909 = vunpack.c.l.b16 %v1470
    %v1910 = vunpack.c.l.b16 %v1471
    %v1911 = vunpack.c.l.b16 %v1472
    %v1912 = vunpack.c.l.b16 %v1473
    %v1913 = vunpack.c.l.b16 %v1474
    %v1914 = vunpack.c.l.b16 %v1475
    %v1915 = vunpack.c.l.b16 %v1476
    %v1916 = vunpack.c.l.b16 %v1477
    %v1917 = vunpack.c.l.b16 %v1478
    %v1918 = vunpack.c.l.b16 %v1479
    %v1919 = vunpack.c.l.b16 %v1480
    %v1920 = vunpack.c.l.b16 %v1481
    %v1921 = vunpack.c.l.b16 %v1482
    %v1922 = vunpack.c.l.b16 %v1483
    %v1923 = vunpack.c.l.b16 %v1484
    %v1924 = vunpack.c.l.b16 %v1485
    %v1925 = vunpack.c.l.b16 %v1486
    %v1926 = vunpack.c.l.b16 %v1487
    %v1927 = vunpack.c.l.b16 %v1488
    %v1928 = vunpack.c.l.b16 %v1489
    %v1929 = vunpack.c.l.b16 %v1490
    %v1930 = vunpack.c.l.b16 %v1491
    %v1931 = vunpack.c.l.b16 %v1492
    %v1932 = vunpack.c.l.b16 %v1493
    %v1933 = vunpack.c.l.b16 %v1494
    %v1934 = vunpack.c.l.b16 %v1495
    %v1935 = vunpack.c.l.b16 %v1496
    %v1936 = vunpack.c.l.b16 %v1497
    %v1937 = vunpack.c.l.b16 %v1498
    %v1938 = vunpack.c.l.b16 %v1499
    %v1939 = vunpack.c.l.b16 %v1500
    %v1940 = vunpack.c.l.b16 %v1501
    %v1941 = vunpack.c.l.b16 %v1502
    %v1942 = vunpack.c.l.b16 %v1503
    %v1943 = vunpack.c.l.b16 %v1504
    %v1944 = vunpack.c.l.b16 %v1505
    %v1945 = vpack.c.b16 %v1802, %v1801
    %v1946 = vpack.c.b16 %v1804, %v1803
    %v1947 = vpack.c.b16 %v1806, %v1805
    %v1948 = vpack.c.b16 %v1808, %v1807
    %v1949 = vpack.c.b16 %v1810, %v1809
    %v1950 = vpack.c.b16 %v1812, %v1811
    %v1951 = vpack.c.b16 %v1814, %v1813
    %v1952 = vpack.c.b16 %v1816, %v1815
    %v1953 = vpack.c.b16 %v1818, %v1817
    %v1954 = vpack.c.b16 %v1820, %v1819
    %v1955 = vpack.c.b16 %v1822, %v1821
    %v1956 = vpack.c.b16 %v1824, %v1823
    %v1957 = vpack.c.b16 %v1826, %v1825
    %v1958 = vpack.c.b16 %v1828, %v1827
    %v1959 = vpack.c.b16 %v1830, %v1829
    %v1960 = vpack.c.b16 %v1832, %v1831
    %v1961 = vpack.c.b16 %v1834, %v1833
    %v1962 = vpack.c.b16 %v1836, %v1835
    %v1963 = vpack.c.b16 %v1838, %v1837
    %v1964 = vpack.c.b16 %v1840, %v1839
    %v1965 = vpack.c.b16 %v1842, %v1841
    %v1966 = vpack.c.b16 %v1844, %v1843
    %v1967 = vpack.c.b16 %v1846, %v1845
    %v1968 = vpack.c.b16 %v1848, %v1847
    %v1969 = vpack.c.b16 %v1850, %v1849
    %v1970 = vpack.c.b16 %v1852, %v1851
    %v1971 = vpack.c.b16 %v1854, %v1853
    %v1972 = vpack.c.b16 %v1856, %v1855
    %v1973 = vpack.c.b16 %v1858, %v1857
    %v1974 = vpack.c.b16 %v1860, %v1859
    %v1975 = vpack.c.b16 %v1862, %v1861
    %v1976 = vpack.c.b16 %v1864, %v1863
    %v1977 = vpack.c.b16 %v1866, %v1865
    %v1978 = vpack.c.b16 %v1868, %v1867
    %v1979 = vpack.c.b16 %v1870, %v1869
    %v1980 = vpack.c.b16 %v1872, %v1871
    %v1981 = vpack.c.b16 %v1874, %v1873
    %v1982 = vpack.c.b16 %v1876, %v1875
    %v1983 = vpack.c.b16 %v1878, %v1877
    %v1984 = vpack.c.b16 %v1880, %v1879
    %v1985 = vpack.c.b16 %v1882, %v1881
    %v1986 = vpack.c.b16 %v1884, %v1883
    %v1987 = vpack.c.b16 %v1886, %v1885
    %v1988 = vpack.c.b16 %v1888, %v1887
    %v1989 = vpack.c.b16 %v1890, %v1889
    %v1990 = vpack.c.b16 %v1892, %v1891
    %v1991 = vpack.c.b16 %v1894, %v1893
    %v1992 = vpack.c.b16 %v1896, %v1895
    %v1993 = vpack.c.b16 %v1898, %v1897
    %v1994 = vpack.c.b16 %v1900, %v1899
    %v1995 = vpack.c.b16 %v1902, %v1901
    %v1996 = vpack.c.b16 %v1904, %v1903
    %v1997 = vpack.c.b16 %v1906, %v1905
    %v1998 = vpack.c.b16 %v1908, %v1907
    %v1999 = vpack.c.b16 %v1910, %v1909
    %v2000 = vpack.c.b16 %v1912, %v1911
    %v2001 = vpack.c.b16 %v1914, %v1913
    %v2002 = vpack.c.b16 %v1916, %v1915
    %v2003 = vpack.c.b16 %v1918, %v1917
    %v2004 = vpack.c.b16 %v1920, %v1919
    %v2005 = vpack.c.b16 %v1922, %v1921
    %v2006 = vpack.c.b16 %v1924, %v1923
    %v2007 = vpack.c.b16 %v1926, %v1925
    %v2008 = vpack.c.b16 %v1928, %v1927
    %v2009 = vpack.c.b16 %v1930, %v1929
    %v2010 = vpack.c.b16 %v1932, %v1931
    %v2011 = vpack.c.b16 %v1934, %v1933
    %v2012 = vpack.c.b16 %v1936, %v1935
    %v2013 = vpack.c.b16 %v1938, %v1937
    %v2014 = vpack.c.b16 %v1940, %v1939
    %v2015 = vpack.c.b16 %v1942, %v1941
    %v2016 = vpack.c.b16 %v1944, %v1943
    %2089 = vmatprep.subr.bf16.mxu0 0
    %2090 = vmatpush1.bf16.msra.mxu0 %v1952
    %2091 = vmatprep.subr.bf16.mxu0 0
    %2092 = vmatpush1.bf16.msra.mxu0 %v1951
    %2093 = vmatprep.subr.bf16.mxu0 0
    %2094 = vmatpush1.bf16.msra.mxu0 %v1950
    %2095 = vmatprep.subr.bf16.mxu0 0
    %2096 = vmatpush1.bf16.msra.mxu0 %v1949
    %2097 = vmatprep.subr.bf16.mxu0 0
    %2098 = vmatpush1.bf16.msra.mxu0 %v1948
    %2099 = vmatprep.subr.bf16.mxu0 0
    %2100 = vmatpush1.bf16.msra.mxu0 %v1947
    %2101 = vmatprep.subr.bf16.mxu0 0
    %2102 = vmatpush1.bf16.msra.mxu0 %v1946
    %2103 = vmatprep.subr.bf16.mxu0 0
    %2104 = vmatpush1.bf16.msra.mxu0 %v1945
    %2105 = vmatprep.subr.bf16.mxu0 0
    %2106 = vmatpush2.bf16.msra.mxu0 %v1960
    %2107 = vmatprep.subr.bf16.mxu0 0
    %2108 = vmatpush2.bf16.msra.mxu0 %v1959
    %2109 = vmatprep.subr.bf16.mxu0 0
    %2110 = vmatpush2.bf16.msra.mxu0 %v1958
    %2111 = vmatprep.subr.bf16.mxu0 0
    %2112 = vmatpush2.bf16.msra.mxu0 %v1957
    %2113 = vmatprep.subr.bf16.mxu0 0
    %2114 = vmatpush2.bf16.msra.mxu0 %v1956
    %2115 = vmatprep.subr.bf16.mxu0 0
    %2116 = vmatpush2.bf16.msra.mxu0 %v1955
    %2117 = vmatprep.subr.bf16.mxu0 0
    %2118 = vmatpush2.bf16.msra.mxu0 %v1954
    %2119 = vmatprep.subr.bf16.mxu0 0
    %2120 = vmatpush2.bf16.msra.mxu0 %v1953
    %2121 = vmatprep.mubr.bf16.mxu0 %v1514
    %2122 = vmatmul.mubr.bf16.gmra.mxu0 %v1513
    %v2123 = vpop.f32.mrf.mxu0
    %v2124 = vadd.f32 %v1511, %v2123
    %v2125 = vpop.f32.mrf.mxu0
    %v2126 = vpop.f32.mrf.mxu0
    %v2127 = vadd.f32 %v1511, %v2126
    %v2128 = vpop.f32.mrf.mxu0
    %2129 = vmatprep.mubr.bf16.mxu0 %v1523
    %2130 = vmatmul.mubr.bf16.gmra.mxu0 %v1522
    %v2131 = vpop.f32.mrf.mxu0
    %v2132 = vadd.f32 %v1511, %v2131
    %v2133 = vpop.f32.mrf.mxu0
    %v2134 = vpop.f32.mrf.mxu0
    %v2135 = vadd.f32 %v1511, %v2134
    %v2136 = vpop.f32.mrf.mxu0
    %2137 = vmatprep.mubr.bf16.mxu0 %v1532
    %2138 = vmatmul.mubr.bf16.gmra.mxu0 %v1531
    %v2139 = vpop.f32.mrf.mxu0
    %v2140 = vadd.f32 %v1511, %v2139
    %v2141 = vpop.f32.mrf.mxu0
    %v2142 = vpop.f32.mrf.mxu0
    %v2143 = vadd.f32 %v1511, %v2142
    %v2144 = vpop.f32.mrf.mxu0
    %2145 = vmatprep.mubr.bf16.mxu0 %v1541
    %2146 = vmatmul.mubr.bf16.gmra.mxu0 %v1540
    %v2147 = vpop.f32.mrf.mxu0
    %v2148 = vadd.f32 %v1511, %v2147
    %v2149 = vpop.f32.mrf.mxu0
    %v2150 = vpop.f32.mrf.mxu0
    %v2151 = vadd.f32 %v1511, %v2150
    %v2152 = vpop.f32.mrf.mxu0
    %2153 = vmatprep.mubr.bf16.mxu0 %v1550
    %2154 = vmatmul.mubr.bf16.gmra.mxu0 %v1549
    %v2155 = vpop.f32.mrf.mxu0
    %v2156 = vadd.f32 %v1511, %v2155
    %v2157 = vpop.f32.mrf.mxu0
    %v2158 = vpop.f32.mrf.mxu0
    %v2159 = vadd.f32 %v1511, %v2158
    %v2160 = vpop.f32.mrf.mxu0
    %2161 = vmatprep.mubr.bf16.mxu0 %v1559
    %2162 = vmatmul.mubr.bf16.gmra.mxu0 %v1558
    %v2163 = vpop.f32.mrf.mxu0
    %v2164 = vadd.f32 %v1511, %v2163
    %v2165 = vpop.f32.mrf.mxu0
    %v2166 = vpop.f32.mrf.mxu0
    %v2167 = vadd.f32 %v1511, %v2166
    %v2168 = vpop.f32.mrf.mxu0
    %2169 = vmatprep.mubr.bf16.mxu0 %v1568
    %2170 = vmatmul.mubr.bf16.gmra.mxu0 %v1567
    %v2171 = vpop.f32.mrf.mxu0
    %v2172 = vadd.f32 %v1511, %v2171
    %v2173 = vpop.f32.mrf.mxu0
    %v2174 = vpop.f32.mrf.mxu0
    %v2175 = vadd.f32 %v1511, %v2174
    %v2176 = vpop.f32.mrf.mxu0
    %2177 = vmatprep.mubr.bf16.mxu0 %v1577
    %2178 = vmatmul.mubr.bf16.gmra.mxu0 %v1576
    %v2179 = vpop.f32.mrf.mxu0
    %v2180 = vadd.f32 %v1511, %v2179
    %v2181 = vpop.f32.mrf.mxu0
    %v2182 = vpop.f32.mrf.mxu0
    %v2183 = vadd.f32 %v1511, %v2182
    %v2184 = vpop.f32.mrf.mxu0
    %2185 = vdwg.mxu0
    %2186 = vmatprep.subr.bf16.mxu0 0
    %2187 = vmatpush1.bf16.msra.mxu0 %v1968
    %2188 = vmatprep.subr.bf16.mxu0 0
    %2189 = vmatpush1.bf16.msra.mxu0 %v1967
    %2190 = vmatprep.subr.bf16.mxu0 0
    %2191 = vmatpush1.bf16.msra.mxu0 %v1966
    %2192 = vmatprep.subr.bf16.mxu0 0
    %2193 = vmatpush1.bf16.msra.mxu0 %v1965
    %2194 = vmatprep.subr.bf16.mxu0 0
    %2195 = vmatpush1.bf16.msra.mxu0 %v1964
    %2196 = vmatprep.subr.bf16.mxu0 0
    %2197 = vmatpush1.bf16.msra.mxu0 %v1963
    %2198 = vmatprep.subr.bf16.mxu0 0
    %2199 = vmatpush1.bf16.msra.mxu0 %v1962
    %2200 = vmatprep.subr.bf16.mxu0 0
    %2201 = vmatpush1.bf16.msra.mxu0 %v1961
    %2202 = vmatprep.subr.bf16.mxu0 0
    %2203 = vmatpush2.bf16.msra.mxu0 %v1976
    %2204 = vmatprep.subr.bf16.mxu0 0
    %2205 = vmatpush2.bf16.msra.mxu0 %v1975
    %2206 = vmatprep.subr.bf16.mxu0 0
    %2207 = vmatpush2.bf16.msra.mxu0 %v1974
    %2208 = vmatprep.subr.bf16.mxu0 0
    %2209 = vmatpush2.bf16.msra.mxu0 %v1973
    %2210 = vmatprep.subr.bf16.mxu0 0
    %2211 = vmatpush2.bf16.msra.mxu0 %v1972
    %2212 = vmatprep.subr.bf16.mxu0 0
    %2213 = vmatpush2.bf16.msra.mxu0 %v1971
    %2214 = vmatprep.subr.bf16.mxu0 0
    %2215 = vmatpush2.bf16.msra.mxu0 %v1970
    %2216 = vmatprep.subr.bf16.mxu0 0
    %2217 = vmatpush2.bf16.msra.mxu0 %v1969
    %2218 = vmatprep.mubr.bf16.mxu0 %v1516
    %2219 = vmatmul.mubr.bf16.gmra.mxu0 %v1515
    %v2220 = vpop.f32.mrf.mxu0
    %v2221 = vadd.f32 %v2124, %v2220
    %v2222 = vpop.f32.mrf.mxu0
    %v2223 = vpop.f32.mrf.mxu0
    %v2224 = vadd.f32 %v2127, %v2223
    %v2225 = vpop.f32.mrf.mxu0
    %2226 = vmatprep.mubr.bf16.mxu0 %v1525
    %2227 = vmatmul.mubr.bf16.gmra.mxu0 %v1524
    %v2228 = vpop.f32.mrf.mxu0
    %v2229 = vadd.f32 %v2132, %v2228
    %v2230 = vpop.f32.mrf.mxu0
    %v2231 = vpop.f32.mrf.mxu0
    %v2232 = vadd.f32 %v2135, %v2231
    %v2233 = vpop.f32.mrf.mxu0
    %2234 = vmatprep.mubr.bf16.mxu0 %v1534
    %2235 = vmatmul.mubr.bf16.gmra.mxu0 %v1533
    %v2236 = vpop.f32.mrf.mxu0
    %v2237 = vadd.f32 %v2140, %v2236
    %v2238 = vpop.f32.mrf.mxu0
    %v2239 = vpop.f32.mrf.mxu0
    %v2240 = vadd.f32 %v2143, %v2239
    %v2241 = vpop.f32.mrf.mxu0
    %2242 = vmatprep.mubr.bf16.mxu0 %v1543
    %2243 = vmatmul.mubr.bf16.gmra.mxu0 %v1542
    %v2244 = vpop.f32.mrf.mxu0
    %v2245 = vadd.f32 %v2148, %v2244
    %v2246 = vpop.f32.mrf.mxu0
    %v2247 = vpop.f32.mrf.mxu0
    %v2248 = vadd.f32 %v2151, %v2247
    %v2249 = vpop.f32.mrf.mxu0
    %2250 = vmatprep.mubr.bf16.mxu0 %v1552
    %2251 = vmatmul.mubr.bf16.gmra.mxu0 %v1551
    %v2252 = vpop.f32.mrf.mxu0
    %v2253 = vadd.f32 %v2156, %v2252
    %v2254 = vpop.f32.mrf.mxu0
    %v2255 = vpop.f32.mrf.mxu0
    %v2256 = vadd.f32 %v2159, %v2255
    %v2257 = vpop.f32.mrf.mxu0
    %2258 = vmatprep.mubr.bf16.mxu0 %v1561
    %2259 = vmatmul.mubr.bf16.gmra.mxu0 %v1560
    %v2260 = vpop.f32.mrf.mxu0
    %v2261 = vadd.f32 %v2164, %v2260
    %v2262 = vpop.f32.mrf.mxu0
    %v2263 = vpop.f32.mrf.mxu0
    %v2264 = vadd.f32 %v2167, %v2263
    %v2265 = vpop.f32.mrf.mxu0
    %2266 = vmatprep.mubr.bf16.mxu0 %v1570
    %2267 = vmatmul.mubr.bf16.gmra.mxu0 %v1569
    %v2268 = vpop.f32.mrf.mxu0
    %v2269 = vadd.f32 %v2172, %v2268
    %v2270 = vpop.f32.mrf.mxu0
    %v2271 = vpop.f32.mrf.mxu0
    %v2272 = vadd.f32 %v2175, %v2271
    %v2273 = vpop.f32.mrf.mxu0
    %2274 = vmatprep.mubr.bf16.mxu0 %v1579
    %2275 = vmatmul.mubr.bf16.gmra.mxu0 %v1578
    %v2276 = vpop.f32.mrf.mxu0
    %v2277 = vadd.f32 %v2180, %v2276
    %v2278 = vpop.f32.mrf.mxu0
    %v2279 = vpop.f32.mrf.mxu0
    %v2280 = vadd.f32 %v2183, %v2279
    %v2281 = vpop.f32.mrf.mxu0
    %2282 = vdwg.mxu0
    %2283 = vmatprep.subr.bf16.mxu0 0
    %2284 = vmatpush1.bf16.msra.mxu0 %v1984
    %2285 = vmatprep.subr.bf16.mxu0 0
    %2286 = vmatpush1.bf16.msra.mxu0 %v1983
    %2287 = vmatprep.subr.bf16.mxu0 0
    %2288 = vmatpush1.bf16.msra.mxu0 %v1982
    %2289 = vmatprep.subr.bf16.mxu0 0
    %2290 = vmatpush1.bf16.msra.mxu0 %v1981
    %2291 = vmatprep.subr.bf16.mxu0 0
    %2292 = vmatpush1.bf16.msra.mxu0 %v1980
    %2293 = vmatprep.subr.bf16.mxu0 0
    %2294 = vmatpush1.bf16.msra.mxu0 %v1979
    %2295 = vmatprep.subr.bf16.mxu0 0
    %2296 = vmatpush1.bf16.msra.mxu0 %v1978
    %2297 = vmatprep.subr.bf16.mxu0 0
    %2298 = vmatpush1.bf16.msra.mxu0 %v1977
    %2299 = vmatprep.subr.bf16.mxu0 0
    %2300 = vmatpush2.bf16.msra.mxu0 %v1992
    %2301 = vmatprep.subr.bf16.mxu0 0
    %2302 = vmatpush2.bf16.msra.mxu0 %v1991
    %2303 = vmatprep.subr.bf16.mxu0 0
    %2304 = vmatpush2.bf16.msra.mxu0 %v1990
    %2305 = vmatprep.subr.bf16.mxu0 0
    %2306 = vmatpush2.bf16.msra.mxu0 %v1989
    %2307 = vmatprep.subr.bf16.mxu0 0
    %2308 = vmatpush2.bf16.msra.mxu0 %v1988
    %2309 = vmatprep.subr.bf16.mxu0 0
    %2310 = vmatpush2.bf16.msra.mxu0 %v1987
    %2311 = vmatprep.subr.bf16.mxu0 0
    %2312 = vmatpush2.bf16.msra.mxu0 %v1986
    %2313 = vmatprep.subr.bf16.mxu0 0
    %2314 = vmatpush2.bf16.msra.mxu0 %v1985
    %2315 = vmatprep.mubr.bf16.mxu0 %v1518
    %2316 = vmatmul.mubr.bf16.gmra.mxu0 %v1517
    %v2317 = vpop.f32.mrf.mxu0
    %v2318 = vadd.f32 %v2221, %v2317
    %v2319 = vpop.f32.mrf.mxu0
    %v2320 = vpop.f32.mrf.mxu0
    %v2321 = vadd.f32 %v2224, %v2320
    %v2322 = vpop.f32.mrf.mxu0
    %2323 = vmatprep.mubr.bf16.mxu0 %v1527
    %2324 = vmatmul.mubr.bf16.gmra.mxu0 %v1526
    %v2325 = vpop.f32.mrf.mxu0
    %v2326 = vadd.f32 %v2229, %v2325
    %v2327 = vpop.f32.mrf.mxu0
    %v2328 = vpop.f32.mrf.mxu0
    %v2329 = vadd.f32 %v2232, %v2328
    %v2330 = vpop.f32.mrf.mxu0
    %2331 = vmatprep.mubr.bf16.mxu0 %v1536
    %2332 = vmatmul.mubr.bf16.gmra.mxu0 %v1535
    %v2333 = vpop.f32.mrf.mxu0
    %v2334 = vadd.f32 %v2237, %v2333
    %v2335 = vpop.f32.mrf.mxu0
    %v2336 = vpop.f32.mrf.mxu0
    %v2337 = vadd.f32 %v2240, %v2336
    %v2338 = vpop.f32.mrf.mxu0
    %2339 = vmatprep.mubr.bf16.mxu0 %v1545
    %2340 = vmatmul.mubr.bf16.gmra.mxu0 %v1544
    %v2341 = vpop.f32.mrf.mxu0
    %v2342 = vadd.f32 %v2245, %v2341
    %v2343 = vpop.f32.mrf.mxu0
    %v2344 = vpop.f32.mrf.mxu0
    %v2345 = vadd.f32 %v2248, %v2344
    %v2346 = vpop.f32.mrf.mxu0
    %2347 = vmatprep.mubr.bf16.mxu0 %v1554
    %2348 = vmatmul.mubr.bf16.gmra.mxu0 %v1553
    %v2349 = vpop.f32.mrf.mxu0
    %v2350 = vadd.f32 %v2253, %v2349
    %v2351 = vpop.f32.mrf.mxu0
    %v2352 = vpop.f32.mrf.mxu0
    %v2353 = vadd.f32 %v2256, %v2352
    %v2354 = vpop.f32.mrf.mxu0
    %2355 = vmatprep.mubr.bf16.mxu0 %v1563
    %2356 = vmatmul.mubr.bf16.gmra.mxu0 %v1562
    %v2357 = vpop.f32.mrf.mxu0
    %v2358 = vadd.f32 %v2261, %v2357
    %v2359 = vpop.f32.mrf.mxu0
    %v2360 = vpop.f32.mrf.mxu0
    %v2361 = vadd.f32 %v2264, %v2360
    %v2362 = vpop.f32.mrf.mxu0
    %2363 = vmatprep.mubr.bf16.mxu0 %v1572
    %2364 = vmatmul.mubr.bf16.gmra.mxu0 %v1571
    %v2365 = vpop.f32.mrf.mxu0
    %v2366 = vadd.f32 %v2269, %v2365
    %v2367 = vpop.f32.mrf.mxu0
    %v2368 = vpop.f32.mrf.mxu0
    %v2369 = vadd.f32 %v2272, %v2368
    %v2370 = vpop.f32.mrf.mxu0
    %2371 = vmatprep.mubr.bf16.mxu0 %v1581
    %2372 = vmatmul.mubr.bf16.gmra.mxu0 %v1580
    %v2373 = vpop.f32.mrf.mxu0
    %v2374 = vadd.f32 %v2277, %v2373
    %v2375 = vpop.f32.mrf.mxu0
    %v2376 = vpop.f32.mrf.mxu0
    %v2377 = vadd.f32 %v2280, %v2376
    %v2378 = vpop.f32.mrf.mxu0
    %2379 = vdwg.mxu0
    %2380 = vmatprep.subr.bf16.mxu0 0
    %2381 = vmatpush1.bf16.msra.mxu0 %v2000
    %2382 = vmatprep.subr.bf16.mxu0 0
    %2383 = vmatpush1.bf16.msra.mxu0 %v1999
    %2384 = vmatprep.subr.bf16.mxu0 0
    %2385 = vmatpush1.bf16.msra.mxu0 %v1998
    %2386 = vmatprep.subr.bf16.mxu0 0
    %2387 = vmatpush1.bf16.msra.mxu0 %v1997
    %2388 = vmatprep.subr.bf16.mxu0 0
    %2389 = vmatpush1.bf16.msra.mxu0 %v1996
    %2390 = vmatprep.subr.bf16.mxu0 0
    %2391 = vmatpush1.bf16.msra.mxu0 %v1995
    %2392 = vmatprep.subr.bf16.mxu0 0
    %2393 = vmatpush1.bf16.msra.mxu0 %v1994
    %2394 = vmatprep.subr.bf16.mxu0 0
    %2395 = vmatpush1.bf16.msra.mxu0 %v1993
    %2396 = vmatprep.subr.bf16.mxu0 0
    %2397 = vmatpush2.bf16.msra.mxu0 %v2008
    %2398 = vmatprep.subr.bf16.mxu0 0
    %2399 = vmatpush2.bf16.msra.mxu0 %v2007
    %2400 = vmatprep.subr.bf16.mxu0 0
    %2401 = vmatpush2.bf16.msra.mxu0 %v2006
    %2402 = vmatprep.subr.bf16.mxu0 0
    %2403 = vmatpush2.bf16.msra.mxu0 %v2005
    %2404 = vmatprep.subr.bf16.mxu0 0
    %2405 = vmatpush2.bf16.msra.mxu0 %v2004
    %2406 = vmatprep.subr.bf16.mxu0 0
    %2407 = vmatpush2.bf16.msra.mxu0 %v2003
    %2408 = vmatprep.subr.bf16.mxu0 0
    %2409 = vmatpush2.bf16.msra.mxu0 %v2002
    %2410 = vmatprep.subr.bf16.mxu0 0
    %2411 = vmatpush2.bf16.msra.mxu0 %v2001
    %2412 = vmatprep.mubr.bf16.mxu0 %v1520
    %2413 = vmatmul.mubr.bf16.gmra.mxu0 %v1519
    %v2414 = vpop.f32.mrf.mxu0
    %v2415 = vadd.f32 %v2318, %v2414
    %v2416 = vpop.f32.mrf.mxu0
    %v2417 = vpop.f32.mrf.mxu0
    %v2418 = vadd.f32 %v2321, %v2417
    %v2419 = vpop.f32.mrf.mxu0
    %2420 = vmatprep.mubr.bf16.mxu0 %v1529
    %2421 = vmatmul.mubr.bf16.gmra.mxu0 %v1528
    %v2422 = vpop.f32.mrf.mxu0
    %v2423 = vadd.f32 %v2326, %v2422
    %v2424 = vpop.f32.mrf.mxu0
    %v2425 = vpop.f32.mrf.mxu0
    %v2426 = vadd.f32 %v2329, %v2425
    %v2427 = vpop.f32.mrf.mxu0
    %2428 = vmatprep.mubr.bf16.mxu0 %v1538
    %2429 = vmatmul.mubr.bf16.gmra.mxu0 %v1537
    %v2430 = vpop.f32.mrf.mxu0
    %v2431 = vadd.f32 %v2334, %v2430
    %v2432 = vpop.f32.mrf.mxu0
    %v2433 = vpop.f32.mrf.mxu0
    %v2434 = vadd.f32 %v2337, %v2433
    %v2435 = vpop.f32.mrf.mxu0
    %2436 = vmatprep.mubr.bf16.mxu0 %v1547
    %2437 = vmatmul.mubr.bf16.gmra.mxu0 %v1546
    %v2438 = vpop.f32.mrf.mxu0
    %v2439 = vadd.f32 %v2342, %v2438
    %v2440 = vpop.f32.mrf.mxu0
    %v2441 = vpop.f32.mrf.mxu0
    %v2442 = vadd.f32 %v2345, %v2441
    %v2443 = vpop.f32.mrf.mxu0
    %2444 = vmatprep.mubr.bf16.mxu0 %v1556
    %2445 = vmatmul.mubr.bf16.gmra.mxu0 %v1555
    %v2446 = vpop.f32.mrf.mxu0
    %v2447 = vadd.f32 %v2350, %v2446
    %v2448 = vpop.f32.mrf.mxu0
    %v2449 = vpop.f32.mrf.mxu0
    %v2450 = vadd.f32 %v2353, %v2449
    %v2451 = vpop.f32.mrf.mxu0
    %2452 = vmatprep.mubr.bf16.mxu0 %v1565
    %2453 = vmatmul.mubr.bf16.gmra.mxu0 %v1564
    %v2454 = vpop.f32.mrf.mxu0
    %v2455 = vadd.f32 %v2358, %v2454
    %v2456 = vpop.f32.mrf.mxu0
    %v2457 = vpop.f32.mrf.mxu0
    %v2458 = vadd.f32 %v2361, %v2457
    %v2459 = vpop.f32.mrf.mxu0
    %2460 = vmatprep.mubr.bf16.mxu0 %v1574
    %2461 = vmatmul.mubr.bf16.gmra.mxu0 %v1573
    %v2462 = vpop.f32.mrf.mxu0
    %v2463 = vadd.f32 %v2366, %v2462
    %v2464 = vpop.f32.mrf.mxu0
    %v2465 = vpop.f32.mrf.mxu0
    %v2466 = vadd.f32 %v2369, %v2465
    %v2467 = vpop.f32.mrf.mxu0
    %2468 = vmatprep.mubr.bf16.mxu0 %v1583
    %2469 = vmatmul.mubr.bf16.gmra.mxu0 %v1582
    %v2470 = vpop.f32.mrf.mxu0
    %v2471 = vadd.f32 %v2374, %v2470
    %v2472 = vpop.f32.mrf.mxu0
    %v2473 = vpop.f32.mrf.mxu0
    %v2474 = vadd.f32 %v2377, %v2473
    %v2475 = vpop.f32.mrf.mxu0
    %2476 = vdwg.mxu0
    %2477 = vmatprep.subr.bf16.mxu0 0
    %2478 = vmatpush1.bf16.msra.mxu0 %v2016
    %2479 = vmatprep.subr.bf16.mxu0 0
    %2480 = vmatpush1.bf16.msra.mxu0 %v2015
    %2481 = vmatprep.subr.bf16.mxu0 0
    %2482 = vmatpush1.bf16.msra.mxu0 %v2014
    %2483 = vmatprep.subr.bf16.mxu0 0
    %2484 = vmatpush1.bf16.msra.mxu0 %v2013
    %2485 = vmatprep.subr.bf16.mxu0 0
    %2486 = vmatpush1.bf16.msra.mxu0 %v2012
    %2487 = vmatprep.subr.bf16.mxu0 0
    %2488 = vmatpush1.bf16.msra.mxu0 %v2011
    %2489 = vmatprep.subr.bf16.mxu0 0
    %2490 = vmatpush1.bf16.msra.mxu0 %v2010
    %2491 = vmatprep.subr.bf16.mxu0 0
    %2492 = vmatpush1.bf16.msra.mxu0 %v2009
    %2493 = vmatprep.subr.bf16.mxu0 0
    %2494 = vmatpush2.bf16.msra.mxu0 0
    %2495 = vmatprep.subr.bf16.mxu0 0
    %2496 = vmatpush2.bf16.msra.mxu0 0
    %2497 = vmatprep.subr.bf16.mxu0 0
    %2498 = vmatpush2.bf16.msra.mxu0 0
    %2499 = vmatprep.subr.bf16.mxu0 0
    %2500 = vmatpush2.bf16.msra.mxu0 0
    %2501 = vmatprep.subr.bf16.mxu0 0
    %2502 = vmatpush2.bf16.msra.mxu0 0
    %2503 = vmatprep.subr.bf16.mxu0 0
    %2504 = vmatpush2.bf16.msra.mxu0 0
    %2505 = vmatprep.subr.bf16.mxu0 0
    %2506 = vmatpush2.bf16.msra.mxu0 0
    %2507 = vmatprep.subr.bf16.mxu0 0
    %2508 = vmatpush2.bf16.msra.mxu0 0
    %2509 = vmatprep.mubr.bf16.mxu0 0
    %2510 = vmatmul.mubr.bf16.gmra.mxu0 %v1521
    %v2511 = vpop.f32.mrf.mxu0
    %v2512 = vadd.f32 %v2415, %v2511
    %v2513 = vpop.f32.mrf.mxu0
    %v2514 = vpop.f32.mrf.mxu0
    %v2515 = vadd.f32 %v2418, %v2514
    %v2516 = vpop.f32.mrf.mxu0
    %2517 = vmatprep.mubr.bf16.mxu0 0
    %2518 = vmatmul.mubr.bf16.gmra.mxu0 %v1530
    %v2519 = vpop.f32.mrf.mxu0
    %v2520 = vadd.f32 %v2423, %v2519
    %v2521 = vpop.f32.mrf.mxu0
    %v2522 = vpop.f32.mrf.mxu0
    %v2523 = vadd.f32 %v2426, %v2522
    %v2524 = vpop.f32.mrf.mxu0
    %2525 = vmatprep.mubr.bf16.mxu0 0
    %2526 = vmatmul.mubr.bf16.gmra.mxu0 %v1539
    %v2527 = vpop.f32.mrf.mxu0
    %v2528 = vadd.f32 %v2431, %v2527
    %v2529 = vpop.f32.mrf.mxu0
    %v2530 = vpop.f32.mrf.mxu0
    %v2531 = vadd.f32 %v2434, %v2530
    %v2532 = vpop.f32.mrf.mxu0
    %2533 = vmatprep.mubr.bf16.mxu0 0
    %2534 = vmatmul.mubr.bf16.gmra.mxu0 %v1548
    %v2535 = vpop.f32.mrf.mxu0
    %v2536 = vadd.f32 %v2439, %v2535
    %v2537 = vpop.f32.mrf.mxu0
    %v2538 = vpop.f32.mrf.mxu0
    %v2539 = vadd.f32 %v2442, %v2538
    %v2540 = vpop.f32.mrf.mxu0
    %2541 = vmatprep.mubr.bf16.mxu0 0
    %2542 = vmatmul.mubr.bf16.gmra.mxu0 %v1557
    %v2543 = vpop.f32.mrf.mxu0
    %v2544 = vadd.f32 %v2447, %v2543
    %v2545 = vpop.f32.mrf.mxu0
    %v2546 = vpop.f32.mrf.mxu0
    %v2547 = vadd.f32 %v2450, %v2546
    %v2548 = vpop.f32.mrf.mxu0
    %2549 = vmatprep.mubr.bf16.mxu0 0
    %2550 = vmatmul.mubr.bf16.gmra.mxu0 %v1566
    %v2551 = vpop.f32.mrf.mxu0
    %v2552 = vadd.f32 %v2455, %v2551
    %v2553 = vpop.f32.mrf.mxu0
    %v2554 = vpop.f32.mrf.mxu0
    %v2555 = vadd.f32 %v2458, %v2554
    %v2556 = vpop.f32.mrf.mxu0
    %2557 = vmatprep.mubr.bf16.mxu0 0
    %2558 = vmatmul.mubr.bf16.gmra.mxu0 %v1575
    %v2559 = vpop.f32.mrf.mxu0
    %v2560 = vadd.f32 %v2463, %v2559
    %v2561 = vpop.f32.mrf.mxu0
    %v2562 = vpop.f32.mrf.mxu0
    %v2563 = vadd.f32 %v2466, %v2562
    %v2564 = vpop.f32.mrf.mxu0
    %2565 = vmatprep.mubr.bf16.mxu0 0
    %2566 = vmatmul.mubr.bf16.gmra.mxu0 %v1584
    %v2567 = vpop.f32.mrf.mxu0
    %v2568 = vadd.f32 %v2471, %v2567
    %v2569 = vpop.f32.mrf.mxu0
    %v2570 = vpop.f32.mrf.mxu0
    %v2571 = vadd.f32 %v2474, %v2570
    %v2572 = vpop.f32.mrf.mxu0
    %2573 = vdwg.mxu0
    %v2574 = vmax.f32 %v2512, 0.0
    %v2575 = vmax.f32 %v2515, 0.0
    %v2576 = vmax.f32 %v2520, 0.0
    %v2577 = vmax.f32 %v2523, 0.0
    %v2578 = vmax.f32 %v2528, 0.0
    %v2579 = vmax.f32 %v2531, 0.0
    %v2580 = vmax.f32 %v2536, 0.0
    %v2581 = vmax.f32 %v2539, 0.0
    %v2582 = vmax.f32 %v2544, 0.0
    %v2583 = vmax.f32 %v2547, 0.0
    %v2584 = vmax.f32 %v2552, 0.0
    %v2585 = vmax.f32 %v2555, 0.0
    %v2586 = vmax.f32 %v2560, 0.0
    %v2587 = vmax.f32 %v2563, 0.0
    %v2588 = vmax.f32 %v2568, 0.0
    %v2589 = vmax.f32 %v2571, 0.0
    %v2606 = vcombine.high %v2574, %v2574
    %v2608 = vunpack.c.l.s4 1983009808
    %v2609 = vunpack.c.0.s8 %v2608
    %v2610 = vlaneseq
    %v2611 = vshrl.u32 %v2610, 7
    %v2612 = vsub.s32 %v2609, %v2611
    %v2613 = vrot.slane %v2574, %v2612
    %v2615 = vunpack.c.l.s4 1983009808
    %v2616 = vunpack.c.0.s8 %v2615
    %v2617 = vlaneseq
    %v2618 = vshrl.u32 %v2617, 7
    %v2619 = vsub.s32 %v2616, %v2618
    %v2620 = vrot.slane %v2606, %v2619
    %v2621 = vcombine.high %v2613, %v2613
    %v2622 = vcombine.high %v2620, %v2620
    %v2623 = vcombine.high %v2575, %v2575
    %v2625 = vunpack.c.l.s4 1983009808
    %v2626 = vunpack.c.0.s8 %v2625
    %v2627 = vlaneseq
    %v2628 = vshrl.u32 %v2627, 7
    %v2629 = vsub.s32 %v2626, %v2628
    %v2630 = vrot.slane %v2575, %v2629
    %v2632 = vunpack.c.l.s4 1983009808
    %v2633 = vunpack.c.0.s8 %v2632
    %v2634 = vlaneseq
    %v2635 = vshrl.u32 %v2634, 7
    %v2636 = vsub.s32 %v2633, %v2635
    %v2637 = vrot.slane %v2623, %v2636
    %v2638 = vcombine.high %v2630, %v2630
    %v2639 = vcombine.high %v2637, %v2637
    %v2640 = vcombine.high %v2576, %v2576
    %v2642 = vunpack.c.l.s4 1983009808
    %v2643 = vunpack.c.0.s8 %v2642
    %v2644 = vlaneseq
    %v2645 = vshrl.u32 %v2644, 7
    %v2646 = vsub.s32 %v2643, %v2645
    %v2647 = vrot.slane %v2576, %v2646
    %v2649 = vunpack.c.l.s4 1983009808
    %v2650 = vunpack.c.0.s8 %v2649
    %v2651 = vlaneseq
    %v2652 = vshrl.u32 %v2651, 7
    %v2653 = vsub.s32 %v2650, %v2652
    %v2654 = vrot.slane %v2640, %v2653
    %v2655 = vcombine.high %v2647, %v2647
    %v2656 = vcombine.high %v2654, %v2654
    %v2657 = vcombine.high %v2577, %v2577
    %v2659 = vunpack.c.l.s4 1983009808
    %v2660 = vunpack.c.0.s8 %v2659
    %v2661 = vlaneseq
    %v2662 = vshrl.u32 %v2661, 7
    %v2663 = vsub.s32 %v2660, %v2662
    %v2664 = vrot.slane %v2577, %v2663
    %v2666 = vunpack.c.l.s4 1983009808
    %v2667 = vunpack.c.0.s8 %v2666
    %v2668 = vlaneseq
    %v2669 = vshrl.u32 %v2668, 7
    %v2670 = vsub.s32 %v2667, %v2669
    %v2671 = vrot.slane %v2657, %v2670
    %v2672 = vcombine.high %v2664, %v2664
    %v2673 = vcombine.high %v2671, %v2671
    %v2674 = vcombine.high %v2578, %v2578
    %v2676 = vunpack.c.l.s4 1983009808
    %v2677 = vunpack.c.0.s8 %v2676
    %v2678 = vlaneseq
    %v2679 = vshrl.u32 %v2678, 7
    %v2680 = vsub.s32 %v2677, %v2679
    %v2681 = vrot.slane %v2578, %v2680
    %v2683 = vunpack.c.l.s4 1983009808
    %v2684 = vunpack.c.0.s8 %v2683
    %v2685 = vlaneseq
    %v2686 = vshrl.u32 %v2685, 7
    %v2687 = vsub.s32 %v2684, %v2686
    %v2688 = vrot.slane %v2674, %v2687
    %v2689 = vcombine.high %v2681, %v2681
    %v2690 = vcombine.high %v2688, %v2688
    %v2691 = vcombine.high %v2579, %v2579
    %v2693 = vunpack.c.l.s4 1983009808
    %v2694 = vunpack.c.0.s8 %v2693
    %v2695 = vlaneseq
    %v2696 = vshrl.u32 %v2695, 7
    %v2697 = vsub.s32 %v2694, %v2696
    %v2698 = vrot.slane %v2579, %v2697
    %v2700 = vunpack.c.l.s4 1983009808
    %v2701 = vunpack.c.0.s8 %v2700
    %v2702 = vlaneseq
    %v2703 = vshrl.u32 %v2702, 7
    %v2704 = vsub.s32 %v2701, %v2703
    %v2705 = vrot.slane %v2691, %v2704
    %v2706 = vcombine.high %v2698, %v2698
    %v2707 = vcombine.high %v2705, %v2705
    %v2708 = vcombine.high %v2580, %v2580
    %v2710 = vunpack.c.l.s4 1983009808
    %v2711 = vunpack.c.0.s8 %v2710
    %v2712 = vlaneseq
    %v2713 = vshrl.u32 %v2712, 7
    %v2714 = vsub.s32 %v2711, %v2713
    %v2715 = vrot.slane %v2580, %v2714
    %v2717 = vunpack.c.l.s4 1983009808
    %v2718 = vunpack.c.0.s8 %v2717
    %v2719 = vlaneseq
    %v2720 = vshrl.u32 %v2719, 7
    %v2721 = vsub.s32 %v2718, %v2720
    %v2722 = vrot.slane %v2708, %v2721
    %v2723 = vcombine.high %v2715, %v2715
    %v2724 = vcombine.high %v2722, %v2722
    %v2725 = vcombine.high %v2581, %v2581
    %v2727 = vunpack.c.l.s4 1983009808
    %v2728 = vunpack.c.0.s8 %v2727
    %v2729 = vlaneseq
    %v2730 = vshrl.u32 %v2729, 7
    %v2731 = vsub.s32 %v2728, %v2730
    %v2732 = vrot.slane %v2581, %v2731
    %v2734 = vunpack.c.l.s4 1983009808
    %v2735 = vunpack.c.0.s8 %v2734
    %v2736 = vlaneseq
    %v2737 = vshrl.u32 %v2736, 7
    %v2738 = vsub.s32 %v2735, %v2737
    %v2739 = vrot.slane %v2725, %v2738
    %v2740 = vcombine.high %v2732, %v2732
    %v2741 = vcombine.high %v2739, %v2739
    %v2742 = vcombine.high %v2582, %v2582
    %v2744 = vunpack.c.l.s4 1983009808
    %v2745 = vunpack.c.0.s8 %v2744
    %v2746 = vlaneseq
    %v2747 = vshrl.u32 %v2746, 7
    %v2748 = vsub.s32 %v2745, %v2747
    %v2749 = vrot.slane %v2582, %v2748
    %v2751 = vunpack.c.l.s4 1983009808
    %v2752 = vunpack.c.0.s8 %v2751
    %v2753 = vlaneseq
    %v2754 = vshrl.u32 %v2753, 7
    %v2755 = vsub.s32 %v2752, %v2754
    %v2756 = vrot.slane %v2742, %v2755
    %v2757 = vcombine.high %v2749, %v2749
    %v2758 = vcombine.high %v2756, %v2756
    %v2759 = vcombine.high %v2583, %v2583
    %v2761 = vunpack.c.l.s4 1983009808
    %v2762 = vunpack.c.0.s8 %v2761
    %v2763 = vlaneseq
    %v2764 = vshrl.u32 %v2763, 7
    %v2765 = vsub.s32 %v2762, %v2764
    %v2766 = vrot.slane %v2583, %v2765
    %v2768 = vunpack.c.l.s4 1983009808
    %v2769 = vunpack.c.0.s8 %v2768
    %v2770 = vlaneseq
    %v2771 = vshrl.u32 %v2770, 7
    %v2772 = vsub.s32 %v2769, %v2771
    %v2773 = vrot.slane %v2759, %v2772
    %v2774 = vcombine.high %v2766, %v2766
    %v2775 = vcombine.high %v2773, %v2773
    %v2776 = vcombine.high %v2584, %v2584
    %v2778 = vunpack.c.l.s4 1983009808
    %v2779 = vunpack.c.0.s8 %v2778
    %v2780 = vlaneseq
    %v2781 = vshrl.u32 %v2780, 7
    %v2782 = vsub.s32 %v2779, %v2781
    %v2783 = vrot.slane %v2584, %v2782
    %v2785 = vunpack.c.l.s4 1983009808
    %v2786 = vunpack.c.0.s8 %v2785
    %v2787 = vlaneseq
    %v2788 = vshrl.u32 %v2787, 7
    %v2789 = vsub.s32 %v2786, %v2788
    %v2790 = vrot.slane %v2776, %v2789
    %v2791 = vcombine.high %v2783, %v2783
    %v2792 = vcombine.high %v2790, %v2790
    %v2793 = vcombine.high %v2585, %v2585
    %v2795 = vunpack.c.l.s4 1983009808
    %v2796 = vunpack.c.0.s8 %v2795
    %v2797 = vlaneseq
    %v2798 = vshrl.u32 %v2797, 7
    %v2799 = vsub.s32 %v2796, %v2798
    %v2800 = vrot.slane %v2585, %v2799
    %v2802 = vunpack.c.l.s4 1983009808
    %v2803 = vunpack.c.0.s8 %v2802
    %v2804 = vlaneseq
    %v2805 = vshrl.u32 %v2804, 7
    %v2806 = vsub.s32 %v2803, %v2805
    %v2807 = vrot.slane %v2793, %v2806
    %v2808 = vcombine.high %v2800, %v2800
    %v2809 = vcombine.high %v2807, %v2807
    %v2810 = vcombine.high %v2586, %v2586
    %v2812 = vunpack.c.l.s4 1983009808
    %v2813 = vunpack.c.0.s8 %v2812
    %v2814 = vlaneseq
    %v2815 = vshrl.u32 %v2814, 7
    %v2816 = vsub.s32 %v2813, %v2815
    %v2817 = vrot.slane %v2586, %v2816
    %v2819 = vunpack.c.l.s4 1983009808
    %v2820 = vunpack.c.0.s8 %v2819
    %v2821 = vlaneseq
    %v2822 = vshrl.u32 %v2821, 7
    %v2823 = vsub.s32 %v2820, %v2822
    %v2824 = vrot.slane %v2810, %v2823
    %v2825 = vcombine.high %v2817, %v2817
    %v2826 = vcombine.high %v2824, %v2824
    %v2827 = vcombine.high %v2587, %v2587
    %v2829 = vunpack.c.l.s4 1983009808
    %v2830 = vunpack.c.0.s8 %v2829
    %v2831 = vlaneseq
    %v2832 = vshrl.u32 %v2831, 7
    %v2833 = vsub.s32 %v2830, %v2832
    %v2834 = vrot.slane %v2587, %v2833
    %v2836 = vunpack.c.l.s4 1983009808
    %v2837 = vunpack.c.0.s8 %v2836
    %v2838 = vlaneseq
    %v2839 = vshrl.u32 %v2838, 7
    %v2840 = vsub.s32 %v2837, %v2839
    %v2841 = vrot.slane %v2827, %v2840
    %v2842 = vcombine.high %v2834, %v2834
    %v2843 = vcombine.high %v2841, %v2841
    %v2844 = vcombine.high %v2588, %v2588
    %v2846 = vunpack.c.l.s4 1983009808
    %v2847 = vunpack.c.0.s8 %v2846
    %v2848 = vlaneseq
    %v2849 = vshrl.u32 %v2848, 7
    %v2850 = vsub.s32 %v2847, %v2849
    %v2851 = vrot.slane %v2588, %v2850
    %v2853 = vunpack.c.l.s4 1983009808
    %v2854 = vunpack.c.0.s8 %v2853
    %v2855 = vlaneseq
    %v2856 = vshrl.u32 %v2855, 7
    %v2857 = vsub.s32 %v2854, %v2856
    %v2858 = vrot.slane %v2844, %v2857
    %v2859 = vcombine.high %v2851, %v2851
    %v2860 = vcombine.high %v2858, %v2858
    %v2861 = vcombine.high %v2589, %v2589
    %v2863 = vunpack.c.l.s4 1983009808
    %v2864 = vunpack.c.0.s8 %v2863
    %v2865 = vlaneseq
    %v2866 = vshrl.u32 %v2865, 7
    %v2867 = vsub.s32 %v2864, %v2866
    %v2868 = vrot.slane %v2589, %v2867
    %v2870 = vunpack.c.l.s4 1983009808
    %v2871 = vunpack.c.0.s8 %v2870
    %v2872 = vlaneseq
    %v2873 = vshrl.u32 %v2872, 7
    %v2874 = vsub.s32 %v2871, %v2873
    %v2875 = vrot.slane %v2861, %v2874
    %v2876 = vcombine.high %v2868, %v2868
    %v2877 = vcombine.high %v2875, %v2875
    %vm2942 = vcmask 1041408
    %v2943 = vsel %vm2942, %v2613, -inf
    %v2944 = vrot.slane %v2943, 4
    %v2945 = vmax.f32 %v2943, %v2944
    %v2946 = vrot.slane %v2945, 2
    %v2947 = vmax.f32 %v2945, %v2946
    %v2948 = vrot.slane %v2947, 1
    %v2949 = vmax.f32 %v2947, %v2948
    %v2950 = vsel %vm2942, %v2621, -inf
    %v2951 = vrot.slane %v2950, 4
    %v2952 = vmax.f32 %v2950, %v2951
    %v2953 = vrot.slane %v2952, 2
    %v2954 = vmax.f32 %v2952, %v2953
    %v2955 = vrot.slane %v2954, 1
    %v2956 = vmax.f32 %v2954, %v2955
    %v2957 = vsel %vm2942, %v2620, -inf
    %v2958 = vrot.slane %v2957, 4
    %v2959 = vmax.f32 %v2957, %v2958
    %v2960 = vrot.slane %v2959, 2
    %v2961 = vmax.f32 %v2959, %v2960
    %v2962 = vrot.slane %v2961, 1
    %v2963 = vmax.f32 %v2961, %v2962
    %v2964 = vsel %vm2942, %v2622, -inf
    %v2965 = vrot.slane %v2964, 4
    %v2966 = vmax.f32 %v2964, %v2965
    %v2967 = vrot.slane %v2966, 2
    %v2968 = vmax.f32 %v2966, %v2967
    %v2969 = vrot.slane %v2968, 1
    %v2970 = vmax.f32 %v2968, %v2969
    %v2971 = vsel %vm2942, %v2630, -inf
    %v2972 = vrot.slane %v2971, 4
    %v2973 = vmax.f32 %v2971, %v2972
    %v2974 = vrot.slane %v2973, 2
    %v2975 = vmax.f32 %v2973, %v2974
    %v2976 = vrot.slane %v2975, 1
    %v2977 = vmax.f32 %v2975, %v2976
    %v2978 = vsel %vm2942, %v2638, -inf
    %v2979 = vrot.slane %v2978, 4
    %v2980 = vmax.f32 %v2978, %v2979
    %v2981 = vrot.slane %v2980, 2
    %v2982 = vmax.f32 %v2980, %v2981
    %v2983 = vrot.slane %v2982, 1
    %v2984 = vmax.f32 %v2982, %v2983
    %v2985 = vsel %vm2942, %v2637, -inf
    %v2986 = vrot.slane %v2985, 4
    %v2987 = vmax.f32 %v2985, %v2986
    %v2988 = vrot.slane %v2987, 2
    %v2989 = vmax.f32 %v2987, %v2988
    %v2990 = vrot.slane %v2989, 1
    %v2991 = vmax.f32 %v2989, %v2990
    %v2992 = vsel %vm2942, %v2639, -inf
    %v2993 = vrot.slane %v2992, 4
    %v2994 = vmax.f32 %v2992, %v2993
    %v2995 = vrot.slane %v2994, 2
    %v2996 = vmax.f32 %v2994, %v2995
    %v2997 = vrot.slane %v2996, 1
    %v2998 = vmax.f32 %v2996, %v2997
    %v2999 = vsel %vm2942, %v2647, -inf
    %v3000 = vrot.slane %v2999, 4
    %v3001 = vmax.f32 %v2999, %v3000
    %v3002 = vrot.slane %v3001, 2
    %v3003 = vmax.f32 %v3001, %v3002
    %v3004 = vrot.slane %v3003, 1
    %v3005 = vmax.f32 %v3003, %v3004
    %v3006 = vsel %vm2942, %v2655, -inf
    %v3007 = vrot.slane %v3006, 4
    %v3008 = vmax.f32 %v3006, %v3007
    %v3009 = vrot.slane %v3008, 2
    %v3010 = vmax.f32 %v3008, %v3009
    %v3011 = vrot.slane %v3010, 1
    %v3012 = vmax.f32 %v3010, %v3011
    %v3013 = vsel %vm2942, %v2654, -inf
    %v3014 = vrot.slane %v3013, 4
    %v3015 = vmax.f32 %v3013, %v3014
    %v3016 = vrot.slane %v3015, 2
    %v3017 = vmax.f32 %v3015, %v3016
    %v3018 = vrot.slane %v3017, 1
    %v3019 = vmax.f32 %v3017, %v3018
    %v3020 = vsel %vm2942, %v2656, -inf
    %v3021 = vrot.slane %v3020, 4
    %v3022 = vmax.f32 %v3020, %v3021
    %v3023 = vrot.slane %v3022, 2
    %v3024 = vmax.f32 %v3022, %v3023
    %v3025 = vrot.slane %v3024, 1
    %v3026 = vmax.f32 %v3024, %v3025
    %v3027 = vsel %vm2942, %v2664, -inf
    %v3028 = vrot.slane %v3027, 4
    %v3029 = vmax.f32 %v3027, %v3028
    %v3030 = vrot.slane %v3029, 2
    %v3031 = vmax.f32 %v3029, %v3030
    %v3032 = vrot.slane %v3031, 1
    %v3033 = vmax.f32 %v3031, %v3032
    %v3034 = vsel %vm2942, %v2672, -inf
    %v3035 = vrot.slane %v3034, 4
    %v3036 = vmax.f32 %v3034, %v3035
    %v3037 = vrot.slane %v3036, 2
    %v3038 = vmax.f32 %v3036, %v3037
    %v3039 = vrot.slane %v3038, 1
    %v3040 = vmax.f32 %v3038, %v3039
    %v3041 = vsel %vm2942, %v2671, -inf
    %v3042 = vrot.slane %v3041, 4
    %v3043 = vmax.f32 %v3041, %v3042
    %v3044 = vrot.slane %v3043, 2
    %v3045 = vmax.f32 %v3043, %v3044
    %v3046 = vrot.slane %v3045, 1
    %v3047 = vmax.f32 %v3045, %v3046
    %v3048 = vsel %vm2942, %v2673, -inf
    %v3049 = vrot.slane %v3048, 4
    %v3050 = vmax.f32 %v3048, %v3049
    %v3051 = vrot.slane %v3050, 2
    %v3052 = vmax.f32 %v3050, %v3051
    %v3053 = vrot.slane %v3052, 1
    %v3054 = vmax.f32 %v3052, %v3053
    %v3055 = vsel %vm2942, %v2681, -inf
    %v3056 = vrot.slane %v3055, 4
    %v3057 = vmax.f32 %v3055, %v3056
    %v3058 = vrot.slane %v3057, 2
    %v3059 = vmax.f32 %v3057, %v3058
    %v3060 = vrot.slane %v3059, 1
    %v3061 = vmax.f32 %v3059, %v3060
    %v3062 = vsel %vm2942, %v2689, -inf
    %v3063 = vrot.slane %v3062, 4
    %v3064 = vmax.f32 %v3062, %v3063
    %v3065 = vrot.slane %v3064, 2
    %v3066 = vmax.f32 %v3064, %v3065
    %v3067 = vrot.slane %v3066, 1
    %v3068 = vmax.f32 %v3066, %v3067
    %v3069 = vsel %vm2942, %v2688, -inf
    %v3070 = vrot.slane %v3069, 4
    %v3071 = vmax.f32 %v3069, %v3070
    %v3072 = vrot.slane %v3071, 2
    %v3073 = vmax.f32 %v3071, %v3072
    %v3074 = vrot.slane %v3073, 1
    %v3075 = vmax.f32 %v3073, %v3074
    %v3076 = vsel %vm2942, %v2690, -inf
    %v3077 = vrot.slane %v3076, 4
    %v3078 = vmax.f32 %v3076, %v3077
    %v3079 = vrot.slane %v3078, 2
    %v3080 = vmax.f32 %v3078, %v3079
    %v3081 = vrot.slane %v3080, 1
    %v3082 = vmax.f32 %v3080, %v3081
    %v3083 = vsel %vm2942, %v2698, -inf
    %v3084 = vrot.slane %v3083, 4
    %v3085 = vmax.f32 %v3083, %v3084
    %v3086 = vrot.slane %v3085, 2
    %v3087 = vmax.f32 %v3085, %v3086
    %v3088 = vrot.slane %v3087, 1
    %v3089 = vmax.f32 %v3087, %v3088
    %v3090 = vsel %vm2942, %v2706, -inf
    %v3091 = vrot.slane %v3090, 4
    %v3092 = vmax.f32 %v3090, %v3091
    %v3093 = vrot.slane %v3092, 2
    %v3094 = vmax.f32 %v3092, %v3093
    %v3095 = vrot.slane %v3094, 1
    %v3096 = vmax.f32 %v3094, %v3095
    %v3097 = vsel %vm2942, %v2705, -inf
    %v3098 = vrot.slane %v3097, 4
    %v3099 = vmax.f32 %v3097, %v3098
    %v3100 = vrot.slane %v3099, 2
    %v3101 = vmax.f32 %v3099, %v3100
    %v3102 = vrot.slane %v3101, 1
    %v3103 = vmax.f32 %v3101, %v3102
    %v3104 = vsel %vm2942, %v2707, -inf
    %v3105 = vrot.slane %v3104, 4
    %v3106 = vmax.f32 %v3104, %v3105
    %v3107 = vrot.slane %v3106, 2
    %v3108 = vmax.f32 %v3106, %v3107
    %v3109 = vrot.slane %v3108, 1
    %v3110 = vmax.f32 %v3108, %v3109
    %v3111 = vsel %vm2942, %v2715, -inf
    %v3112 = vrot.slane %v3111, 4
    %v3113 = vmax.f32 %v3111, %v3112
    %v3114 = vrot.slane %v3113, 2
    %v3115 = vmax.f32 %v3113, %v3114
    %v3116 = vrot.slane %v3115, 1
    %v3117 = vmax.f32 %v3115, %v3116
    %v3118 = vsel %vm2942, %v2723, -inf
    %v3119 = vrot.slane %v3118, 4
    %v3120 = vmax.f32 %v3118, %v3119
    %v3121 = vrot.slane %v3120, 2
    %v3122 = vmax.f32 %v3120, %v3121
    %v3123 = vrot.slane %v3122, 1
    %v3124 = vmax.f32 %v3122, %v3123
    %v3125 = vsel %vm2942, %v2722, -inf
    %v3126 = vrot.slane %v3125, 4
    %v3127 = vmax.f32 %v3125, %v3126
    %v3128 = vrot.slane %v3127, 2
    %v3129 = vmax.f32 %v3127, %v3128
    %v3130 = vrot.slane %v3129, 1
    %v3131 = vmax.f32 %v3129, %v3130
    %v3132 = vsel %vm2942, %v2724, -inf
    %v3133 = vrot.slane %v3132, 4
    %v3134 = vmax.f32 %v3132, %v3133
    %v3135 = vrot.slane %v3134, 2
    %v3136 = vmax.f32 %v3134, %v3135
    %v3137 = vrot.slane %v3136, 1
    %v3138 = vmax.f32 %v3136, %v3137
    %v3139 = vsel %vm2942, %v2732, -inf
    %v3140 = vrot.slane %v3139, 4
    %v3141 = vmax.f32 %v3139, %v3140
    %v3142 = vrot.slane %v3141, 2
    %v3143 = vmax.f32 %v3141, %v3142
    %v3144 = vrot.slane %v3143, 1
    %v3145 = vmax.f32 %v3143, %v3144
    %v3146 = vsel %vm2942, %v2740, -inf
    %v3147 = vrot.slane %v3146, 4
    %v3148 = vmax.f32 %v3146, %v3147
    %v3149 = vrot.slane %v3148, 2
    %v3150 = vmax.f32 %v3148, %v3149
    %v3151 = vrot.slane %v3150, 1
    %v3152 = vmax.f32 %v3150, %v3151
    %v3153 = vsel %vm2942, %v2739, -inf
    %v3154 = vrot.slane %v3153, 4
    %v3155 = vmax.f32 %v3153, %v3154
    %v3156 = vrot.slane %v3155, 2
    %v3157 = vmax.f32 %v3155, %v3156
    %v3158 = vrot.slane %v3157, 1
    %v3159 = vmax.f32 %v3157, %v3158
    %v3160 = vsel %vm2942, %v2741, -inf
    %v3161 = vrot.slane %v3160, 4
    %v3162 = vmax.f32 %v3160, %v3161
    %v3163 = vrot.slane %v3162, 2
    %v3164 = vmax.f32 %v3162, %v3163
    %v3165 = vrot.slane %v3164, 1
    %v3166 = vmax.f32 %v3164, %v3165
    %v3167 = vsel %vm2942, %v2749, -inf
    %v3168 = vrot.slane %v3167, 4
    %v3169 = vmax.f32 %v3167, %v3168
    %v3170 = vrot.slane %v3169, 2
    %v3171 = vmax.f32 %v3169, %v3170
    %v3172 = vrot.slane %v3171, 1
    %v3173 = vmax.f32 %v3171, %v3172
    %v3174 = vsel %vm2942, %v2757, -inf
    %v3175 = vrot.slane %v3174, 4
    %v3176 = vmax.f32 %v3174, %v3175
    %v3177 = vrot.slane %v3176, 2
    %v3178 = vmax.f32 %v3176, %v3177
    %v3179 = vrot.slane %v3178, 1
    %v3180 = vmax.f32 %v3178, %v3179
    %v3181 = vsel %vm2942, %v2756, -inf
    %v3182 = vrot.slane %v3181, 4
    %v3183 = vmax.f32 %v3181, %v3182
    %v3184 = vrot.slane %v3183, 2
    %v3185 = vmax.f32 %v3183, %v3184
    %v3186 = vrot.slane %v3185, 1
    %v3187 = vmax.f32 %v3185, %v3186
    %v3188 = vsel %vm2942, %v2758, -inf
    %v3189 = vrot.slane %v3188, 4
    %v3190 = vmax.f32 %v3188, %v3189
    %v3191 = vrot.slane %v3190, 2
    %v3192 = vmax.f32 %v3190, %v3191
    %v3193 = vrot.slane %v3192, 1
    %v3194 = vmax.f32 %v3192, %v3193
    %v3195 = vsel %vm2942, %v2766, -inf
    %v3196 = vrot.slane %v3195, 4
    %v3197 = vmax.f32 %v3195, %v3196
    %v3198 = vrot.slane %v3197, 2
    %v3199 = vmax.f32 %v3197, %v3198
    %v3200 = vrot.slane %v3199, 1
    %v3201 = vmax.f32 %v3199, %v3200
    %v3202 = vsel %vm2942, %v2774, -inf
    %v3203 = vrot.slane %v3202, 4
    %v3204 = vmax.f32 %v3202, %v3203
    %v3205 = vrot.slane %v3204, 2
    %v3206 = vmax.f32 %v3204, %v3205
    %v3207 = vrot.slane %v3206, 1
    %v3208 = vmax.f32 %v3206, %v3207
    %v3209 = vsel %vm2942, %v2773, -inf
    %v3210 = vrot.slane %v3209, 4
    %v3211 = vmax.f32 %v3209, %v3210
    %v3212 = vrot.slane %v3211, 2
    %v3213 = vmax.f32 %v3211, %v3212
    %v3214 = vrot.slane %v3213, 1
    %v3215 = vmax.f32 %v3213, %v3214
    %v3216 = vsel %vm2942, %v2775, -inf
    %v3217 = vrot.slane %v3216, 4
    %v3218 = vmax.f32 %v3216, %v3217
    %v3219 = vrot.slane %v3218, 2
    %v3220 = vmax.f32 %v3218, %v3219
    %v3221 = vrot.slane %v3220, 1
    %v3222 = vmax.f32 %v3220, %v3221
    %v3223 = vsel %vm2942, %v2783, -inf
    %v3224 = vrot.slane %v3223, 4
    %v3225 = vmax.f32 %v3223, %v3224
    %v3226 = vrot.slane %v3225, 2
    %v3227 = vmax.f32 %v3225, %v3226
    %v3228 = vrot.slane %v3227, 1
    %v3229 = vmax.f32 %v3227, %v3228
    %v3230 = vsel %vm2942, %v2791, -inf
    %v3231 = vrot.slane %v3230, 4
    %v3232 = vmax.f32 %v3230, %v3231
    %v3233 = vrot.slane %v3232, 2
    %v3234 = vmax.f32 %v3232, %v3233
    %v3235 = vrot.slane %v3234, 1
    %v3236 = vmax.f32 %v3234, %v3235
    %v3237 = vsel %vm2942, %v2790, -inf
    %v3238 = vrot.slane %v3237, 4
    %v3239 = vmax.f32 %v3237, %v3238
    %v3240 = vrot.slane %v3239, 2
    %v3241 = vmax.f32 %v3239, %v3240
    %v3242 = vrot.slane %v3241, 1
    %v3243 = vmax.f32 %v3241, %v3242
    %v3244 = vsel %vm2942, %v2792, -inf
    %v3245 = vrot.slane %v3244, 4
    %v3246 = vmax.f32 %v3244, %v3245
    %v3247 = vrot.slane %v3246, 2
    %v3248 = vmax.f32 %v3246, %v3247
    %v3249 = vrot.slane %v3248, 1
    %v3250 = vmax.f32 %v3248, %v3249
    %v3251 = vsel %vm2942, %v2800, -inf
    %v3252 = vrot.slane %v3251, 4
    %v3253 = vmax.f32 %v3251, %v3252
    %v3254 = vrot.slane %v3253, 2
    %v3255 = vmax.f32 %v3253, %v3254
    %v3256 = vrot.slane %v3255, 1
    %v3257 = vmax.f32 %v3255, %v3256
    %v3258 = vsel %vm2942, %v2808, -inf
    %v3259 = vrot.slane %v3258, 4
    %v3260 = vmax.f32 %v3258, %v3259
    %v3261 = vrot.slane %v3260, 2
    %v3262 = vmax.f32 %v3260, %v3261
    %v3263 = vrot.slane %v3262, 1
    %v3264 = vmax.f32 %v3262, %v3263
    %v3265 = vsel %vm2942, %v2807, -inf
    %v3266 = vrot.slane %v3265, 4
    %v3267 = vmax.f32 %v3265, %v3266
    %v3268 = vrot.slane %v3267, 2
    %v3269 = vmax.f32 %v3267, %v3268
    %v3270 = vrot.slane %v3269, 1
    %v3271 = vmax.f32 %v3269, %v3270
    %v3272 = vsel %vm2942, %v2809, -inf
    %v3273 = vrot.slane %v3272, 4
    %v3274 = vmax.f32 %v3272, %v3273
    %v3275 = vrot.slane %v3274, 2
    %v3276 = vmax.f32 %v3274, %v3275
    %v3277 = vrot.slane %v3276, 1
    %v3278 = vmax.f32 %v3276, %v3277
    %v3279 = vsel %vm2942, %v2817, -inf
    %v3280 = vrot.slane %v3279, 4
    %v3281 = vmax.f32 %v3279, %v3280
    %v3282 = vrot.slane %v3281, 2
    %v3283 = vmax.f32 %v3281, %v3282
    %v3284 = vrot.slane %v3283, 1
    %v3285 = vmax.f32 %v3283, %v3284
    %v3286 = vsel %vm2942, %v2825, -inf
    %v3287 = vrot.slane %v3286, 4
    %v3288 = vmax.f32 %v3286, %v3287
    %v3289 = vrot.slane %v3288, 2
    %v3290 = vmax.f32 %v3288, %v3289
    %v3291 = vrot.slane %v3290, 1
    %v3292 = vmax.f32 %v3290, %v3291
    %v3293 = vsel %vm2942, %v2824, -inf
    %v3294 = vrot.slane %v3293, 4
    %v3295 = vmax.f32 %v3293, %v3294
    %v3296 = vrot.slane %v3295, 2
    %v3297 = vmax.f32 %v3295, %v3296
    %v3298 = vrot.slane %v3297, 1
    %v3299 = vmax.f32 %v3297, %v3298
    %v3300 = vsel %vm2942, %v2826, -inf
    %v3301 = vrot.slane %v3300, 4
    %v3302 = vmax.f32 %v3300, %v3301
    %v3303 = vrot.slane %v3302, 2
    %v3304 = vmax.f32 %v3302, %v3303
    %v3305 = vrot.slane %v3304, 1
    %v3306 = vmax.f32 %v3304, %v3305
    %v3307 = vsel %vm2942, %v2834, -inf
    %v3308 = vrot.slane %v3307, 4
    %v3309 = vmax.f32 %v3307, %v3308
    %v3310 = vrot.slane %v3309, 2
    %v3311 = vmax.f32 %v3309, %v3310
    %v3312 = vrot.slane %v3311, 1
    %v3313 = vmax.f32 %v3311, %v3312
    %v3314 = vsel %vm2942, %v2842, -inf
    %v3315 = vrot.slane %v3314, 4
    %v3316 = vmax.f32 %v3314, %v3315
    %v3317 = vrot.slane %v3316, 2
    %v3318 = vmax.f32 %v3316, %v3317
    %v3319 = vrot.slane %v3318, 1
    %v3320 = vmax.f32 %v3318, %v3319
    %v3321 = vsel %vm2942, %v2841, -inf
    %v3322 = vrot.slane %v3321, 4
    %v3323 = vmax.f32 %v3321, %v3322
    %v3324 = vrot.slane %v3323, 2
    %v3325 = vmax.f32 %v3323, %v3324
    %v3326 = vrot.slane %v3325, 1
    %v3327 = vmax.f32 %v3325, %v3326
    %v3328 = vsel %vm2942, %v2843, -inf
    %v3329 = vrot.slane %v3328, 4
    %v3330 = vmax.f32 %v3328, %v3329
    %v3331 = vrot.slane %v3330, 2
    %v3332 = vmax.f32 %v3330, %v3331
    %v3333 = vrot.slane %v3332, 1
    %v3334 = vmax.f32 %v3332, %v3333
    %v3335 = vsel %vm2942, %v2851, -inf
    %v3336 = vrot.slane %v3335, 4
    %v3337 = vmax.f32 %v3335, %v3336
    %v3338 = vrot.slane %v3337, 2
    %v3339 = vmax.f32 %v3337, %v3338
    %v3340 = vrot.slane %v3339, 1
    %v3341 = vmax.f32 %v3339, %v3340
    %v3342 = vsel %vm2942, %v2859, -inf
    %v3343 = vrot.slane %v3342, 4
    %v3344 = vmax.f32 %v3342, %v3343
    %v3345 = vrot.slane %v3344, 2
    %v3346 = vmax.f32 %v3344, %v3345
    %v3347 = vrot.slane %v3346, 1
    %v3348 = vmax.f32 %v3346, %v3347
    %v3349 = vsel %vm2942, %v2858, -inf
    %v3350 = vrot.slane %v3349, 4
    %v3351 = vmax.f32 %v3349, %v3350
    %v3352 = vrot.slane %v3351, 2
    %v3353 = vmax.f32 %v3351, %v3352
    %v3354 = vrot.slane %v3353, 1
    %v3355 = vmax.f32 %v3353, %v3354
    %v3356 = vsel %vm2942, %v2860, -inf
    %v3357 = vrot.slane %v3356, 4
    %v3358 = vmax.f32 %v3356, %v3357
    %v3359 = vrot.slane %v3358, 2
    %v3360 = vmax.f32 %v3358, %v3359
    %v3361 = vrot.slane %v3360, 1
    %v3362 = vmax.f32 %v3360, %v3361
    %v3363 = vsel %vm2942, %v2868, -inf
    %v3364 = vrot.slane %v3363, 4
    %v3365 = vmax.f32 %v3363, %v3364
    %v3366 = vrot.slane %v3365, 2
    %v3367 = vmax.f32 %v3365, %v3366
    %v3368 = vrot.slane %v3367, 1
    %v3369 = vmax.f32 %v3367, %v3368
    %v3370 = vsel %vm2942, %v2876, -inf
    %v3371 = vrot.slane %v3370, 4
    %v3372 = vmax.f32 %v3370, %v3371
    %v3373 = vrot.slane %v3372, 2
    %v3374 = vmax.f32 %v3372, %v3373
    %v3375 = vrot.slane %v3374, 1
    %v3376 = vmax.f32 %v3374, %v3375
    %v3377 = vsel %vm2942, %v2875, -inf
    %v3378 = vrot.slane %v3377, 4
    %v3379 = vmax.f32 %v3377, %v3378
    %v3380 = vrot.slane %v3379, 2
    %v3381 = vmax.f32 %v3379, %v3380
    %v3382 = vrot.slane %v3381, 1
    %v3383 = vmax.f32 %v3381, %v3382
    %v3384 = vsel %vm2942, %v2877, -inf
    %v3385 = vrot.slane %v3384, 4
    %v3386 = vmax.f32 %v3384, %v3385
    %v3387 = vrot.slane %v3386, 2
    %v3388 = vmax.f32 %v3386, %v3387
    %v3389 = vrot.slane %v3388, 1
    %v3390 = vmax.f32 %v3388, %v3389
    %v3391 = vmax.f32 %v2949, %v2977
    %v3392 = vmax.f32 %v2956, %v2984
    %v3393 = vmax.f32 %v2963, %v2991
    %v3394 = vmax.f32 %v2970, %v2998
    %v3395 = vmax.f32 %v3005, %v3033
    %v3396 = vmax.f32 %v3012, %v3040
    %v3397 = vmax.f32 %v3019, %v3047
    %v3398 = vmax.f32 %v3026, %v3054
    %v3399 = vmax.f32 %v3061, %v3089
    %v3400 = vmax.f32 %v3068, %v3096
    %v3401 = vmax.f32 %v3075, %v3103
    %v3402 = vmax.f32 %v3082, %v3110
    %v3403 = vmax.f32 %v3117, %v3145
    %v3404 = vmax.f32 %v3124, %v3152
    %v3405 = vmax.f32 %v3131, %v3159
    %v3406 = vmax.f32 %v3138, %v3166
    %v3407 = vmax.f32 %v3173, %v3201
    %v3408 = vmax.f32 %v3180, %v3208
    %v3409 = vmax.f32 %v3187, %v3215
    %v3410 = vmax.f32 %v3194, %v3222
    %v3411 = vmax.f32 %v3229, %v3257
    %v3412 = vmax.f32 %v3236, %v3264
    %v3413 = vmax.f32 %v3243, %v3271
    %v3414 = vmax.f32 %v3250, %v3278
    %v3415 = vmax.f32 %v3285, %v3313
    %v3416 = vmax.f32 %v3292, %v3320
    %v3417 = vmax.f32 %v3299, %v3327
    %v3418 = vmax.f32 %v3306, %v3334
    %v3419 = vmax.f32 %v3341, %v3369
    %v3420 = vmax.f32 %v3348, %v3376
    %v3421 = vmax.f32 %v3355, %v3383
    %v3422 = vmax.f32 %v3362, %v3390
    %3423 = vst [vmem:[#allocation3] sm:$0x7] 0
    %3424 = vst [vmem:[#allocation3 + $0x4] sm:$0x7] 0
    %3425 = vst [vmem:[#allocation3 + $0x8] sm:$0x7] 0
    %3426 = vst [vmem:[#allocation3 + $0xc] sm:$0x7] 0
    %3427 = vst [vmem:[#allocation3 + $0x10] sm:$0x7] 0
    %3428 = vst [vmem:[#allocation3 + $0x14] sm:$0x7] 0
    %3429 = vst [vmem:[#allocation3 + $0x18] sm:$0x7] 0
    %3430 = vst [vmem:[#allocation3 + $0x1c] sm:$0x7] 0
    %3431 = vst [vmem:[#allocation3 + $0x20] sm:$0x7] 0
    %3432 = vst [vmem:[#allocation3 + $0x24] sm:$0x7] 0
    %3433 = vst [vmem:[#allocation3 + $0x28] sm:$0x7] 0
    %3434 = vst [vmem:[#allocation3 + $0x2c] sm:$0x7] 0
    %v3435 = vpack.c.bf16 %v3391, %v3391
    %v3436 = vpack.c.bf16 %v3392, %v3392
    %v3437 = vpack.c.bf16 %v3393, %v3393
    %v3438 = vpack.c.bf16 %v3394, %v3394
    %v3439 = vpack.c.bf16 %v3395, %v3395
    %v3440 = vpack.c.bf16 %v3396, %v3396
    %v3441 = vpack.c.bf16 %v3397, %v3397
    %v3442 = vpack.c.bf16 %v3398, %v3398
    %v3443 = vpack.c.bf16 %v3399, %v3399
    %v3444 = vpack.c.bf16 %v3400, %v3400
    %v3445 = vpack.c.bf16 %v3401, %v3401
    %v3446 = vpack.c.bf16 %v3402, %v3402
    %v3447 = vpack.c.bf16 %v3403, %v3403
    %v3448 = vpack.c.bf16 %v3404, %v3404
    %v3449 = vpack.c.bf16 %v3405, %v3405
    %v3450 = vpack.c.bf16 %v3406, %v3406
    %v3451 = vpack.c.bf16 %v3407, %v3407
    %v3452 = vpack.c.bf16 %v3408, %v3408
    %v3453 = vpack.c.bf16 %v3409, %v3409
    %v3454 = vpack.c.bf16 %v3410, %v3410
    %v3455 = vpack.c.bf16 %v3411, %v3411
    %v3456 = vpack.c.bf16 %v3412, %v3412
    %v3457 = vpack.c.bf16 %v3413, %v3413
    %v3458 = vpack.c.bf16 %v3414, %v3414
    %v3459 = vpack.c.bf16 %v3415, %v3415
    %v3460 = vpack.c.bf16 %v3416, %v3416
    %v3461 = vpack.c.bf16 %v3417, %v3417
    %v3462 = vpack.c.bf16 %v3418, %v3418
    %v3463 = vpack.c.bf16 %v3419, %v3419
    %v3464 = vpack.c.bf16 %v3420, %v3420
    %v3465 = vpack.c.bf16 %v3421, %v3421
    %v3466 = vpack.c.bf16 %v3422, %v3422
    %v3499 = vunpack.c.l.b16 %v3435
    %v3500 = vunpack.c.l.b16 %v3436
    %v3501 = vunpack.c.l.b16 %v3437
    %v3502 = vunpack.c.l.b16 %v3438
    %v3503 = vunpack.c.l.b16 %v3439
    %v3504 = vunpack.c.l.b16 %v3440
    %v3505 = vunpack.c.l.b16 %v3441
    %v3506 = vunpack.c.l.b16 %v3442
    %v3507 = vunpack.c.l.b16 %v3443
    %v3508 = vunpack.c.l.b16 %v3444
    %v3509 = vunpack.c.l.b16 %v3445
    %v3510 = vunpack.c.l.b16 %v3446
    %v3511 = vunpack.c.l.b16 %v3447
    %v3512 = vunpack.c.l.b16 %v3448
    %v3513 = vunpack.c.l.b16 %v3449
    %v3514 = vunpack.c.l.b16 %v3450
    %v3515 = vunpack.c.l.b16 %v3451
    %v3516 = vunpack.c.l.b16 %v3452
    %v3517 = vunpack.c.l.b16 %v3453
    %v3518 = vunpack.c.l.b16 %v3454
    %v3519 = vunpack.c.l.b16 %v3455
    %v3520 = vunpack.c.l.b16 %v3456
    %v3521 = vunpack.c.l.b16 %v3457
    %v3522 = vunpack.c.l.b16 %v3458
    %v3523 = vunpack.c.l.b16 %v3459
    %v3524 = vunpack.c.l.b16 %v3460
    %v3525 = vunpack.c.l.b16 %v3461
    %v3526 = vunpack.c.l.b16 %v3462
    %v3527 = vunpack.c.l.b16 %v3463
    %v3528 = vunpack.c.l.b16 %v3464
    %v3529 = vunpack.c.l.b16 %v3465
    %v3530 = vunpack.c.l.b16 %v3466
    %v3531 = vpack.c.b16 %v3499, %v3499
    %v3532 = vpack.c.b16 %v3500, %v3500
    %v3533 = vpack.c.b16 %v3501, %v3501
    %v3534 = vpack.c.b16 %v3502, %v3502
    %v3535 = vpack.c.b16 %v3503, %v3503
    %v3536 = vpack.c.b16 %v3504, %v3504
    %v3537 = vpack.c.b16 %v3505, %v3505
    %v3538 = vpack.c.b16 %v3506, %v3506
    %v3539 = vpack.c.b16 %v3507, %v3507
    %v3540 = vpack.c.b16 %v3508, %v3508
    %v3541 = vpack.c.b16 %v3509, %v3509
    %v3542 = vpack.c.b16 %v3510, %v3510
    %v3543 = vpack.c.b16 %v3511, %v3511
    %v3544 = vpack.c.b16 %v3512, %v3512
    %v3545 = vpack.c.b16 %v3513, %v3513
    %v3546 = vpack.c.b16 %v3514, %v3514
    %v3547 = vpack.c.b16 %v3515, %v3515
    %v3548 = vpack.c.b16 %v3516, %v3516
    %v3549 = vpack.c.b16 %v3517, %v3517
    %v3550 = vpack.c.b16 %v3518, %v3518
    %v3551 = vpack.c.b16 %v3519, %v3519
    %v3552 = vpack.c.b16 %v3520, %v3520
    %v3553 = vpack.c.b16 %v3521, %v3521
    %v3554 = vpack.c.b16 %v3522, %v3522
    %v3555 = vpack.c.b16 %v3523, %v3523
    %v3556 = vpack.c.b16 %v3524, %v3524
    %v3557 = vpack.c.b16 %v3525, %v3525
    %v3558 = vpack.c.b16 %v3526, %v3526
    %v3559 = vpack.c.b16 %v3527, %v3527
    %v3560 = vpack.c.b16 %v3528, %v3528
    %v3561 = vpack.c.b16 %v3529, %v3529
    %v3562 = vpack.c.b16 %v3530, %v3530
    %v3563 = vunpack.c.l.b16 %v3531
    %v3564 = vunpack.c.l.b16 %v3532
    %v3565 = vunpack.c.l.b16 %v3533
    %v3566 = vunpack.c.l.b16 %v3534
    %v3567 = vunpack.c.l.b16 %v3535
    %v3568 = vunpack.c.l.b16 %v3536
    %v3569 = vunpack.c.l.b16 %v3537
    %v3570 = vunpack.c.l.b16 %v3538
    %v3571 = vunpack.c.l.b16 %v3539
    %v3572 = vunpack.c.l.b16 %v3540
    %v3573 = vunpack.c.l.b16 %v3541
    %v3574 = vunpack.c.l.b16 %v3542
    %v3575 = vunpack.c.l.b16 %v3543
    %v3576 = vunpack.c.l.b16 %v3544
    %v3577 = vunpack.c.l.b16 %v3545
    %v3578 = vunpack.c.l.b16 %v3546
    %v3579 = vunpack.c.l.b16 %v3547
    %v3580 = vunpack.c.l.b16 %v3548
    %v3581 = vunpack.c.l.b16 %v3549
    %v3582 = vunpack.c.l.b16 %v3550
    %v3583 = vunpack.c.l.b16 %v3551
    %v3584 = vunpack.c.l.b16 %v3552
    %v3585 = vunpack.c.l.b16 %v3553
    %v3586 = vunpack.c.l.b16 %v3554
    %v3587 = vunpack.c.l.b16 %v3555
    %v3588 = vunpack.c.l.b16 %v3556
    %v3589 = vunpack.c.l.b16 %v3557
    %v3590 = vunpack.c.l.b16 %v3558
    %v3591 = vunpack.c.l.b16 %v3559
    %v3592 = vunpack.c.l.b16 %v3560
    %v3593 = vunpack.c.l.b16 %v3561
    %v3594 = vunpack.c.l.b16 %v3562
    %vm3595 = vcmask 1042434
    %v3596 = vsel %vm3595, %v3564, %v3563
    %vm3597 = vcmask 1043459
    %v3598 = vsel %vm3597, %v3565, %v3596
    %vm3599 = vcmask 1044484
    %v3600 = vsel %vm3599, %v3566, %v3598
    %v3601 = vsel %vm3595, %v3568, %v3567
    %v3602 = vsel %vm3597, %v3569, %v3601
    %v3603 = vsel %vm3599, %v3570, %v3602
    %v3604 = vsel %vm3595, %v3572, %v3571
    %v3605 = vsel %vm3597, %v3573, %v3604
    %v3606 = vsel %vm3599, %v3574, %v3605
    %v3607 = vsel %vm3595, %v3576, %v3575
    %v3608 = vsel %vm3597, %v3577, %v3607
    %v3609 = vsel %vm3599, %v3578, %v3608
    %v3610 = vsel %vm3595, %v3580, %v3579
    %v3611 = vsel %vm3597, %v3581, %v3610
    %v3612 = vsel %vm3599, %v3582, %v3611
    %v3613 = vsel %vm3595, %v3584, %v3583
    %v3614 = vsel %vm3597, %v3585, %v3613
    %v3615 = vsel %vm3599, %v3586, %v3614
    %v3616 = vsel %vm3595, %v3588, %v3587
    %v3617 = vsel %vm3597, %v3589, %v3616
    %v3618 = vsel %vm3599, %v3590, %v3617
    %v3619 = vsel %vm3595, %v3592, %v3591
    %v3620 = vsel %vm3597, %v3593, %v3619
    %v3621 = vsel %vm3599, %v3594, %v3620
    %v3622 = vpack.c.b16 %v3600, %v3600
    %v3623 = vpack.c.b16 %v3603, %v3603
    %v3624 = vpack.c.b16 %v3606, %v3606
    %v3625 = vpack.c.b16 %v3609, %v3609
    %v3626 = vpack.c.b16 %v3612, %v3612
    %v3627 = vpack.c.b16 %v3615, %v3615
    %v3628 = vpack.c.b16 %v3618, %v3618
    %v3629 = vpack.c.b16 %v3621, %v3621
    %s3638 = scalar_lea.vmem [#allocation3], 4
    %vm3639 = vcmask 1042432
    %vm3640 = vsmask.f32 2306
    %vm3641 = vmand %vm3639, %vm3640
    %v3642 = vld [vmem:[%s3638] sm:$0x7]
    %v3643 = vsel %vm3641, %v3622, %v3642
    %3644 = vst [vmem:[%s3638] sm:$0x7] %v3643
    %v3645 = vld [vmem:[%s3638 + $0x4] sm:$0x7]
    %v3646 = vsel %vm3641, %v3623, %v3645
    %3647 = vst [vmem:[%s3638 + $0x4] sm:$0x7] %v3646
    %v3648 = vld [vmem:[%s3638 + $0x8] sm:$0x7]
    %v3649 = vsel %vm3641, %v3624, %v3648
    %3650 = vst [vmem:[%s3638 + $0x8] sm:$0x7] %v3649
    %v3651 = vld [vmem:[%s3638 + $0xc] sm:$0x7]
    %v3652 = vsel %vm3641, %v3625, %v3651
    %3653 = vst [vmem:[%s3638 + $0xc] sm:$0x7] %v3652
    %v3654 = vld [vmem:[%s3638 + $0x18] sm:$0x7]
    %v3655 = vsel %vm3641, %v3626, %v3654
    %3656 = vst [vmem:[%s3638 + $0x18] sm:$0x7] %v3655
    %v3657 = vld [vmem:[%s3638 + $0x1c] sm:$0x7]
    %v3658 = vsel %vm3641, %v3627, %v3657
    %3659 = vst [vmem:[%s3638 + $0x1c] sm:$0x7] %v3658
    %v3660 = vld [vmem:[%s3638 + $0x20] sm:$0x7]
    %v3661 = vsel %vm3641, %v3628, %v3660
    %3662 = vst [vmem:[%s3638 + $0x20] sm:$0x7] %v3661
    %v3663 = vld [vmem:[%s3638 + $0x24] sm:$0x7]
    %v3664 = vsel %vm3641, %v3629, %v3663
    %3665 = vst [vmem:[%s3638 + $0x24] sm:$0x7] %v3664
    %v3666 = vld [vmem:[#allocation3] sm:$0x3]
    %v3667 = vld [vmem:[#allocation3 + $0x4] sm:$0x3]
    %v3668 = vld [vmem:[#allocation3 + $0x8] sm:$0x3]
    %v3669 = vld [vmem:[#allocation3 + $0xc] sm:$0x3]
    %v3670 = vld [vmem:[#allocation3 + $0x18] sm:$0x3]
    %v3671 = vld [vmem:[#allocation3 + $0x1c] sm:$0x3]
    %v3672 = vld [vmem:[#allocation3 + $0x20] sm:$0x3]
    %v3673 = vld [vmem:[#allocation3 + $0x24] sm:$0x3]
    %v3674 = vld [vmem:[#allocation3] sm:$0x7]
    %v3675 = vld [vmem:[#allocation3 + $0x4] sm:$0x7]
    %v3676 = vld [vmem:[#allocation3 + $0x8] sm:$0x7]
    %v3677 = vld [vmem:[#allocation3 + $0xc] sm:$0x7]
    %v3678 = vld [vmem:[#allocation3 + $0x18] sm:$0x7]
    %v3679 = vld [vmem:[#allocation3 + $0x1c] sm:$0x7]
    %v3680 = vld [vmem:[#allocation3 + $0x20] sm:$0x7]
    %v3681 = vld [vmem:[#allocation3 + $0x24] sm:$0x7]
    %v3682 = vld [vmem:[#allocation3] sm:$0x6]
    %v3683 = vld [vmem:[#allocation3 + $0x4] sm:$0x6]
    %v3684 = vld [vmem:[#allocation3 + $0x8] sm:$0x6]
    %v3685 = vld [vmem:[#allocation3 + $0xc] sm:$0x6]
    %v3686 = vld [vmem:[#allocation3 + $0x18] sm:$0x6]
    %v3687 = vld [vmem:[#allocation3 + $0x1c] sm:$0x6]
    %v3688 = vld [vmem:[#allocation3 + $0x20] sm:$0x6]
    %v3689 = vld [vmem:[#allocation3 + $0x24] sm:$0x6]
    %v3690 = vld [vmem:[%s3638] sm:$0x3]
    %v3691 = vld [vmem:[%s3638 + $0x4] sm:$0x3]
    %v3692 = vld [vmem:[%s3638 + $0x8] sm:$0x3]
    %v3693 = vld [vmem:[%s3638 + $0xc] sm:$0x3]
    %v3694 = vld [vmem:[%s3638 + $0x18] sm:$0x3]
    %v3695 = vld [vmem:[%s3638 + $0x1c] sm:$0x3]
    %v3696 = vld [vmem:[%s3638 + $0x20] sm:$0x3]
    %v3697 = vld [vmem:[%s3638 + $0x24] sm:$0x3]
    %v3698 = vld [vmem:[%s3638] sm:$0x7]
    %v3699 = vld [vmem:[%s3638 + $0x4] sm:$0x7]
    %v3700 = vld [vmem:[%s3638 + $0x8] sm:$0x7]
    %v3701 = vld [vmem:[%s3638 + $0xc] sm:$0x7]
    %v3702 = vld [vmem:[%s3638 + $0x18] sm:$0x7]
    %v3703 = vld [vmem:[%s3638 + $0x1c] sm:$0x7]
    %v3704 = vld [vmem:[%s3638 + $0x20] sm:$0x7]
    %v3705 = vld [vmem:[%s3638 + $0x24] sm:$0x7]
    %v3706 = vld [vmem:[%s3638] sm:$0x6]
    %v3707 = vld [vmem:[%s3638 + $0x4] sm:$0x6]
    %v3708 = vld [vmem:[%s3638 + $0x8] sm:$0x6]
    %v3709 = vld [vmem:[%s3638 + $0xc] sm:$0x6]
    %v3710 = vld [vmem:[%s3638 + $0x18] sm:$0x6]
    %v3711 = vld [vmem:[%s3638 + $0x1c] sm:$0x6]
    %v3712 = vld [vmem:[%s3638 + $0x20] sm:$0x6]
    %v3713 = vld [vmem:[%s3638 + $0x24] sm:$0x6]
    %s3714 = scalar_lea.vmem [#allocation3], 8
    %v3715 = vld [vmem:[%s3714] sm:$0x3]
    %v3716 = vld [vmem:[%s3714 + $0x4] sm:$0x3]
    %v3717 = vld [vmem:[%s3714 + $0x8] sm:$0x3]
    %v3718 = vld [vmem:[%s3714 + $0xc] sm:$0x3]
    %v3719 = vld [vmem:[%s3714 + $0x18] sm:$0x3]
    %v3720 = vld [vmem:[%s3714 + $0x1c] sm:$0x3]
    %v3721 = vld [vmem:[%s3714 + $0x20] sm:$0x3]
    %v3722 = vld [vmem:[%s3714 + $0x24] sm:$0x3]
    %v3723 = vld [vmem:[%s3714] sm:$0x7]
    %v3724 = vld [vmem:[%s3714 + $0x4] sm:$0x7]
    %v3725 = vld [vmem:[%s3714 + $0x8] sm:$0x7]
    %v3726 = vld [vmem:[%s3714 + $0xc] sm:$0x7]
    %v3727 = vld [vmem:[%s3714 + $0x18] sm:$0x7]
    %v3728 = vld [vmem:[%s3714 + $0x1c] sm:$0x7]
    %v3729 = vld [vmem:[%s3714 + $0x20] sm:$0x7]
    %v3730 = vld [vmem:[%s3714 + $0x24] sm:$0x7]
    %v3731 = vld [vmem:[%s3714] sm:$0x6]
    %v3732 = vld [vmem:[%s3714 + $0x4] sm:$0x6]
    %v3733 = vld [vmem:[%s3714 + $0x8] sm:$0x6]
    %v3734 = vld [vmem:[%s3714 + $0xc] sm:$0x6]
    %v3735 = vld [vmem:[%s3714 + $0x18] sm:$0x6]
    %v3736 = vld [vmem:[%s3714 + $0x1c] sm:$0x6]
    %v3737 = vld [vmem:[%s3714 + $0x20] sm:$0x6]
    %v3738 = vld [vmem:[%s3714 + $0x24] sm:$0x6]
    %v3747 = vunpack.c.l.b16 %v3674
    %v3748 = vunpack.c.l.b16 %v3675
    %v3749 = vunpack.c.l.b16 %v3676
    %v3750 = vunpack.c.l.b16 %v3677
    %v3751 = vunpack.c.l.b16 %v3678
    %v3752 = vunpack.c.l.b16 %v3679
    %v3753 = vunpack.c.l.b16 %v3680
    %v3754 = vunpack.c.l.b16 %v3681
    %v3755 = vpack.c.b16 %v3747, %v3747
    %v3756 = vpack.c.b16 %v3748, %v3748
    %v3757 = vpack.c.b16 %v3749, %v3749
    %v3758 = vpack.c.b16 %v3750, %v3750
    %v3759 = vpack.c.b16 %v3751, %v3751
    %v3760 = vpack.c.b16 %v3752, %v3752
    %v3761 = vpack.c.b16 %v3753, %v3753
    %v3762 = vpack.c.b16 %v3754, %v3754
    %v3764 = vshrl.u32 %v3755, 16
    %v3766 = vshll.u32 %v3755, 16
    %v3768 = vrot.slane %v3766, 1
    %v3769 = vor.u32 %v3764, %v3768
    %v3771 = vshrl.u32 %v3756, 16
    %v3773 = vshll.u32 %v3756, 16
    %v3775 = vrot.slane %v3773, 1
    %v3776 = vor.u32 %v3771, %v3775
    %v3778 = vshrl.u32 %v3757, 16
    %v3780 = vshll.u32 %v3757, 16
    %v3782 = vrot.slane %v3780, 1
    %v3783 = vor.u32 %v3778, %v3782
    %v3785 = vshrl.u32 %v3758, 16
    %v3787 = vshll.u32 %v3758, 16
    %v3789 = vrot.slane %v3787, 1
    %v3790 = vor.u32 %v3785, %v3789
    %v3792 = vshrl.u32 %v3759, 16
    %v3794 = vshll.u32 %v3759, 16
    %v3796 = vrot.slane %v3794, 1
    %v3797 = vor.u32 %v3792, %v3796
    %v3799 = vshrl.u32 %v3760, 16
    %v3801 = vshll.u32 %v3760, 16
    %v3803 = vrot.slane %v3801, 1
    %v3804 = vor.u32 %v3799, %v3803
    %v3806 = vshrl.u32 %v3761, 16
    %v3808 = vshll.u32 %v3761, 16
    %v3810 = vrot.slane %v3808, 1
    %v3811 = vor.u32 %v3806, %v3810
    %v3813 = vshrl.u32 %v3762, 16
    %v3815 = vshll.u32 %v3762, 16
    %v3817 = vrot.slane %v3815, 1
    %v3818 = vor.u32 %v3813, %v3817
    %v3827 = vunpack.c.l.b16 %v3682
    %v3828 = vunpack.c.l.b16 %v3683
    %v3829 = vunpack.c.l.b16 %v3684
    %v3830 = vunpack.c.l.b16 %v3685
    %v3831 = vunpack.c.l.b16 %v3686
    %v3832 = vunpack.c.l.b16 %v3687
    %v3833 = vunpack.c.l.b16 %v3688
    %v3834 = vunpack.c.l.b16 %v3689
    %v3835 = vpack.c.b16 %v3827, %v3827
    %v3836 = vpack.c.b16 %v3828, %v3828
    %v3837 = vpack.c.b16 %v3829, %v3829
    %v3838 = vpack.c.b16 %v3830, %v3830
    %v3839 = vpack.c.b16 %v3831, %v3831
    %v3840 = vpack.c.b16 %v3832, %v3832
    %v3841 = vpack.c.b16 %v3833, %v3833
    %v3842 = vpack.c.b16 %v3834, %v3834
    %v3843 = vrot.slane %v3835, 1
    %v3844 = vrot.slane %v3836, 1
    %v3845 = vrot.slane %v3837, 1
    %v3846 = vrot.slane %v3838, 1
    %v3847 = vrot.slane %v3839, 1
    %v3848 = vrot.slane %v3840, 1
    %v3849 = vrot.slane %v3841, 1
    %v3850 = vrot.slane %v3842, 1
    %v3859 = vunpack.c.l.b16 %v3698
    %v3860 = vunpack.c.l.b16 %v3699
    %v3861 = vunpack.c.l.b16 %v3700
    %v3862 = vunpack.c.l.b16 %v3701
    %v3863 = vunpack.c.l.b16 %v3702
    %v3864 = vunpack.c.l.b16 %v3703
    %v3865 = vunpack.c.l.b16 %v3704
    %v3866 = vunpack.c.l.b16 %v3705
    %v3867 = vpack.c.b16 %v3859, %v3859
    %v3868 = vpack.c.b16 %v3860, %v3860
    %v3869 = vpack.c.b16 %v3861, %v3861
    %v3870 = vpack.c.b16 %v3862, %v3862
    %v3871 = vpack.c.b16 %v3863, %v3863
    %v3872 = vpack.c.b16 %v3864, %v3864
    %v3873 = vpack.c.b16 %v3865, %v3865
    %v3874 = vpack.c.b16 %v3866, %v3866
    %v3876 = vshrl.u32 %v3867, 16
    %v3878 = vshll.u32 %v3867, 16
    %v3880 = vrot.slane %v3878, 1
    %v3881 = vor.u32 %v3876, %v3880
    %v3883 = vshrl.u32 %v3868, 16
    %v3885 = vshll.u32 %v3868, 16
    %v3887 = vrot.slane %v3885, 1
    %v3888 = vor.u32 %v3883, %v3887
    %v3890 = vshrl.u32 %v3869, 16
    %v3892 = vshll.u32 %v3869, 16
    %v3894 = vrot.slane %v3892, 1
    %v3895 = vor.u32 %v3890, %v3894
    %v3897 = vshrl.u32 %v3870, 16
    %v3899 = vshll.u32 %v3870, 16
    %v3901 = vrot.slane %v3899, 1
    %v3902 = vor.u32 %v3897, %v3901
    %v3904 = vshrl.u32 %v3871, 16
    %v3906 = vshll.u32 %v3871, 16
    %v3908 = vrot.slane %v3906, 1
    %v3909 = vor.u32 %v3904, %v3908
    %v3911 = vshrl.u32 %v3872, 16
    %v3913 = vshll.u32 %v3872, 16
    %v3915 = vrot.slane %v3913, 1
    %v3916 = vor.u32 %v3911, %v3915
    %v3918 = vshrl.u32 %v3873, 16
    %v3920 = vshll.u32 %v3873, 16
    %v3922 = vrot.slane %v3920, 1
    %v3923 = vor.u32 %v3918, %v3922
    %v3925 = vshrl.u32 %v3874, 16
    %v3927 = vshll.u32 %v3874, 16
    %v3929 = vrot.slane %v3927, 1
    %v3930 = vor.u32 %v3925, %v3929
    %v3939 = vunpack.c.l.b16 %v3706
    %v3940 = vunpack.c.l.b16 %v3707
    %v3941 = vunpack.c.l.b16 %v3708
    %v3942 = vunpack.c.l.b16 %v3709
    %v3943 = vunpack.c.l.b16 %v3710
    %v3944 = vunpack.c.l.b16 %v3711
    %v3945 = vunpack.c.l.b16 %v3712
    %v3946 = vunpack.c.l.b16 %v3713
    %v3947 = vpack.c.b16 %v3939, %v3939
    %v3948 = vpack.c.b16 %v3940, %v3940
    %v3949 = vpack.c.b16 %v3941, %v3941
    %v3950 = vpack.c.b16 %v3942, %v3942
    %v3951 = vpack.c.b16 %v3943, %v3943
    %v3952 = vpack.c.b16 %v3944, %v3944
    %v3953 = vpack.c.b16 %v3945, %v3945
    %v3954 = vpack.c.b16 %v3946, %v3946
    %v3955 = vrot.slane %v3947, 1
    %v3956 = vrot.slane %v3948, 1
    %v3957 = vrot.slane %v3949, 1
    %v3958 = vrot.slane %v3950, 1
    %v3959 = vrot.slane %v3951, 1
    %v3960 = vrot.slane %v3952, 1
    %v3961 = vrot.slane %v3953, 1
    %v3962 = vrot.slane %v3954, 1
    %v3971 = vunpack.c.l.b16 %v3723
    %v3972 = vunpack.c.l.b16 %v3724
    %v3973 = vunpack.c.l.b16 %v3725
    %v3974 = vunpack.c.l.b16 %v3726
    %v3975 = vunpack.c.l.b16 %v3727
    %v3976 = vunpack.c.l.b16 %v3728
    %v3977 = vunpack.c.l.b16 %v3729
    %v3978 = vunpack.c.l.b16 %v3730
    %v3979 = vpack.c.b16 %v3971, %v3971
    %v3980 = vpack.c.b16 %v3972, %v3972
    %v3981 = vpack.c.b16 %v3973, %v3973
    %v3982 = vpack.c.b16 %v3974, %v3974
    %v3983 = vpack.c.b16 %v3975, %v3975
    %v3984 = vpack.c.b16 %v3976, %v3976
    %v3985 = vpack.c.b16 %v3977, %v3977
    %v3986 = vpack.c.b16 %v3978, %v3978
    %v3988 = vshrl.u32 %v3979, 16
    %v3990 = vshll.u32 %v3979, 16
    %v3992 = vrot.slane %v3990, 1
    %v3993 = vor.u32 %v3988, %v3992
    %v3995 = vshrl.u32 %v3980, 16
    %v3997 = vshll.u32 %v3980, 16
    %v3999 = vrot.slane %v3997, 1
    %v4000 = vor.u32 %v3995, %v3999
    %v4002 = vshrl.u32 %v3981, 16
    %v4004 = vshll.u32 %v3981, 16
    %v4006 = vrot.slane %v4004, 1
    %v4007 = vor.u32 %v4002, %v4006
    %v4009 = vshrl.u32 %v3982, 16
    %v4011 = vshll.u32 %v3982, 16
    %v4013 = vrot.slane %v4011, 1
    %v4014 = vor.u32 %v4009, %v4013
    %v4016 = vshrl.u32 %v3983, 16
    %v4018 = vshll.u32 %v3983, 16
    %v4020 = vrot.slane %v4018, 1
    %v4021 = vor.u32 %v4016, %v4020
    %v4023 = vshrl.u32 %v3984, 16
    %v4025 = vshll.u32 %v3984, 16
    %v4027 = vrot.slane %v4025, 1
    %v4028 = vor.u32 %v4023, %v4027
    %v4030 = vshrl.u32 %v3985, 16
    %v4032 = vshll.u32 %v3985, 16
    %v4034 = vrot.slane %v4032, 1
    %v4035 = vor.u32 %v4030, %v4034
    %v4037 = vshrl.u32 %v3986, 16
    %v4039 = vshll.u32 %v3986, 16
    %v4041 = vrot.slane %v4039, 1
    %v4042 = vor.u32 %v4037, %v4041
    %v4051 = vunpack.c.l.b16 %v3731
    %v4052 = vunpack.c.l.b16 %v3732
    %v4053 = vunpack.c.l.b16 %v3733
    %v4054 = vunpack.c.l.b16 %v3734
    %v4055 = vunpack.c.l.b16 %v3735
    %v4056 = vunpack.c.l.b16 %v3736
    %v4057 = vunpack.c.l.b16 %v3737
    %v4058 = vunpack.c.l.b16 %v3738
    %v4059 = vpack.c.b16 %v4051, %v4051
    %v4060 = vpack.c.b16 %v4052, %v4052
    %v4061 = vpack.c.b16 %v4053, %v4053
    %v4062 = vpack.c.b16 %v4054, %v4054
    %v4063 = vpack.c.b16 %v4055, %v4055
    %v4064 = vpack.c.b16 %v4056, %v4056
    %v4065 = vpack.c.b16 %v4057, %v4057
    %v4066 = vpack.c.b16 %v4058, %v4058
    %v4067 = vrot.slane %v4059, 1
    %v4068 = vrot.slane %v4060, 1
    %v4069 = vrot.slane %v4061, 1
    %v4070 = vrot.slane %v4062, 1
    %v4071 = vrot.slane %v4063, 1
    %v4072 = vrot.slane %v4064, 1
    %v4073 = vrot.slane %v4065, 1
    %v4074 = vrot.slane %v4066, 1
    %v4099 = vcombine.low %v3666, %v3769
    %v4100 = vcombine.low %v3843, %v3690
    %v4102 = vunpack.c.l.s4 1983009808
    %v4103 = vunpack.c.0.s8 %v4102
    %v4104 = vlaneseq
    %v4105 = vshrl.u32 %v4104, 7
    %v4106 = vsub.s32 %v4103, %v4105
    %v4107 = vrot.slane %v4099, %v4106
    %v4109 = vunpack.c.l.s4 1983009808
    %v4110 = vunpack.c.0.s8 %v4109
    %v4111 = vlaneseq
    %v4112 = vshrl.u32 %v4111, 7
    %v4113 = vsub.s32 %v4110, %v4112
    %v4114 = vrot.slane %v4100, %v4113
    %v4115 = vcombine.low %v4107, %v4114
    %v4116 = vcombine.low %v3881, %v3955
    %v4117 = vcombine.low %v3715, %v3993
    %v4119 = vunpack.c.l.s4 1983009808
    %v4120 = vunpack.c.0.s8 %v4119
    %v4121 = vlaneseq
    %v4122 = vshrl.u32 %v4121, 7
    %v4123 = vsub.s32 %v4120, %v4122
    %v4124 = vrot.slane %v4116, %v4123
    %v4126 = vunpack.c.l.s4 1983009808
    %v4127 = vunpack.c.0.s8 %v4126
    %v4128 = vlaneseq
    %v4129 = vshrl.u32 %v4128, 7
    %v4130 = vsub.s32 %v4127, %v4129
    %v4131 = vrot.slane %v4117, %v4130
    %v4132 = vcombine.low %v4124, %v4131
    %v4134 = vunpack.c.l.s4 1983009808
    %v4135 = vunpack.c.0.s8 %v4134
    %v4136 = vlaneseq
    %v4137 = vshrl.u32 %v4136, 7
    %v4138 = vsub.s32 %v4135, %v4137
    %v4139 = vrot.slane %v4067, %v4138
    %v4140 = vcombine.low %v3667, %v3776
    %v4141 = vcombine.low %v3844, %v3691
    %v4143 = vunpack.c.l.s4 1983009808
    %v4144 = vunpack.c.0.s8 %v4143
    %v4145 = vlaneseq
    %v4146 = vshrl.u32 %v4145, 7
    %v4147 = vsub.s32 %v4144, %v4146
    %v4148 = vrot.slane %v4140, %v4147
    %v4150 = vunpack.c.l.s4 1983009808
    %v4151 = vunpack.c.0.s8 %v4150
    %v4152 = vlaneseq
    %v4153 = vshrl.u32 %v4152, 7
    %v4154 = vsub.s32 %v4151, %v4153
    %v4155 = vrot.slane %v4141, %v4154
    %v4156 = vcombine.low %v4148, %v4155
    %v4157 = vcombine.low %v3888, %v3956
    %v4158 = vcombine.low %v3716, %v4000
    %v4160 = vunpack.c.l.s4 1983009808
    %v4161 = vunpack.c.0.s8 %v4160
    %v4162 = vlaneseq
    %v4163 = vshrl.u32 %v4162, 7
    %v4164 = vsub.s32 %v4161, %v4163
    %v4165 = vrot.slane %v4157, %v4164
    %v4167 = vunpack.c.l.s4 1983009808
    %v4168 = vunpack.c.0.s8 %v4167
    %v4169 = vlaneseq
    %v4170 = vshrl.u32 %v4169, 7
    %v4171 = vsub.s32 %v4168, %v4170
    %v4172 = vrot.slane %v4158, %v4171
    %v4173 = vcombine.low %v4165, %v4172
    %v4175 = vunpack.c.l.s4 1983009808
    %v4176 = vunpack.c.0.s8 %v4175
    %v4177 = vlaneseq
    %v4178 = vshrl.u32 %v4177, 7
    %v4179 = vsub.s32 %v4176, %v4178
    %v4180 = vrot.slane %v4068, %v4179
    %v4181 = vcombine.low %v3668, %v3783
    %v4182 = vcombine.low %v3845, %v3692
    %v4184 = vunpack.c.l.s4 1983009808
    %v4185 = vunpack.c.0.s8 %v4184
    %v4186 = vlaneseq
    %v4187 = vshrl.u32 %v4186, 7
    %v4188 = vsub.s32 %v4185, %v4187
    %v4189 = vrot.slane %v4181, %v4188
    %v4191 = vunpack.c.l.s4 1983009808
    %v4192 = vunpack.c.0.s8 %v4191
    %v4193 = vlaneseq
    %v4194 = vshrl.u32 %v4193, 7
    %v4195 = vsub.s32 %v4192, %v4194
    %v4196 = vrot.slane %v4182, %v4195
    %v4197 = vcombine.low %v4189, %v4196
    %v4198 = vcombine.low %v3895, %v3957
    %v4199 = vcombine.low %v3717, %v4007
    %v4201 = vunpack.c.l.s4 1983009808
    %v4202 = vunpack.c.0.s8 %v4201
    %v4203 = vlaneseq
    %v4204 = vshrl.u32 %v4203, 7
    %v4205 = vsub.s32 %v4202, %v4204
    %v4206 = vrot.slane %v4198, %v4205
    %v4208 = vunpack.c.l.s4 1983009808
    %v4209 = vunpack.c.0.s8 %v4208
    %v4210 = vlaneseq
    %v4211 = vshrl.u32 %v4210, 7
    %v4212 = vsub.s32 %v4209, %v4211
    %v4213 = vrot.slane %v4199, %v4212
    %v4214 = vcombine.low %v4206, %v4213
    %v4216 = vunpack.c.l.s4 1983009808
    %v4217 = vunpack.c.0.s8 %v4216
    %v4218 = vlaneseq
    %v4219 = vshrl.u32 %v4218, 7
    %v4220 = vsub.s32 %v4217, %v4219
    %v4221 = vrot.slane %v4069, %v4220
    %v4222 = vcombine.low %v3669, %v3790
    %v4223 = vcombine.low %v3846, %v3693
    %v4225 = vunpack.c.l.s4 1983009808
    %v4226 = vunpack.c.0.s8 %v4225
    %v4227 = vlaneseq
    %v4228 = vshrl.u32 %v4227, 7
    %v4229 = vsub.s32 %v4226, %v4228
    %v4230 = vrot.slane %v4222, %v4229
    %v4232 = vunpack.c.l.s4 1983009808
    %v4233 = vunpack.c.0.s8 %v4232
    %v4234 = vlaneseq
    %v4235 = vshrl.u32 %v4234, 7
    %v4236 = vsub.s32 %v4233, %v4235
    %v4237 = vrot.slane %v4223, %v4236
    %v4238 = vcombine.low %v4230, %v4237
    %v4239 = vcombine.low %v3902, %v3958
    %v4240 = vcombine.low %v3718, %v4014
    %v4242 = vunpack.c.l.s4 1983009808
    %v4243 = vunpack.c.0.s8 %v4242
    %v4244 = vlaneseq
    %v4245 = vshrl.u32 %v4244, 7
    %v4246 = vsub.s32 %v4243, %v4245
    %v4247 = vrot.slane %v4239, %v4246
    %v4249 = vunpack.c.l.s4 1983009808
    %v4250 = vunpack.c.0.s8 %v4249
    %v4251 = vlaneseq
    %v4252 = vshrl.u32 %v4251, 7
    %v4253 = vsub.s32 %v4250, %v4252
    %v4254 = vrot.slane %v4240, %v4253
    %v4255 = vcombine.low %v4247, %v4254
    %v4257 = vunpack.c.l.s4 1983009808
    %v4258 = vunpack.c.0.s8 %v4257
    %v4259 = vlaneseq
    %v4260 = vshrl.u32 %v4259, 7
    %v4261 = vsub.s32 %v4258, %v4260
    %v4262 = vrot.slane %v4070, %v4261
    %v4263 = vcombine.low %v3670, %v3797
    %v4264 = vcombine.low %v3847, %v3694
    %v4266 = vunpack.c.l.s4 1983009808
    %v4267 = vunpack.c.0.s8 %v4266
    %v4268 = vlaneseq
    %v4269 = vshrl.u32 %v4268, 7
    %v4270 = vsub.s32 %v4267, %v4269
    %v4271 = vrot.slane %v4263, %v4270
    %v4273 = vunpack.c.l.s4 1983009808
    %v4274 = vunpack.c.0.s8 %v4273
    %v4275 = vlaneseq
    %v4276 = vshrl.u32 %v4275, 7
    %v4277 = vsub.s32 %v4274, %v4276
    %v4278 = vrot.slane %v4264, %v4277
    %v4279 = vcombine.low %v4271, %v4278
    %v4280 = vcombine.low %v3909, %v3959
    %v4281 = vcombine.low %v3719, %v4021
    %v4283 = vunpack.c.l.s4 1983009808
    %v4284 = vunpack.c.0.s8 %v4283
    %v4285 = vlaneseq
    %v4286 = vshrl.u32 %v4285, 7
    %v4287 = vsub.s32 %v4284, %v4286
    %v4288 = vrot.slane %v4280, %v4287
    %v4290 = vunpack.c.l.s4 1983009808
    %v4291 = vunpack.c.0.s8 %v4290
    %v4292 = vlaneseq
    %v4293 = vshrl.u32 %v4292, 7
    %v4294 = vsub.s32 %v4291, %v4293
    %v4295 = vrot.slane %v4281, %v4294
    %v4296 = vcombine.low %v4288, %v4295
    %v4298 = vunpack.c.l.s4 1983009808
    %v4299 = vunpack.c.0.s8 %v4298
    %v4300 = vlaneseq
    %v4301 = vshrl.u32 %v4300, 7
    %v4302 = vsub.s32 %v4299, %v4301
    %v4303 = vrot.slane %v4071, %v4302
    %v4304 = vcombine.low %v3671, %v3804
    %v4305 = vcombine.low %v3848, %v3695
    %v4307 = vunpack.c.l.s4 1983009808
    %v4308 = vunpack.c.0.s8 %v4307
    %v4309 = vlaneseq
    %v4310 = vshrl.u32 %v4309, 7
    %v4311 = vsub.s32 %v4308, %v4310
    %v4312 = vrot.slane %v4304, %v4311
    %v4314 = vunpack.c.l.s4 1983009808
    %v4315 = vunpack.c.0.s8 %v4314
    %v4316 = vlaneseq
    %v4317 = vshrl.u32 %v4316, 7
    %v4318 = vsub.s32 %v4315, %v4317
    %v4319 = vrot.slane %v4305, %v4318
    %v4320 = vcombine.low %v4312, %v4319
    %v4321 = vcombine.low %v3916, %v3960
    %v4322 = vcombine.low %v3720, %v4028
    %v4324 = vunpack.c.l.s4 1983009808
    %v4325 = vunpack.c.0.s8 %v4324
    %v4326 = vlaneseq
    %v4327 = vshrl.u32 %v4326, 7
    %v4328 = vsub.s32 %v4325, %v4327
    %v4329 = vrot.slane %v4321, %v4328
    %v4331 = vunpack.c.l.s4 1983009808
    %v4332 = vunpack.c.0.s8 %v4331
    %v4333 = vlaneseq
    %v4334 = vshrl.u32 %v4333, 7
    %v4335 = vsub.s32 %v4332, %v4334
    %v4336 = vrot.slane %v4322, %v4335
    %v4337 = vcombine.low %v4329, %v4336
    %v4339 = vunpack.c.l.s4 1983009808
    %v4340 = vunpack.c.0.s8 %v4339
    %v4341 = vlaneseq
    %v4342 = vshrl.u32 %v4341, 7
    %v4343 = vsub.s32 %v4340, %v4342
    %v4344 = vrot.slane %v4072, %v4343
    %v4345 = vcombine.low %v3672, %v3811
    %v4346 = vcombine.low %v3849, %v3696
    %v4348 = vunpack.c.l.s4 1983009808
    %v4349 = vunpack.c.0.s8 %v4348
    %v4350 = vlaneseq
    %v4351 = vshrl.u32 %v4350, 7
    %v4352 = vsub.s32 %v4349, %v4351
    %v4353 = vrot.slane %v4345, %v4352
    %v4355 = vunpack.c.l.s4 1983009808
    %v4356 = vunpack.c.0.s8 %v4355
    %v4357 = vlaneseq
    %v4358 = vshrl.u32 %v4357, 7
    %v4359 = vsub.s32 %v4356, %v4358
    %v4360 = vrot.slane %v4346, %v4359
    %v4361 = vcombine.low %v4353, %v4360
    %v4362 = vcombine.low %v3923, %v3961
    %v4363 = vcombine.low %v3721, %v4035
    %v4365 = vunpack.c.l.s4 1983009808
    %v4366 = vunpack.c.0.s8 %v4365
    %v4367 = vlaneseq
    %v4368 = vshrl.u32 %v4367, 7
    %v4369 = vsub.s32 %v4366, %v4368
    %v4370 = vrot.slane %v4362, %v4369
    %v4372 = vunpack.c.l.s4 1983009808
    %v4373 = vunpack.c.0.s8 %v4372
    %v4374 = vlaneseq
    %v4375 = vshrl.u32 %v4374, 7
    %v4376 = vsub.s32 %v4373, %v4375
    %v4377 = vrot.slane %v4363, %v4376
    %v4378 = vcombine.low %v4370, %v4377
    %v4380 = vunpack.c.l.s4 1983009808
    %v4381 = vunpack.c.0.s8 %v4380
    %v4382 = vlaneseq
    %v4383 = vshrl.u32 %v4382, 7
    %v4384 = vsub.s32 %v4381, %v4383
    %v4385 = vrot.slane %v4073, %v4384
    %v4386 = vcombine.low %v3673, %v3818
    %v4387 = vcombine.low %v3850, %v3697
    %v4389 = vunpack.c.l.s4 1983009808
    %v4390 = vunpack.c.0.s8 %v4389
    %v4391 = vlaneseq
    %v4392 = vshrl.u32 %v4391, 7
    %v4393 = vsub.s32 %v4390, %v4392
    %v4394 = vrot.slane %v4386, %v4393
    %v4396 = vunpack.c.l.s4 1983009808
    %v4397 = vunpack.c.0.s8 %v4396
    %v4398 = vlaneseq
    %v4399 = vshrl.u32 %v4398, 7
    %v4400 = vsub.s32 %v4397, %v4399
    %v4401 = vrot.slane %v4387, %v4400
    %v4402 = vcombine.low %v4394, %v4401
    %v4403 = vcombine.low %v3930, %v3962
    %v4404 = vcombine.low %v3722, %v4042
    %v4406 = vunpack.c.l.s4 1983009808
    %v4407 = vunpack.c.0.s8 %v4406
    %v4408 = vlaneseq
    %v4409 = vshrl.u32 %v4408, 7
    %v4410 = vsub.s32 %v4407, %v4409
    %v4411 = vrot.slane %v4403, %v4410
    %v4413 = vunpack.c.l.s4 1983009808
    %v4414 = vunpack.c.0.s8 %v4413
    %v4415 = vlaneseq
    %v4416 = vshrl.u32 %v4415, 7
    %v4417 = vsub.s32 %v4414, %v4416
    %v4418 = vrot.slane %v4404, %v4417
    %v4419 = vcombine.low %v4411, %v4418
    %v4421 = vunpack.c.l.s4 1983009808
    %v4422 = vunpack.c.0.s8 %v4421
    %v4423 = vlaneseq
    %v4424 = vshrl.u32 %v4423, 7
    %v4425 = vsub.s32 %v4422, %v4424
    %v4426 = vrot.slane %v4074, %v4425
    %v4427 = vld [vmem:[%s3] sm:$0xf]
    %v4428 = vld [vmem:[%s3 + $0x4] sm:$0xf]
    %v4429 = vld [vmem:[%s3 + $0x8] sm:$0xf]
    %v4430 = vld [vmem:[%s3 + $0xc] sm:$0xf]
    %v4431 = vld [vmem:[%s3 + $0x10] sm:$0xf]
    %v4432 = vld [vmem:[%s3 + $0x14] sm:$0xf]
    %v4433 = vld [vmem:[%s3 + $0x18] sm:$0xf]
    %v4434 = vld [vmem:[%s3 + $0x1c] sm:$0xf]
    %v4435 = vld [vmem:[%s3 + $0x20] sm:$0xf]
    %v4436 = vld [vmem:[%s3 + $0x24] sm:$0xf]
    %v4437 = vld [vmem:[%s3 + $0x28] sm:$0xf]
    %v4438 = vld [vmem:[%s3 + $0x2c] sm:$0xf]
    %v4439 = vld [vmem:[%s3 + $0x30] sm:$0xf]
    %v4440 = vld [vmem:[%s3 + $0x34] sm:$0xf]
    %v4441 = vld [vmem:[%s3 + $0x38] sm:$0xf]
    %v4442 = vld [vmem:[%s3 + $0x3c] sm:$0xf]
    %v4443 = vld [vmem:[%s3 + $0x40] sm:$0xf]
    %v4444 = vld [vmem:[%s3 + $0x44] sm:$0xf]
    %v4445 = vld [vmem:[%s3 + $0x48] sm:$0xf]
    %v4446 = vld [vmem:[%s3 + $0x4c] sm:$0xf]
    %v4447 = vld [vmem:[%s3 + $0x50] sm:$0xf]
    %v4448 = vld [vmem:[%s3 + $0x54] sm:$0xf]
    %v4449 = vld [vmem:[%s3 + $0x58] sm:$0xf]
    %v4450 = vld [vmem:[%s3 + $0x5c] sm:$0xf]
    %v4451 = vld [vmem:[%s3 + $0x60] sm:$0xf]
    %v4452 = vld [vmem:[%s3 + $0x64] sm:$0xf]
    %v4453 = vld [vmem:[%s3 + $0x68] sm:$0xf]
    %v4454 = vld [vmem:[%s3 + $0x6c] sm:$0xf]
    %v4455 = vld [vmem:[%s3 + $0x70] sm:$0xf]
    %v4456 = vld [vmem:[%s3 + $0x74] sm:$0xf]
    %v4457 = vld [vmem:[%s3 + $0x78] sm:$0xf]
    %v4458 = vld [vmem:[%s3 + $0x7c] sm:$0xf]
    %v4459 = vld [vmem:[%s3 + $0x80] sm:$0xf]
    %v4460 = vld [vmem:[%s3 + $0x84] sm:$0xf]
    %v4461 = vld [vmem:[%s3 + $0x88] sm:$0xf]
    %v4462 = vld [vmem:[%s3 + $0x8c] sm:$0xf]
    %v4463 = vld [vmem:[%s3 + $0x90] sm:$0xf]
    %v4464 = vld [vmem:[%s3 + $0x94] sm:$0xf]
    %v4465 = vld [vmem:[%s3 + $0x98] sm:$0xf]
    %v4466 = vld [vmem:[%s3 + $0x9c] sm:$0xf]
    %v4467 = vld [vmem:[%s3 + $0xa0] sm:$0xf]
    %v4468 = vld [vmem:[%s3 + $0xa4] sm:$0xf]
    %v4469 = vld [vmem:[%s3 + $0xa8] sm:$0xf]
    %v4470 = vld [vmem:[%s3 + $0xac] sm:$0xf]
    %v4471 = vld [vmem:[%s3 + $0xb0] sm:$0xf]
    %v4472 = vld [vmem:[%s3 + $0xb4] sm:$0xf]
    %v4473 = vld [vmem:[%s3 + $0xb8] sm:$0xf]
    %v4474 = vld [vmem:[%s3 + $0xbc] sm:$0xf]
    %v4475 = vld [vmem:[%s3 + $0xc0] sm:$0xf]
    %v4476 = vld [vmem:[%s3 + $0xc4] sm:$0xf]
    %v4477 = vld [vmem:[%s3 + $0xc8] sm:$0xf]
    %v4478 = vld [vmem:[%s3 + $0xcc] sm:$0xf]
    %v4479 = vld [vmem:[%s3 + $0xd0] sm:$0xf]
    %v4480 = vld [vmem:[%s3 + $0xd4] sm:$0xf]
    %v4481 = vld [vmem:[%s3 + $0xd8] sm:$0xf]
    %v4482 = vld [vmem:[%s3 + $0xdc] sm:$0xf]
    %v4483 = vld [vmem:[%s3 + $0xe0] sm:$0xf]
    %v4484 = vld [vmem:[%s3 + $0xe4] sm:$0xf]
    %v4485 = vld [vmem:[%s3 + $0xe8] sm:$0xf]
    %v4486 = vld [vmem:[%s3 + $0xec] sm:$0xf]
    %v4487 = vld [vmem:[%s3 + $0xf0] sm:$0xf]
    %v4488 = vld [vmem:[%s3 + $0xf4] sm:$0xf]
    %v4489 = vld [vmem:[%s3 + $0xf8] sm:$0xf]
    %v4490 = vld [vmem:[%s3 + $0xfc] sm:$0xf]
    %v4491 = vld [vmem:[%s3 + $0x100] sm:$0xf]
    %v4492 = vld [vmem:[%s3 + $0x104] sm:$0xf]
    %v4493 = vld [vmem:[%s3 + $0x108] sm:$0xf]
    %v4494 = vld [vmem:[%s3 + $0x10c] sm:$0xf]
    %v4495 = vld [vmem:[%s3 + $0x110] sm:$0xf]
    %v4496 = vld [vmem:[%s3 + $0x114] sm:$0xf]
    %v4497 = vld [vmem:[%s3 + $0x118] sm:$0xf]
    %v4498 = vld [vmem:[%s3 + $0x11c] sm:$0xf]
    %v4499 = vld [vmem:[%s3 + $0x120] sm:$0xf]
    %v4500 = vld [vmem:[%s3 + $0x124] sm:$0xf]
    %v4501 = vld [vmem:[%s3 + $0x128] sm:$0xf]
    %v4502 = vld [vmem:[%s3 + $0x12c] sm:$0xf]
    %v4503 = vld [vmem:[%s3 + $0x130] sm:$0xf]
    %v4504 = vld [vmem:[%s3 + $0x134] sm:$0xf]
    %v4505 = vld [vmem:[%s3 + $0x138] sm:$0xf]
    %v4506 = vld [vmem:[%s3 + $0x13c] sm:$0xf]
    %v4507 = vld [vmem:[%s3 + $0x140] sm:$0xf]
    %v4508 = vld [vmem:[%s3 + $0x144] sm:$0xf]
    %v4509 = vld [vmem:[%s3 + $0x148] sm:$0xf]
    %v4510 = vld [vmem:[%s3 + $0x14c] sm:$0xf]
    %v4511 = vld [vmem:[%s3 + $0x150] sm:$0xf]
    %v4512 = vld [vmem:[%s3 + $0x154] sm:$0xf]
    %v4513 = vld [vmem:[%s3 + $0x158] sm:$0xf]
    %v4514 = vld [vmem:[%s3 + $0x15c] sm:$0xf]
    %v4515 = vld [vmem:[%s3 + $0x160] sm:$0xf]
    %v4516 = vld [vmem:[%s3 + $0x164] sm:$0xf]
    %v4517 = vld [vmem:[%s3 + $0x168] sm:$0xf]
    %v4518 = vld [vmem:[%s3 + $0x16c] sm:$0xf]
    %v4519 = vld [vmem:[%s3 + $0x170] sm:$0xf]
    %v4520 = vld [vmem:[%s3 + $0x174] sm:$0xf]
    %v4521 = vld [vmem:[%s3 + $0x178] sm:$0xf]
    %v4522 = vld [vmem:[%s3 + $0x17c] sm:$0xf]
    %v4523 = vld [vmem:[%s3 + $0x180] sm:$0xf]
    %v4524 = vld [vmem:[%s3 + $0x184] sm:$0xf]
    %v4525 = vld [vmem:[%s3 + $0x188] sm:$0xf]
    %v4526 = vld [vmem:[%s3 + $0x18c] sm:$0xf]
    %v4527 = vld [vmem:[%s3 + $0x190] sm:$0xf]
    %v4528 = vld [vmem:[%s3 + $0x194] sm:$0xf]
    %v4529 = vld [vmem:[%s3 + $0x198] sm:$0xf]
    %v4530 = vld [vmem:[%s3 + $0x19c] sm:$0xf]
    %v4531 = vld [vmem:[%s3 + $0x1a0] sm:$0xf]
    %v4532 = vld [vmem:[%s3 + $0x1a4] sm:$0xf]
    %v4533 = vld [vmem:[%s3 + $0x1a8] sm:$0xf]
    %v4534 = vld [vmem:[%s3 + $0x1ac] sm:$0xf]
    %v4535 = vld [vmem:[%s3 + $0x1b0] sm:$0xf]
    %v4536 = vld [vmem:[%s3 + $0x1b4] sm:$0xf]
    %v4537 = vld [vmem:[%s3 + $0x1b8] sm:$0xf]
    %v4538 = vld [vmem:[%s3 + $0x1bc] sm:$0xf]
    %v4539 = vld [vmem:[%s3 + $0x1c0] sm:$0xf]
    %v4540 = vld [vmem:[%s3 + $0x1c4] sm:$0xf]
    %v4541 = vld [vmem:[%s3 + $0x1c8] sm:$0xf]
    %v4542 = vld [vmem:[%s3 + $0x1cc] sm:$0xf]
    %v4543 = vld [vmem:[%s3 + $0x1d0] sm:$0xf]
    %v4544 = vld [vmem:[%s3 + $0x1d4] sm:$0xf]
    %v4545 = vld [vmem:[%s3 + $0x1d8] sm:$0xf]
    %v4546 = vld [vmem:[%s3 + $0x1dc] sm:$0xf]
    %v4547 = vld [vmem:[%s3 + $0x1e0] sm:$0xf]
    %v4548 = vld [vmem:[%s3 + $0x1e4] sm:$0xf]
    %v4549 = vld [vmem:[%s3 + $0x1e8] sm:$0xf]
    %v4550 = vld [vmem:[%s3 + $0x1ec] sm:$0xf]
    %v4551 = vld [vmem:[%s3 + $0x1f0] sm:$0xf]
    %v4552 = vld [vmem:[%s3 + $0x1f4] sm:$0xf]
    %v4553 = vld [vmem:[%s3 + $0x1f8] sm:$0xf]
    %v4554 = vld [vmem:[%s3 + $0x1fc] sm:$0xf]
    %v4555 = vld [vmem:[%s3 + $0x200] sm:$0xf]
    %v4556 = vld [vmem:[%s3 + $0x204] sm:$0xf]
    %v4557 = vld [vmem:[%s3 + $0x208] sm:$0xf]
    %v4558 = vld [vmem:[%s3 + $0x20c] sm:$0xf]
    %v4559 = vld [vmem:[%s3 + $0x210] sm:$0xf]
    %v4560 = vld [vmem:[%s3 + $0x214] sm:$0xf]
    %v4561 = vld [vmem:[%s3 + $0x218] sm:$0xf]
    %v4562 = vld [vmem:[%s3 + $0x21c] sm:$0xf]
    %v4563 = vld [vmem:[%s3 + $0x220] sm:$0xf]
    %v4564 = vld [vmem:[%s3 + $0x224] sm:$0xf]
    %v4565 = vld [vmem:[%s3 + $0x228] sm:$0xf]
    %v4566 = vld [vmem:[%s3 + $0x22c] sm:$0xf]
    %v4567 = vld [vmem:[%s3 + $0x230] sm:$0xf]
    %v4568 = vld [vmem:[%s3 + $0x234] sm:$0xf]
    %v4569 = vld [vmem:[%s3 + $0x238] sm:$0xf]
    %v4570 = vld [vmem:[%s3 + $0x23c] sm:$0xf]
    %v4571 = vld [vmem:[%s4] sm:$0x1]
    %v4573 = vlaneseq
    %v4574 = vshrl.u32 %v4573, 7
    %v4575 = vsub.s32 0, %v4574
    %v4576 = vrot.slane %v4571, %v4575
    %v4578 = vcombine.low %v4115, %v4156
    %v4579 = vcombine.high %v4115, %v4156
    %v4580 = vcombine.low %v4197, %v4238
    %v4581 = vcombine.high %v4197, %v4238
    %v4583 = vunpack.c.l.s4 1983009808
    %v4584 = vunpack.c.0.s8 %v4583
    %v4585 = vlaneseq
    %v4586 = vshrl.u32 %v4585, 7
    %v4587 = vsub.s32 %v4584, %v4586
    %v4588 = vrot.slane %v4578, %v4587
    %v4590 = vunpack.c.l.s4 1983009808
    %v4591 = vunpack.c.0.s8 %v4590
    %v4592 = vlaneseq
    %v4593 = vshrl.u32 %v4592, 7
    %v4594 = vsub.s32 %v4591, %v4593
    %v4595 = vrot.slane %v4579, %v4594
    %v4597 = vunpack.c.l.s4 1983009808
    %v4598 = vunpack.c.0.s8 %v4597
    %v4599 = vlaneseq
    %v4600 = vshrl.u32 %v4599, 7
    %v4601 = vsub.s32 %v4598, %v4600
    %v4602 = vrot.slane %v4580, %v4601
    %v4604 = vunpack.c.l.s4 1983009808
    %v4605 = vunpack.c.0.s8 %v4604
    %v4606 = vlaneseq
    %v4607 = vshrl.u32 %v4606, 7
    %v4608 = vsub.s32 %v4605, %v4607
    %v4609 = vrot.slane %v4581, %v4608
    %v4610 = vcombine.low %v4588, %v4602
    %v4611 = vcombine.high %v4588, %v4602
    %v4612 = vcombine.low %v4595, %v4609
    %v4613 = vcombine.high %v4595, %v4609
    %v4614 = vcombine.low %v4132, %v4173
    %v4615 = vcombine.high %v4132, %v4173
    %v4616 = vcombine.low %v4214, %v4255
    %v4617 = vcombine.high %v4214, %v4255
    %v4619 = vunpack.c.l.s4 1983009808
    %v4620 = vunpack.c.0.s8 %v4619
    %v4621 = vlaneseq
    %v4622 = vshrl.u32 %v4621, 7
    %v4623 = vsub.s32 %v4620, %v4622
    %v4624 = vrot.slane %v4614, %v4623
    %v4626 = vunpack.c.l.s4 1983009808
    %v4627 = vunpack.c.0.s8 %v4626
    %v4628 = vlaneseq
    %v4629 = vshrl.u32 %v4628, 7
    %v4630 = vsub.s32 %v4627, %v4629
    %v4631 = vrot.slane %v4615, %v4630
    %v4633 = vunpack.c.l.s4 1983009808
    %v4634 = vunpack.c.0.s8 %v4633
    %v4635 = vlaneseq
    %v4636 = vshrl.u32 %v4635, 7
    %v4637 = vsub.s32 %v4634, %v4636
    %v4638 = vrot.slane %v4616, %v4637
    %v4640 = vunpack.c.l.s4 1983009808
    %v4641 = vunpack.c.0.s8 %v4640
    %v4642 = vlaneseq
    %v4643 = vshrl.u32 %v4642, 7
    %v4644 = vsub.s32 %v4641, %v4643
    %v4645 = vrot.slane %v4617, %v4644
    %v4646 = vcombine.low %v4624, %v4638
    %v4647 = vcombine.high %v4624, %v4638
    %v4648 = vcombine.low %v4631, %v4645
    %v4649 = vcombine.high %v4631, %v4645
    %v4650 = vcombine.low %v4139, %v4180
    %v4651 = vcombine.low %v4221, %v4262
    %v4653 = vunpack.c.l.s4 1983009808
    %v4654 = vunpack.c.0.s8 %v4653
    %v4655 = vlaneseq
    %v4656 = vshrl.u32 %v4655, 7
    %v4657 = vsub.s32 %v4654, %v4656
    %v4658 = vrot.slane %v4650, %v4657
    %v4660 = vunpack.c.l.s4 1983009808
    %v4661 = vunpack.c.0.s8 %v4660
    %v4662 = vlaneseq
    %v4663 = vshrl.u32 %v4662, 7
    %v4664 = vsub.s32 %v4661, %v4663
    %v4665 = vrot.slane %v4651, %v4664
    %v4666 = vcombine.low %v4658, %v4665
    %v4667 = vcombine.low %v4279, %v4320
    %v4668 = vcombine.high %v4279, %v4320
    %v4669 = vcombine.low %v4361, %v4402
    %v4670 = vcombine.high %v4361, %v4402
    %v4672 = vunpack.c.l.s4 1983009808
    %v4673 = vunpack.c.0.s8 %v4672
    %v4674 = vlaneseq
    %v4675 = vshrl.u32 %v4674, 7
    %v4676 = vsub.s32 %v4673, %v4675
    %v4677 = vrot.slane %v4667, %v4676
    %v4679 = vunpack.c.l.s4 1983009808
    %v4680 = vunpack.c.0.s8 %v4679
    %v4681 = vlaneseq
    %v4682 = vshrl.u32 %v4681, 7
    %v4683 = vsub.s32 %v4680, %v4682
    %v4684 = vrot.slane %v4668, %v4683
    %v4686 = vunpack.c.l.s4 1983009808
    %v4687 = vunpack.c.0.s8 %v4686
    %v4688 = vlaneseq
    %v4689 = vshrl.u32 %v4688, 7
    %v4690 = vsub.s32 %v4687, %v4689
    %v4691 = vrot.slane %v4669, %v4690
    %v4693 = vunpack.c.l.s4 1983009808
    %v4694 = vunpack.c.0.s8 %v4693
    %v4695 = vlaneseq
    %v4696 = vshrl.u32 %v4695, 7
    %v4697 = vsub.s32 %v4694, %v4696
    %v4698 = vrot.slane %v4670, %v4697
    %v4699 = vcombine.low %v4677, %v4691
    %v4700 = vcombine.high %v4677, %v4691
    %v4701 = vcombine.low %v4684, %v4698
    %v4702 = vcombine.high %v4684, %v4698
    %v4703 = vcombine.low %v4296, %v4337
    %v4704 = vcombine.high %v4296, %v4337
    %v4705 = vcombine.low %v4378, %v4419
    %v4706 = vcombine.high %v4378, %v4419
    %v4708 = vunpack.c.l.s4 1983009808
    %v4709 = vunpack.c.0.s8 %v4708
    %v4710 = vlaneseq
    %v4711 = vshrl.u32 %v4710, 7
    %v4712 = vsub.s32 %v4709, %v4711
    %v4713 = vrot.slane %v4703, %v4712
    %v4715 = vunpack.c.l.s4 1983009808
    %v4716 = vunpack.c.0.s8 %v4715
    %v4717 = vlaneseq
    %v4718 = vshrl.u32 %v4717, 7
    %v4719 = vsub.s32 %v4716, %v4718
    %v4720 = vrot.slane %v4704, %v4719
    %v4722 = vunpack.c.l.s4 1983009808
    %v4723 = vunpack.c.0.s8 %v4722
    %v4724 = vlaneseq
    %v4725 = vshrl.u32 %v4724, 7
    %v4726 = vsub.s32 %v4723, %v4725
    %v4727 = vrot.slane %v4705, %v4726
    %v4729 = vunpack.c.l.s4 1983009808
    %v4730 = vunpack.c.0.s8 %v4729
    %v4731 = vlaneseq
    %v4732 = vshrl.u32 %v4731, 7
    %v4733 = vsub.s32 %v4730, %v4732
    %v4734 = vrot.slane %v4706, %v4733
    %v4735 = vcombine.low %v4713, %v4727
    %v4736 = vcombine.high %v4713, %v4727
    %v4737 = vcombine.low %v4720, %v4734
    %v4738 = vcombine.high %v4720, %v4734
    %v4739 = vcombine.low %v4303, %v4344
    %v4740 = vcombine.low %v4385, %v4426
    %v4742 = vunpack.c.l.s4 1983009808
    %v4743 = vunpack.c.0.s8 %v4742
    %v4744 = vlaneseq
    %v4745 = vshrl.u32 %v4744, 7
    %v4746 = vsub.s32 %v4743, %v4745
    %v4747 = vrot.slane %v4739, %v4746
    %v4749 = vunpack.c.l.s4 1983009808
    %v4750 = vunpack.c.0.s8 %v4749
    %v4751 = vlaneseq
    %v4752 = vshrl.u32 %v4751, 7
    %v4753 = vsub.s32 %v4750, %v4752
    %v4754 = vrot.slane %v4740, %v4753
    %v4755 = vcombine.low %v4747, %v4754
    %v4918 = vunpack.c.l.b16 %v4427
    %v4919 = vunpack.c.l.b16 %v4428
    %v4920 = vunpack.c.l.b16 %v4429
    %v4921 = vunpack.c.l.b16 %v4430
    %v4922 = vunpack.c.l.b16 %v4431
    %v4923 = vunpack.c.l.b16 %v4432
    %v4924 = vunpack.c.l.b16 %v4433
    %v4925 = vunpack.c.l.b16 %v4434
    %v4926 = vunpack.c.l.b16 %v4435
    %v4927 = vunpack.c.l.b16 %v4436
    %v4928 = vunpack.c.l.b16 %v4437
    %v4929 = vunpack.c.l.b16 %v4438
    %v4930 = vunpack.c.l.b16 %v4439
    %v4931 = vunpack.c.l.b16 %v4440
    %v4932 = vunpack.c.l.b16 %v4441
    %v4933 = vunpack.c.l.b16 %v4442
    %v4934 = vunpack.c.l.b16 %v4443
    %v4935 = vunpack.c.l.b16 %v4444
    %v4936 = vunpack.c.l.b16 %v4445
    %v4937 = vunpack.c.l.b16 %v4446
    %v4938 = vunpack.c.l.b16 %v4447
    %v4939 = vunpack.c.l.b16 %v4448
    %v4940 = vunpack.c.l.b16 %v4449
    %v4941 = vunpack.c.l.b16 %v4450
    %v4942 = vunpack.c.l.b16 %v4451
    %v4943 = vunpack.c.l.b16 %v4452
    %v4944 = vunpack.c.l.b16 %v4453
    %v4945 = vunpack.c.l.b16 %v4454
    %v4946 = vunpack.c.l.b16 %v4455
    %v4947 = vunpack.c.l.b16 %v4456
    %v4948 = vunpack.c.l.b16 %v4457
    %v4949 = vunpack.c.l.b16 %v4458
    %v4950 = vunpack.c.l.b16 %v4459
    %v4951 = vunpack.c.l.b16 %v4460
    %v4952 = vunpack.c.l.b16 %v4461
    %v4953 = vunpack.c.l.b16 %v4462
    %v4954 = vunpack.c.l.b16 %v4463
    %v4955 = vunpack.c.l.b16 %v4464
    %v4956 = vunpack.c.l.b16 %v4465
    %v4957 = vunpack.c.l.b16 %v4466
    %v4958 = vunpack.c.l.b16 %v4467
    %v4959 = vunpack.c.l.b16 %v4468
    %v4960 = vunpack.c.l.b16 %v4469
    %v4961 = vunpack.c.l.b16 %v4470
    %v4962 = vunpack.c.l.b16 %v4471
    %v4963 = vunpack.c.l.b16 %v4472
    %v4964 = vunpack.c.l.b16 %v4473
    %v4965 = vunpack.c.l.b16 %v4474
    %v4966 = vunpack.c.l.b16 %v4475
    %v4967 = vunpack.c.l.b16 %v4476
    %v4968 = vunpack.c.l.b16 %v4477
    %v4969 = vunpack.c.l.b16 %v4478
    %v4970 = vunpack.c.l.b16 %v4479
    %v4971 = vunpack.c.l.b16 %v4480
    %v4972 = vunpack.c.l.b16 %v4481
    %v4973 = vunpack.c.l.b16 %v4482
    %v4974 = vunpack.c.l.b16 %v4483
    %v4975 = vunpack.c.l.b16 %v4484
    %v4976 = vunpack.c.l.b16 %v4485
    %v4977 = vunpack.c.l.b16 %v4486
    %v4978 = vunpack.c.l.b16 %v4487
    %v4979 = vunpack.c.l.b16 %v4488
    %v4980 = vunpack.c.l.b16 %v4489
    %v4981 = vunpack.c.l.b16 %v4490
    %v4982 = vunpack.c.l.b16 %v4491
    %v4983 = vunpack.c.l.b16 %v4492
    %v4984 = vunpack.c.l.b16 %v4493
    %v4985 = vunpack.c.l.b16 %v4494
    %v4986 = vunpack.c.l.b16 %v4495
    %v4987 = vunpack.c.l.b16 %v4496
    %v4988 = vunpack.c.l.b16 %v4497
    %v4989 = vunpack.c.l.b16 %v4498
    %v4990 = vunpack.c.l.b16 %v4499
    %v4991 = vunpack.c.l.b16 %v4500
    %v4992 = vunpack.c.l.b16 %v4501
    %v4993 = vunpack.c.l.b16 %v4502
    %v4994 = vunpack.c.l.b16 %v4503
    %v4995 = vunpack.c.l.b16 %v4504
    %v4996 = vunpack.c.l.b16 %v4505
    %v4997 = vunpack.c.l.b16 %v4506
    %v4998 = vunpack.c.l.b16 %v4507
    %v4999 = vunpack.c.l.b16 %v4508
    %v5000 = vunpack.c.l.b16 %v4509
    %v5001 = vunpack.c.l.b16 %v4510
    %v5002 = vunpack.c.l.b16 %v4511
    %v5003 = vunpack.c.l.b16 %v4512
    %v5004 = vunpack.c.l.b16 %v4513
    %v5005 = vunpack.c.l.b16 %v4514
    %v5006 = vunpack.c.l.b16 %v4515
    %v5007 = vunpack.c.l.b16 %v4516
    %v5008 = vunpack.c.l.b16 %v4517
    %v5009 = vunpack.c.l.b16 %v4518
    %v5010 = vunpack.c.l.b16 %v4519
    %v5011 = vunpack.c.l.b16 %v4520
    %v5012 = vunpack.c.l.b16 %v4521
    %v5013 = vunpack.c.l.b16 %v4522
    %v5014 = vunpack.c.l.b16 %v4523
    %v5015 = vunpack.c.l.b16 %v4524
    %v5016 = vunpack.c.l.b16 %v4525
    %v5017 = vunpack.c.l.b16 %v4526
    %v5018 = vunpack.c.l.b16 %v4527
    %v5019 = vunpack.c.l.b16 %v4528
    %v5020 = vunpack.c.l.b16 %v4529
    %v5021 = vunpack.c.l.b16 %v4530
    %v5022 = vunpack.c.l.b16 %v4531
    %v5023 = vunpack.c.l.b16 %v4532
    %v5024 = vunpack.c.l.b16 %v4533
    %v5025 = vunpack.c.l.b16 %v4534
    %v5026 = vunpack.c.l.b16 %v4535
    %v5027 = vunpack.c.l.b16 %v4536
    %v5028 = vunpack.c.l.b16 %v4537
    %v5029 = vunpack.c.l.b16 %v4538
    %v5030 = vunpack.c.l.b16 %v4539
    %v5031 = vunpack.c.l.b16 %v4540
    %v5032 = vunpack.c.l.b16 %v4541
    %v5033 = vunpack.c.l.b16 %v4542
    %v5034 = vunpack.c.l.b16 %v4543
    %v5035 = vunpack.c.l.b16 %v4544
    %v5036 = vunpack.c.l.b16 %v4545
    %v5037 = vunpack.c.l.b16 %v4546
    %v5038 = vunpack.c.l.b16 %v4547
    %v5039 = vunpack.c.l.b16 %v4548
    %v5040 = vunpack.c.l.b16 %v4549
    %v5041 = vunpack.c.l.b16 %v4550
    %v5042 = vunpack.c.l.b16 %v4551
    %v5043 = vunpack.c.l.b16 %v4552
    %v5044 = vunpack.c.l.b16 %v4553
    %v5045 = vunpack.c.l.b16 %v4554
    %v5046 = vunpack.c.l.b16 %v4555
    %v5047 = vunpack.c.l.b16 %v4556
    %v5048 = vunpack.c.l.b16 %v4557
    %v5049 = vunpack.c.l.b16 %v4558
    %v5050 = vunpack.c.l.b16 %v4559
    %v5051 = vunpack.c.l.b16 %v4560
    %v5052 = vunpack.c.l.b16 %v4561
    %v5053 = vunpack.c.l.b16 %v4562
    %v5054 = vunpack.c.l.b16 %v4563
    %v5055 = vunpack.c.l.b16 %v4564
    %v5056 = vunpack.c.l.b16 %v4565
    %v5057 = vunpack.c.l.b16 %v4566
    %v5058 = vunpack.c.l.b16 %v4567
    %v5059 = vunpack.c.l.b16 %v4568
    %v5060 = vunpack.c.l.b16 %v4569
    %v5061 = vunpack.c.l.b16 %v4570
    %v5062 = vpack.c.b16 %v4919, %v4918
    %v5063 = vpack.c.b16 %v4921, %v4920
    %v5064 = vpack.c.b16 %v4923, %v4922
    %v5065 = vpack.c.b16 %v4925, %v4924
    %v5066 = vpack.c.b16 %v4927, %v4926
    %v5067 = vpack.c.b16 %v4929, %v4928
    %v5068 = vpack.c.b16 %v4931, %v4930
    %v5069 = vpack.c.b16 %v4933, %v4932
    %v5070 = vpack.c.b16 %v4935, %v4934
    %v5071 = vpack.c.b16 %v4937, %v4936
    %v5072 = vpack.c.b16 %v4939, %v4938
    %v5073 = vpack.c.b16 %v4941, %v4940
    %v5074 = vpack.c.b16 %v4943, %v4942
    %v5075 = vpack.c.b16 %v4945, %v4944
    %v5076 = vpack.c.b16 %v4947, %v4946
    %v5077 = vpack.c.b16 %v4949, %v4948
    %v5078 = vpack.c.b16 %v4951, %v4950
    %v5079 = vpack.c.b16 %v4953, %v4952
    %v5080 = vpack.c.b16 %v4955, %v4954
    %v5081 = vpack.c.b16 %v4957, %v4956
    %v5082 = vpack.c.b16 %v4959, %v4958
    %v5083 = vpack.c.b16 %v4961, %v4960
    %v5084 = vpack.c.b16 %v4963, %v4962
    %v5085 = vpack.c.b16 %v4965, %v4964
    %v5086 = vpack.c.b16 %v4967, %v4966
    %v5087 = vpack.c.b16 %v4969, %v4968
    %v5088 = vpack.c.b16 %v4971, %v4970
    %v5089 = vpack.c.b16 %v4973, %v4972
    %v5090 = vpack.c.b16 %v4975, %v4974
    %v5091 = vpack.c.b16 %v4977, %v4976
    %v5092 = vpack.c.b16 %v4979, %v4978
    %v5093 = vpack.c.b16 %v4981, %v4980
    %v5094 = vpack.c.b16 %v4983, %v4982
    %v5095 = vpack.c.b16 %v4985, %v4984
    %v5096 = vpack.c.b16 %v4987, %v4986
    %v5097 = vpack.c.b16 %v4989, %v4988
    %v5098 = vpack.c.b16 %v4991, %v4990
    %v5099 = vpack.c.b16 %v4993, %v4992
    %v5100 = vpack.c.b16 %v4995, %v4994
    %v5101 = vpack.c.b16 %v4997, %v4996
    %v5102 = vpack.c.b16 %v4999, %v4998
    %v5103 = vpack.c.b16 %v5001, %v5000
    %v5104 = vpack.c.b16 %v5003, %v5002
    %v5105 = vpack.c.b16 %v5005, %v5004
    %v5106 = vpack.c.b16 %v5007, %v5006
    %v5107 = vpack.c.b16 %v5009, %v5008
    %v5108 = vpack.c.b16 %v5011, %v5010
    %v5109 = vpack.c.b16 %v5013, %v5012
    %v5110 = vpack.c.b16 %v5015, %v5014
    %v5111 = vpack.c.b16 %v5017, %v5016
    %v5112 = vpack.c.b16 %v5019, %v5018
    %v5113 = vpack.c.b16 %v5021, %v5020
    %v5114 = vpack.c.b16 %v5023, %v5022
    %v5115 = vpack.c.b16 %v5025, %v5024
    %v5116 = vpack.c.b16 %v5027, %v5026
    %v5117 = vpack.c.b16 %v5029, %v5028
    %v5118 = vpack.c.b16 %v5031, %v5030
    %v5119 = vpack.c.b16 %v5033, %v5032
    %v5120 = vpack.c.b16 %v5035, %v5034
    %v5121 = vpack.c.b16 %v5037, %v5036
    %v5122 = vpack.c.b16 %v5039, %v5038
    %v5123 = vpack.c.b16 %v5041, %v5040
    %v5124 = vpack.c.b16 %v5043, %v5042
    %v5125 = vpack.c.b16 %v5045, %v5044
    %v5126 = vpack.c.b16 %v5047, %v5046
    %v5127 = vpack.c.b16 %v5049, %v5048
    %v5128 = vpack.c.b16 %v5051, %v5050
    %v5129 = vpack.c.b16 %v5053, %v5052
    %v5130 = vpack.c.b16 %v5055, %v5054
    %v5131 = vpack.c.b16 %v5057, %v5056
    %v5132 = vpack.c.b16 %v5059, %v5058
    %v5133 = vpack.c.b16 %v5061, %v5060
    %5206 = vmatprep.subr.bf16.mxu0 0
    %5207 = vmatpush1.bf16.msra.mxu0 %v5069
    %5208 = vmatprep.subr.bf16.mxu0 0
    %5209 = vmatpush1.bf16.msra.mxu0 %v5068
    %5210 = vmatprep.subr.bf16.mxu0 0
    %5211 = vmatpush1.bf16.msra.mxu0 %v5067
    %5212 = vmatprep.subr.bf16.mxu0 0
    %5213 = vmatpush1.bf16.msra.mxu0 %v5066
    %5214 = vmatprep.subr.bf16.mxu0 0
    %5215 = vmatpush1.bf16.msra.mxu0 %v5065
    %5216 = vmatprep.subr.bf16.mxu0 0
    %5217 = vmatpush1.bf16.msra.mxu0 %v5064
    %5218 = vmatprep.subr.bf16.mxu0 0
    %5219 = vmatpush1.bf16.msra.mxu0 %v5063
    %5220 = vmatprep.subr.bf16.mxu0 0
    %5221 = vmatpush1.bf16.msra.mxu0 %v5062
    %5222 = vmatprep.subr.bf16.mxu0 0
    %5223 = vmatpush2.bf16.msra.mxu0 %v5077
    %5224 = vmatprep.subr.bf16.mxu0 0
    %5225 = vmatpush2.bf16.msra.mxu0 %v5076
    %5226 = vmatprep.subr.bf16.mxu0 0
    %5227 = vmatpush2.bf16.msra.mxu0 %v5075
    %5228 = vmatprep.subr.bf16.mxu0 0
    %5229 = vmatpush2.bf16.msra.mxu0 %v5074
    %5230 = vmatprep.subr.bf16.mxu0 0
    %5231 = vmatpush2.bf16.msra.mxu0 %v5073
    %5232 = vmatprep.subr.bf16.mxu0 0
    %5233 = vmatpush2.bf16.msra.mxu0 %v5072
    %5234 = vmatprep.subr.bf16.mxu0 0
    %5235 = vmatpush2.bf16.msra.mxu0 %v5071
    %5236 = vmatprep.subr.bf16.mxu0 0
    %5237 = vmatpush2.bf16.msra.mxu0 %v5070
    %5238 = vmatprep.mubr.bf16.mxu0 %v4611
    %5239 = vmatmul.mubr.bf16.gmra.mxu0 %v4610
    %v5240 = vpop.f32.mrf.mxu0
    %v5241 = vadd.f32 %v4576, %v5240
    %v5242 = vpop.f32.mrf.mxu0
    %v5243 = vpop.f32.mrf.mxu0
    %v5244 = vadd.f32 %v4576, %v5243
    %v5245 = vpop.f32.mrf.mxu0
    %5246 = vmatprep.mubr.bf16.mxu0 %v4700
    %5247 = vmatmul.mubr.bf16.gmra.mxu0 %v4699
    %v5248 = vpop.f32.mrf.mxu0
    %v5249 = vadd.f32 %v4576, %v5248
    %v5250 = vpop.f32.mrf.mxu0
    %v5251 = vpop.f32.mrf.mxu0
    %v5252 = vadd.f32 %v4576, %v5251
    %v5253 = vpop.f32.mrf.mxu0
    %5254 = vdwg.mxu0
    %5255 = vmatprep.subr.bf16.mxu0 0
    %5256 = vmatpush1.bf16.msra.mxu0 %v5085
    %5257 = vmatprep.subr.bf16.mxu0 0
    %5258 = vmatpush1.bf16.msra.mxu0 %v5084
    %5259 = vmatprep.subr.bf16.mxu0 0
    %5260 = vmatpush1.bf16.msra.mxu0 %v5083
    %5261 = vmatprep.subr.bf16.mxu0 0
    %5262 = vmatpush1.bf16.msra.mxu0 %v5082
    %5263 = vmatprep.subr.bf16.mxu0 0
    %5264 = vmatpush1.bf16.msra.mxu0 %v5081
    %5265 = vmatprep.subr.bf16.mxu0 0
    %5266 = vmatpush1.bf16.msra.mxu0 %v5080
    %5267 = vmatprep.subr.bf16.mxu0 0
    %5268 = vmatpush1.bf16.msra.mxu0 %v5079
    %5269 = vmatprep.subr.bf16.mxu0 0
    %5270 = vmatpush1.bf16.msra.mxu0 %v5078
    %5271 = vmatprep.subr.bf16.mxu0 0
    %5272 = vmatpush2.bf16.msra.mxu0 %v5093
    %5273 = vmatprep.subr.bf16.mxu0 0
    %5274 = vmatpush2.bf16.msra.mxu0 %v5092
    %5275 = vmatprep.subr.bf16.mxu0 0
    %5276 = vmatpush2.bf16.msra.mxu0 %v5091
    %5277 = vmatprep.subr.bf16.mxu0 0
    %5278 = vmatpush2.bf16.msra.mxu0 %v5090
    %5279 = vmatprep.subr.bf16.mxu0 0
    %5280 = vmatpush2.bf16.msra.mxu0 %v5089
    %5281 = vmatprep.subr.bf16.mxu0 0
    %5282 = vmatpush2.bf16.msra.mxu0 %v5088
    %5283 = vmatprep.subr.bf16.mxu0 0
    %5284 = vmatpush2.bf16.msra.mxu0 %v5087
    %5285 = vmatprep.subr.bf16.mxu0 0
    %5286 = vmatpush2.bf16.msra.mxu0 %v5086
    %5287 = vmatprep.mubr.bf16.mxu0 %v4613
    %5288 = vmatmul.mubr.bf16.gmra.mxu0 %v4612
    %v5289 = vpop.f32.mrf.mxu0
    %v5290 = vadd.f32 %v5241, %v5289
    %v5291 = vpop.f32.mrf.mxu0
    %v5292 = vpop.f32.mrf.mxu0
    %v5293 = vadd.f32 %v5244, %v5292
    %v5294 = vpop.f32.mrf.mxu0
    %5295 = vmatprep.mubr.bf16.mxu0 %v4702
    %5296 = vmatmul.mubr.bf16.gmra.mxu0 %v4701
    %v5297 = vpop.f32.mrf.mxu0
    %v5298 = vadd.f32 %v5249, %v5297
    %v5299 = vpop.f32.mrf.mxu0
    %v5300 = vpop.f32.mrf.mxu0
    %v5301 = vadd.f32 %v5252, %v5300
    %v5302 = vpop.f32.mrf.mxu0
    %5303 = vdwg.mxu0
    %5304 = vmatprep.subr.bf16.mxu0 0
    %5305 = vmatpush1.bf16.msra.mxu0 %v5101
    %5306 = vmatprep.subr.bf16.mxu0 0
    %5307 = vmatpush1.bf16.msra.mxu0 %v5100
    %5308 = vmatprep.subr.bf16.mxu0 0
    %5309 = vmatpush1.bf16.msra.mxu0 %v5099
    %5310 = vmatprep.subr.bf16.mxu0 0
    %5311 = vmatpush1.bf16.msra.mxu0 %v5098
    %5312 = vmatprep.subr.bf16.mxu0 0
    %5313 = vmatpush1.bf16.msra.mxu0 %v5097
    %5314 = vmatprep.subr.bf16.mxu0 0
    %5315 = vmatpush1.bf16.msra.mxu0 %v5096
    %5316 = vmatprep.subr.bf16.mxu0 0
    %5317 = vmatpush1.bf16.msra.mxu0 %v5095
    %5318 = vmatprep.subr.bf16.mxu0 0
    %5319 = vmatpush1.bf16.msra.mxu0 %v5094
    %5320 = vmatprep.subr.bf16.mxu0 0
    %5321 = vmatpush2.bf16.msra.mxu0 %v5109
    %5322 = vmatprep.subr.bf16.mxu0 0
    %5323 = vmatpush2.bf16.msra.mxu0 %v5108
    %5324 = vmatprep.subr.bf16.mxu0 0
    %5325 = vmatpush2.bf16.msra.mxu0 %v5107
    %5326 = vmatprep.subr.bf16.mxu0 0
    %5327 = vmatpush2.bf16.msra.mxu0 %v5106
    %5328 = vmatprep.subr.bf16.mxu0 0
    %5329 = vmatpush2.bf16.msra.mxu0 %v5105
    %5330 = vmatprep.subr.bf16.mxu0 0
    %5331 = vmatpush2.bf16.msra.mxu0 %v5104
    %5332 = vmatprep.subr.bf16.mxu0 0
    %5333 = vmatpush2.bf16.msra.mxu0 %v5103
    %5334 = vmatprep.subr.bf16.mxu0 0
    %5335 = vmatpush2.bf16.msra.mxu0 %v5102
    %5336 = vmatprep.mubr.bf16.mxu0 %v4647
    %5337 = vmatmul.mubr.bf16.gmra.mxu0 %v4646
    %v5338 = vpop.f32.mrf.mxu0
    %v5339 = vadd.f32 %v5290, %v5338
    %v5340 = vpop.f32.mrf.mxu0
    %v5341 = vpop.f32.mrf.mxu0
    %v5342 = vadd.f32 %v5293, %v5341
    %v5343 = vpop.f32.mrf.mxu0
    %5344 = vmatprep.mubr.bf16.mxu0 %v4736
    %5345 = vmatmul.mubr.bf16.gmra.mxu0 %v4735
    %v5346 = vpop.f32.mrf.mxu0
    %v5347 = vadd.f32 %v5298, %v5346
    %v5348 = vpop.f32.mrf.mxu0
    %v5349 = vpop.f32.mrf.mxu0
    %v5350 = vadd.f32 %v5301, %v5349
    %v5351 = vpop.f32.mrf.mxu0
    %5352 = vdwg.mxu0
    %5353 = vmatprep.subr.bf16.mxu0 0
    %5354 = vmatpush1.bf16.msra.mxu0 %v5117
    %5355 = vmatprep.subr.bf16.mxu0 0
    %5356 = vmatpush1.bf16.msra.mxu0 %v5116
    %5357 = vmatprep.subr.bf16.mxu0 0
    %5358 = vmatpush1.bf16.msra.mxu0 %v5115
    %5359 = vmatprep.subr.bf16.mxu0 0
    %5360 = vmatpush1.bf16.msra.mxu0 %v5114
    %5361 = vmatprep.subr.bf16.mxu0 0
    %5362 = vmatpush1.bf16.msra.mxu0 %v5113
    %5363 = vmatprep.subr.bf16.mxu0 0
    %5364 = vmatpush1.bf16.msra.mxu0 %v5112
    %5365 = vmatprep.subr.bf16.mxu0 0
    %5366 = vmatpush1.bf16.msra.mxu0 %v5111
    %5367 = vmatprep.subr.bf16.mxu0 0
    %5368 = vmatpush1.bf16.msra.mxu0 %v5110
    %5369 = vmatprep.subr.bf16.mxu0 0
    %5370 = vmatpush2.bf16.msra.mxu0 %v5125
    %5371 = vmatprep.subr.bf16.mxu0 0
    %5372 = vmatpush2.bf16.msra.mxu0 %v5124
    %5373 = vmatprep.subr.bf16.mxu0 0
    %5374 = vmatpush2.bf16.msra.mxu0 %v5123
    %5375 = vmatprep.subr.bf16.mxu0 0
    %5376 = vmatpush2.bf16.msra.mxu0 %v5122
    %5377 = vmatprep.subr.bf16.mxu0 0
    %5378 = vmatpush2.bf16.msra.mxu0 %v5121
    %5379 = vmatprep.subr.bf16.mxu0 0
    %5380 = vmatpush2.bf16.msra.mxu0 %v5120
    %5381 = vmatprep.subr.bf16.mxu0 0
    %5382 = vmatpush2.bf16.msra.mxu0 %v5119
    %5383 = vmatprep.subr.bf16.mxu0 0
    %5384 = vmatpush2.bf16.msra.mxu0 %v5118
    %5385 = vmatprep.mubr.bf16.mxu0 %v4649
    %5386 = vmatmul.mubr.bf16.gmra.mxu0 %v4648
    %v5387 = vpop.f32.mrf.mxu0
    %v5388 = vadd.f32 %v5339, %v5387
    %v5389 = vpop.f32.mrf.mxu0
    %v5390 = vpop.f32.mrf.mxu0
    %v5391 = vadd.f32 %v5342, %v5390
    %v5392 = vpop.f32.mrf.mxu0
    %5393 = vmatprep.mubr.bf16.mxu0 %v4738
    %5394 = vmatmul.mubr.bf16.gmra.mxu0 %v4737
    %v5395 = vpop.f32.mrf.mxu0
    %v5396 = vadd.f32 %v5347, %v5395
    %v5397 = vpop.f32.mrf.mxu0
    %v5398 = vpop.f32.mrf.mxu0
    %v5399 = vadd.f32 %v5350, %v5398
    %v5400 = vpop.f32.mrf.mxu0
    %5401 = vdwg.mxu0
    %5402 = vmatprep.subr.bf16.mxu0 0
    %5403 = vmatpush1.bf16.msra.mxu0 %v5133
    %5404 = vmatprep.subr.bf16.mxu0 0
    %5405 = vmatpush1.bf16.msra.mxu0 %v5132
    %5406 = vmatprep.subr.bf16.mxu0 0
    %5407 = vmatpush1.bf16.msra.mxu0 %v5131
    %5408 = vmatprep.subr.bf16.mxu0 0
    %5409 = vmatpush1.bf16.msra.mxu0 %v5130
    %5410 = vmatprep.subr.bf16.mxu0 0
    %5411 = vmatpush1.bf16.msra.mxu0 %v5129
    %5412 = vmatprep.subr.bf16.mxu0 0
    %5413 = vmatpush1.bf16.msra.mxu0 %v5128
    %5414 = vmatprep.subr.bf16.mxu0 0
    %5415 = vmatpush1.bf16.msra.mxu0 %v5127
    %5416 = vmatprep.subr.bf16.mxu0 0
    %5417 = vmatpush1.bf16.msra.mxu0 %v5126
    %5418 = vmatprep.subr.bf16.mxu0 0
    %5419 = vmatpush2.bf16.msra.mxu0 0
    %5420 = vmatprep.subr.bf16.mxu0 0
    %5421 = vmatpush2.bf16.msra.mxu0 0
    %5422 = vmatprep.subr.bf16.mxu0 0
    %5423 = vmatpush2.bf16.msra.mxu0 0
    %5424 = vmatprep.subr.bf16.mxu0 0
    %5425 = vmatpush2.bf16.msra.mxu0 0
    %5426 = vmatprep.subr.bf16.mxu0 0
    %5427 = vmatpush2.bf16.msra.mxu0 0
    %5428 = vmatprep.subr.bf16.mxu0 0
    %5429 = vmatpush2.bf16.msra.mxu0 0
    %5430 = vmatprep.subr.bf16.mxu0 0
    %5431 = vmatpush2.bf16.msra.mxu0 0
    %5432 = vmatprep.subr.bf16.mxu0 0
    %5433 = vmatpush2.bf16.msra.mxu0 0
    %5434 = vmatprep.mubr.bf16.mxu0 0
    %5435 = vmatmul.mubr.bf16.gmra.mxu0 %v4666
    %v5436 = vpop.f32.mrf.mxu0
    %v5437 = vadd.f32 %v5388, %v5436
    %v5438 = vpop.f32.mrf.mxu0
    %v5439 = vpop.f32.mrf.mxu0
    %v5440 = vadd.f32 %v5391, %v5439
    %v5441 = vpop.f32.mrf.mxu0
    %5442 = vmatprep.mubr.bf16.mxu0 0
    %5443 = vmatmul.mubr.bf16.gmra.mxu0 %v4755
    %v5444 = vpop.f32.mrf.mxu0
    %v5445 = vadd.f32 %v5396, %v5444
    %v5446 = vpop.f32.mrf.mxu0
    %v5447 = vpop.f32.mrf.mxu0
    %v5448 = vadd.f32 %v5399, %v5447
    %v5449 = vpop.f32.mrf.mxu0
    %5450 = vdwg.mxu0
    %v5451 = vmax.f32 %v5437, 0.0
    %v5452 = vmax.f32 %v5440, 0.0
    %v5453 = vmax.f32 %v5445, 0.0
    %v5454 = vmax.f32 %v5448, 0.0
    %v5459 = vcombine.high %v5451, %v5451
    %v5461 = vunpack.c.l.s4 1983009808
    %v5462 = vunpack.c.0.s8 %v5461
    %v5463 = vlaneseq
    %v5464 = vshrl.u32 %v5463, 7
    %v5465 = vsub.s32 %v5462, %v5464
    %v5466 = vrot.slane %v5451, %v5465
    %v5468 = vunpack.c.l.s4 1983009808
    %v5469 = vunpack.c.0.s8 %v5468
    %v5470 = vlaneseq
    %v5471 = vshrl.u32 %v5470, 7
    %v5472 = vsub.s32 %v5469, %v5471
    %v5473 = vrot.slane %v5459, %v5472
    %v5474 = vcombine.high %v5466, %v5466
    %v5475 = vcombine.high %v5473, %v5473
    %v5476 = vcombine.high %v5452, %v5452
    %v5478 = vunpack.c.l.s4 1983009808
    %v5479 = vunpack.c.0.s8 %v5478
    %v5480 = vlaneseq
    %v5481 = vshrl.u32 %v5480, 7
    %v5482 = vsub.s32 %v5479, %v5481
    %v5483 = vrot.slane %v5452, %v5482
    %v5485 = vunpack.c.l.s4 1983009808
    %v5486 = vunpack.c.0.s8 %v5485
    %v5487 = vlaneseq
    %v5488 = vshrl.u32 %v5487, 7
    %v5489 = vsub.s32 %v5486, %v5488
    %v5490 = vrot.slane %v5476, %v5489
    %v5491 = vcombine.high %v5483, %v5483
    %v5492 = vcombine.high %v5490, %v5490
    %v5493 = vcombine.high %v5453, %v5453
    %v5495 = vunpack.c.l.s4 1983009808
    %v5496 = vunpack.c.0.s8 %v5495
    %v5497 = vlaneseq
    %v5498 = vshrl.u32 %v5497, 7
    %v5499 = vsub.s32 %v5496, %v5498
    %v5500 = vrot.slane %v5453, %v5499
    %v5502 = vunpack.c.l.s4 1983009808
    %v5503 = vunpack.c.0.s8 %v5502
    %v5504 = vlaneseq
    %v5505 = vshrl.u32 %v5504, 7
    %v5506 = vsub.s32 %v5503, %v5505
    %v5507 = vrot.slane %v5493, %v5506
    %v5508 = vcombine.high %v5500, %v5500
    %v5509 = vcombine.high %v5507, %v5507
    %v5510 = vcombine.high %v5454, %v5454
    %v5512 = vunpack.c.l.s4 1983009808
    %v5513 = vunpack.c.0.s8 %v5512
    %v5514 = vlaneseq
    %v5515 = vshrl.u32 %v5514, 7
    %v5516 = vsub.s32 %v5513, %v5515
    %v5517 = vrot.slane %v5454, %v5516
    %v5519 = vunpack.c.l.s4 1983009808
    %v5520 = vunpack.c.0.s8 %v5519
    %v5521 = vlaneseq
    %v5522 = vshrl.u32 %v5521, 7
    %v5523 = vsub.s32 %v5520, %v5522
    %v5524 = vrot.slane %v5510, %v5523
    %v5525 = vcombine.high %v5517, %v5517
    %v5526 = vcombine.high %v5524, %v5524
    %v5543 = vsel %vm2942, %v5466, -inf
    %v5544 = vrot.slane %v5543, 4
    %v5545 = vmax.f32 %v5543, %v5544
    %v5546 = vrot.slane %v5545, 2
    %v5547 = vmax.f32 %v5545, %v5546
    %v5548 = vrot.slane %v5547, 1
    %v5549 = vmax.f32 %v5547, %v5548
    %v5550 = vsel %vm2942, %v5474, -inf
    %v5551 = vrot.slane %v5550, 4
    %v5552 = vmax.f32 %v5550, %v5551
    %v5553 = vrot.slane %v5552, 2
    %v5554 = vmax.f32 %v5552, %v5553
    %v5555 = vrot.slane %v5554, 1
    %v5556 = vmax.f32 %v5554, %v5555
    %v5557 = vsel %vm2942, %v5473, -inf
    %v5558 = vrot.slane %v5557, 4
    %v5559 = vmax.f32 %v5557, %v5558
    %v5560 = vrot.slane %v5559, 2
    %v5561 = vmax.f32 %v5559, %v5560
    %v5562 = vrot.slane %v5561, 1
    %v5563 = vmax.f32 %v5561, %v5562
    %v5564 = vsel %vm2942, %v5475, -inf
    %v5565 = vrot.slane %v5564, 4
    %v5566 = vmax.f32 %v5564, %v5565
    %v5567 = vrot.slane %v5566, 2
    %v5568 = vmax.f32 %v5566, %v5567
    %v5569 = vrot.slane %v5568, 1
    %v5570 = vmax.f32 %v5568, %v5569
    %v5571 = vsel %vm2942, %v5483, -inf
    %v5572 = vrot.slane %v5571, 4
    %v5573 = vmax.f32 %v5571, %v5572
    %v5574 = vrot.slane %v5573, 2
    %v5575 = vmax.f32 %v5573, %v5574
    %v5576 = vrot.slane %v5575, 1
    %v5577 = vmax.f32 %v5575, %v5576
    %v5578 = vsel %vm2942, %v5491, -inf
    %v5579 = vrot.slane %v5578, 4
    %v5580 = vmax.f32 %v5578, %v5579
    %v5581 = vrot.slane %v5580, 2
    %v5582 = vmax.f32 %v5580, %v5581
    %v5583 = vrot.slane %v5582, 1
    %v5584 = vmax.f32 %v5582, %v5583
    %v5585 = vsel %vm2942, %v5490, -inf
    %v5586 = vrot.slane %v5585, 4
    %v5587 = vmax.f32 %v5585, %v5586
    %v5588 = vrot.slane %v5587, 2
    %v5589 = vmax.f32 %v5587, %v5588
    %v5590 = vrot.slane %v5589, 1
    %v5591 = vmax.f32 %v5589, %v5590
    %v5592 = vsel %vm2942, %v5492, -inf
    %v5593 = vrot.slane %v5592, 4
    %v5594 = vmax.f32 %v5592, %v5593
    %v5595 = vrot.slane %v5594, 2
    %v5596 = vmax.f32 %v5594, %v5595
    %v5597 = vrot.slane %v5596, 1
    %v5598 = vmax.f32 %v5596, %v5597
    %v5599 = vsel %vm2942, %v5500, -inf
    %v5600 = vrot.slane %v5599, 4
    %v5601 = vmax.f32 %v5599, %v5600
    %v5602 = vrot.slane %v5601, 2
    %v5603 = vmax.f32 %v5601, %v5602
    %v5604 = vrot.slane %v5603, 1
    %v5605 = vmax.f32 %v5603, %v5604
    %v5606 = vsel %vm2942, %v5508, -inf
    %v5607 = vrot.slane %v5606, 4
    %v5608 = vmax.f32 %v5606, %v5607
    %v5609 = vrot.slane %v5608, 2
    %v5610 = vmax.f32 %v5608, %v5609
    %v5611 = vrot.slane %v5610, 1
    %v5612 = vmax.f32 %v5610, %v5611
    %v5613 = vsel %vm2942, %v5507, -inf
    %v5614 = vrot.slane %v5613, 4
    %v5615 = vmax.f32 %v5613, %v5614
    %v5616 = vrot.slane %v5615, 2
    %v5617 = vmax.f32 %v5615, %v5616
    %v5618 = vrot.slane %v5617, 1
    %v5619 = vmax.f32 %v5617, %v5618
    %v5620 = vsel %vm2942, %v5509, -inf
    %v5621 = vrot.slane %v5620, 4
    %v5622 = vmax.f32 %v5620, %v5621
    %v5623 = vrot.slane %v5622, 2
    %v5624 = vmax.f32 %v5622, %v5623
    %v5625 = vrot.slane %v5624, 1
    %v5626 = vmax.f32 %v5624, %v5625
    %v5627 = vsel %vm2942, %v5517, -inf
    %v5628 = vrot.slane %v5627, 4
    %v5629 = vmax.f32 %v5627, %v5628
    %v5630 = vrot.slane %v5629, 2
    %v5631 = vmax.f32 %v5629, %v5630
    %v5632 = vrot.slane %v5631, 1
    %v5633 = vmax.f32 %v5631, %v5632
    %v5634 = vsel %vm2942, %v5525, -inf
    %v5635 = vrot.slane %v5634, 4
    %v5636 = vmax.f32 %v5634, %v5635
    %v5637 = vrot.slane %v5636, 2
    %v5638 = vmax.f32 %v5636, %v5637
    %v5639 = vrot.slane %v5638, 1
    %v5640 = vmax.f32 %v5638, %v5639
    %v5641 = vsel %vm2942, %v5524, -inf
    %v5642 = vrot.slane %v5641, 4
    %v5643 = vmax.f32 %v5641, %v5642
    %v5644 = vrot.slane %v5643, 2
    %v5645 = vmax.f32 %v5643, %v5644
    %v5646 = vrot.slane %v5645, 1
    %v5647 = vmax.f32 %v5645, %v5646
    %v5648 = vsel %vm2942, %v5526, -inf
    %v5649 = vrot.slane %v5648, 4
    %v5650 = vmax.f32 %v5648, %v5649
    %v5651 = vrot.slane %v5650, 2
    %v5652 = vmax.f32 %v5650, %v5651
    %v5653 = vrot.slane %v5652, 1
    %v5654 = vmax.f32 %v5652, %v5653
    %v5655 = vmax.f32 %v5549, %v5563
    %v5656 = vmax.f32 %v5556, %v5570
    %v5657 = vmax.f32 %v5577, %v5591
    %v5658 = vmax.f32 %v5584, %v5598
    %v5659 = vmax.f32 %v5605, %v5619
    %v5660 = vmax.f32 %v5612, %v5626
    %v5661 = vmax.f32 %v5633, %v5647
    %v5662 = vmax.f32 %v5640, %v5654
    %5663 = vst [vmem:[#allocation4] sm:$0x3] 0
    %5664 = vst [vmem:[#allocation4 + $0x2] sm:$0x3] 0
    %5665 = vst [vmem:[#allocation4 + $0x4] sm:$0x3] 0
    %5666 = vst [vmem:[#allocation4 + $0x6] sm:$0x3] 0
    %5667 = vst [vmem:[#allocation4 + $0x8] sm:$0x3] 0
    %5668 = vst [vmem:[#allocation4 + $0xa] sm:$0x3] 0
    %5669 = vst [vmem:[#allocation4 + $0xc] sm:$0x3] 0
    %5670 = vst [vmem:[#allocation4 + $0xe] sm:$0x3] 0
    %v5671 = vpack.c.bf16 %v5655, %v5655
    %v5672 = vpack.c.bf16 %v5656, %v5656
    %v5673 = vpack.c.bf16 %v5657, %v5657
    %v5674 = vpack.c.bf16 %v5658, %v5658
    %v5675 = vpack.c.bf16 %v5659, %v5659
    %v5676 = vpack.c.bf16 %v5660, %v5660
    %v5677 = vpack.c.bf16 %v5661, %v5661
    %v5678 = vpack.c.bf16 %v5662, %v5662
    %v5688 = vunpack.c.l.s4 1983009808
    %v5689 = vunpack.c.0.s8 %v5688
    %v5690 = vlaneseq
    %v5691 = vshrl.u32 %v5690, 7
    %v5692 = vsub.s32 %v5689, %v5691
    %v5693 = vrot.slane %v5671, %v5692
    %v5695 = vunpack.c.l.s4 1983009808
    %v5696 = vunpack.c.0.s8 %v5695
    %v5697 = vlaneseq
    %v5698 = vshrl.u32 %v5697, 7
    %v5699 = vsub.s32 %v5696, %v5698
    %v5700 = vrot.slane %v5672, %v5699
    %v5702 = vunpack.c.l.s4 1983009808
    %v5703 = vunpack.c.0.s8 %v5702
    %v5704 = vlaneseq
    %v5705 = vshrl.u32 %v5704, 7
    %v5706 = vsub.s32 %v5703, %v5705
    %v5707 = vrot.slane %v5673, %v5706
    %v5709 = vunpack.c.l.s4 1983009808
    %v5710 = vunpack.c.0.s8 %v5709
    %v5711 = vlaneseq
    %v5712 = vshrl.u32 %v5711, 7
    %v5713 = vsub.s32 %v5710, %v5712
    %v5714 = vrot.slane %v5674, %v5713
    %v5716 = vunpack.c.l.s4 1983009808
    %v5717 = vunpack.c.0.s8 %v5716
    %v5718 = vlaneseq
    %v5719 = vshrl.u32 %v5718, 7
    %v5720 = vsub.s32 %v5717, %v5719
    %v5721 = vrot.slane %v5675, %v5720
    %v5723 = vunpack.c.l.s4 1983009808
    %v5724 = vunpack.c.0.s8 %v5723
    %v5725 = vlaneseq
    %v5726 = vshrl.u32 %v5725, 7
    %v5727 = vsub.s32 %v5724, %v5726
    %v5728 = vrot.slane %v5676, %v5727
    %v5730 = vunpack.c.l.s4 1983009808
    %v5731 = vunpack.c.0.s8 %v5730
    %v5732 = vlaneseq
    %v5733 = vshrl.u32 %v5732, 7
    %v5734 = vsub.s32 %v5731, %v5733
    %v5735 = vrot.slane %v5677, %v5734
    %v5737 = vunpack.c.l.s4 1983009808
    %v5738 = vunpack.c.0.s8 %v5737
    %v5739 = vlaneseq
    %v5740 = vshrl.u32 %v5739, 7
    %v5741 = vsub.s32 %v5738, %v5740
    %v5742 = vrot.slane %v5678, %v5741
    %v5744 = vunpack.c.l.s4 1983009808
    %v5745 = vunpack.c.0.s8 %v5744
    %v5746 = vlaneseq
    %v5747 = vshrl.u32 %v5746, 7
    %v5748 = vsub.s32 %v5745, %v5747
    %v5749 = vrot.slane %v5693, %v5748
    %v5751 = vunpack.c.l.s4 1983009808
    %v5752 = vunpack.c.0.s8 %v5751
    %v5753 = vlaneseq
    %v5754 = vshrl.u32 %v5753, 7
    %v5755 = vsub.s32 %v5752, %v5754
    %v5756 = vrot.slane %v5700, %v5755
    %v5758 = vunpack.c.l.s4 1983009808
    %v5759 = vunpack.c.0.s8 %v5758
    %v5760 = vlaneseq
    %v5761 = vshrl.u32 %v5760, 7
    %v5762 = vsub.s32 %v5759, %v5761
    %v5763 = vrot.slane %v5707, %v5762
    %v5765 = vunpack.c.l.s4 1983009808
    %v5766 = vunpack.c.0.s8 %v5765
    %v5767 = vlaneseq
    %v5768 = vshrl.u32 %v5767, 7
    %v5769 = vsub.s32 %v5766, %v5768
    %v5770 = vrot.slane %v5714, %v5769
    %v5772 = vunpack.c.l.s4 1983009808
    %v5773 = vunpack.c.0.s8 %v5772
    %v5774 = vlaneseq
    %v5775 = vshrl.u32 %v5774, 7
    %v5776 = vsub.s32 %v5773, %v5775
    %v5777 = vrot.slane %v5721, %v5776
    %v5779 = vunpack.c.l.s4 1983009808
    %v5780 = vunpack.c.0.s8 %v5779
    %v5781 = vlaneseq
    %v5782 = vshrl.u32 %v5781, 7
    %v5783 = vsub.s32 %v5780, %v5782
    %v5784 = vrot.slane %v5728, %v5783
    %v5786 = vunpack.c.l.s4 1983009808
    %v5787 = vunpack.c.0.s8 %v5786
    %v5788 = vlaneseq
    %v5789 = vshrl.u32 %v5788, 7
    %v5790 = vsub.s32 %v5787, %v5789
    %v5791 = vrot.slane %v5735, %v5790
    %v5793 = vunpack.c.l.s4 1983009808
    %v5794 = vunpack.c.0.s8 %v5793
    %v5795 = vlaneseq
    %v5796 = vshrl.u32 %v5795, 7
    %v5797 = vsub.s32 %v5794, %v5796
    %v5798 = vrot.slane %v5742, %v5797
    %v5799 = vunpack.c.l.b16 %v5749
    %v5800 = vunpack.c.l.b16 %v5756
    %v5801 = vunpack.c.l.b16 %v5763
    %v5802 = vunpack.c.l.b16 %v5770
    %v5803 = vunpack.c.l.b16 %v5777
    %v5804 = vunpack.c.l.b16 %v5784
    %v5805 = vunpack.c.l.b16 %v5791
    %v5806 = vunpack.c.l.b16 %v5798
    %v5807 = vrot.slane %v5799, 7
    %v5808 = vrot.slane %v5800, 6
    %v5809 = vsel %vm3595, %v5808, %v5807
    %v5810 = vrot.slane %v5801, 7
    %v5811 = vrot.slane %v5802, 6
    %v5812 = vsel %vm3595, %v5811, %v5810
    %v5813 = vrot.slane %v5803, 7
    %v5814 = vrot.slane %v5804, 6
    %v5815 = vsel %vm3595, %v5814, %v5813
    %v5816 = vrot.slane %v5805, 7
    %v5817 = vrot.slane %v5806, 6
    %v5818 = vsel %vm3595, %v5817, %v5816
    %v5819 = vpack.c.b16 %v5809, %v5809
    %v5820 = vpack.c.b16 %v5812, %v5812
    %v5821 = vpack.c.b16 %v5815, %v5815
    %v5822 = vpack.c.b16 %v5818, %v5818
    %v5824 = vunpack.c.l.s4 1983009808
    %v5825 = vunpack.c.0.s8 %v5824
    %v5826 = vlaneseq
    %v5827 = vshrl.u32 %v5826, 7
    %v5828 = vsub.s32 %v5825, %v5827
    %v5829 = vrot.slane %v5819, %v5828
    %v5831 = vunpack.c.l.s4 1983009808
    %v5832 = vunpack.c.0.s8 %v5831
    %v5833 = vlaneseq
    %v5834 = vshrl.u32 %v5833, 7
    %v5835 = vsub.s32 %v5832, %v5834
    %v5836 = vrot.slane %v5820, %v5835
    %v5838 = vunpack.c.l.s4 1983009808
    %v5839 = vunpack.c.0.s8 %v5838
    %v5840 = vlaneseq
    %v5841 = vshrl.u32 %v5840, 7
    %v5842 = vsub.s32 %v5839, %v5841
    %v5843 = vrot.slane %v5821, %v5842
    %v5845 = vunpack.c.l.s4 1983009808
    %v5846 = vunpack.c.0.s8 %v5845
    %v5847 = vlaneseq
    %v5848 = vshrl.u32 %v5847, 7
    %v5849 = vsub.s32 %v5846, %v5848
    %v5850 = vrot.slane %v5822, %v5849
    %s5855 = scalar_lea.vmem [#allocation4], 2
    %vm5856 = vcmask 1041408
    %vm5857 = vsmask.f32 1282
    %vm5858 = vmand %vm5856, %vm5857
    %v5859 = vld [vmem:[%s5855] sm:$0x3]
    %v5860 = vsel %vm5858, %v5829, %v5859
    %5861 = vst [vmem:[%s5855] sm:$0x3] %v5860
    %v5862 = vld [vmem:[%s5855 + $0x2] sm:$0x3]
    %v5863 = vsel %vm5858, %v5836, %v5862
    %5864 = vst [vmem:[%s5855 + $0x2] sm:$0x3] %v5863
    %v5865 = vld [vmem:[%s5855 + $0x8] sm:$0x3]
    %v5866 = vsel %vm5858, %v5843, %v5865
    %5867 = vst [vmem:[%s5855 + $0x8] sm:$0x3] %v5866
    %v5868 = vld [vmem:[%s5855 + $0xa] sm:$0x3]
    %v5869 = vsel %vm5858, %v5850, %v5868
    %5870 = vst [vmem:[%s5855 + $0xa] sm:$0x3] %v5869
    %v5871 = vld [vmem:[#allocation4] sm:$0x1]
    %v5872 = vld [vmem:[#allocation4 + $0x2] sm:$0x1]
    %v5873 = vld [vmem:[#allocation4 + $0x8] sm:$0x1]
    %v5874 = vld [vmem:[#allocation4 + $0xa] sm:$0x1]
    %v5875 = vld [vmem:[#allocation4] sm:$0x3]
    %v5876 = vld [vmem:[#allocation4 + $0x2] sm:$0x3]
    %v5877 = vld [vmem:[#allocation4 + $0x8] sm:$0x3]
    %v5878 = vld [vmem:[#allocation4 + $0xa] sm:$0x3]
    %v5879 = vld [vmem:[#allocation4] sm:$0x2]
    %v5880 = vld [vmem:[#allocation4 + $0x2] sm:$0x2]
    %v5881 = vld [vmem:[#allocation4 + $0x8] sm:$0x2]
    %v5882 = vld [vmem:[#allocation4 + $0xa] sm:$0x2]
    %v5883 = vld [vmem:[%s5855] sm:$0x1]
    %v5884 = vld [vmem:[%s5855 + $0x2] sm:$0x1]
    %v5885 = vld [vmem:[%s5855 + $0x8] sm:$0x1]
    %v5886 = vld [vmem:[%s5855 + $0xa] sm:$0x1]
    %v5887 = vld [vmem:[%s5855] sm:$0x3]
    %v5888 = vld [vmem:[%s5855 + $0x2] sm:$0x3]
    %v5889 = vld [vmem:[%s5855 + $0x8] sm:$0x3]
    %v5890 = vld [vmem:[%s5855 + $0xa] sm:$0x3]
    %v5891 = vld [vmem:[%s5855] sm:$0x2]
    %v5892 = vld [vmem:[%s5855 + $0x2] sm:$0x2]
    %v5893 = vld [vmem:[%s5855 + $0x8] sm:$0x2]
    %v5894 = vld [vmem:[%s5855 + $0xa] sm:$0x2]
    %s5895 = scalar_lea.vmem [#allocation4], 4
    %v5896 = vld [vmem:[%s5895] sm:$0x1]
    %v5897 = vld [vmem:[%s5895 + $0x2] sm:$0x1]
    %v5898 = vld [vmem:[%s5895 + $0x8] sm:$0x1]
    %v5899 = vld [vmem:[%s5895 + $0xa] sm:$0x1]
    %v5900 = vld [vmem:[%s5895] sm:$0x3]
    %v5901 = vld [vmem:[%s5895 + $0x2] sm:$0x3]
    %v5902 = vld [vmem:[%s5895 + $0x8] sm:$0x3]
    %v5903 = vld [vmem:[%s5895 + $0xa] sm:$0x3]
    %v5904 = vld [vmem:[%s5895] sm:$0x2]
    %v5905 = vld [vmem:[%s5895 + $0x2] sm:$0x2]
    %v5906 = vld [vmem:[%s5895 + $0x8] sm:$0x2]
    %v5907 = vld [vmem:[%s5895 + $0xa] sm:$0x2]
    %v5913 = vunpack.c.l.s4 1983009808
    %v5914 = vunpack.c.0.s8 %v5913
    %v5915 = vlaneseq
    %v5916 = vshrl.u32 %v5915, 7
    %v5917 = vsub.s32 %v5914, %v5916
    %v5918 = vrot.slane %v5875, %v5917
    %v5920 = vunpack.c.l.s4 1983009808
    %v5921 = vunpack.c.0.s8 %v5920
    %v5922 = vlaneseq
    %v5923 = vshrl.u32 %v5922, 7
    %v5924 = vsub.s32 %v5921, %v5923
    %v5925 = vrot.slane %v5876, %v5924
    %v5927 = vunpack.c.l.s4 1983009808
    %v5928 = vunpack.c.0.s8 %v5927
    %v5929 = vlaneseq
    %v5930 = vshrl.u32 %v5929, 7
    %v5931 = vsub.s32 %v5928, %v5930
    %v5932 = vrot.slane %v5877, %v5931
    %v5934 = vunpack.c.l.s4 1983009808
    %v5935 = vunpack.c.0.s8 %v5934
    %v5936 = vlaneseq
    %v5937 = vshrl.u32 %v5936, 7
    %v5938 = vsub.s32 %v5935, %v5937
    %v5939 = vrot.slane %v5878, %v5938
    %v5941 = vshrl.u32 %v5918, 16
    %v5943 = vshll.u32 %v5918, 16
    %v5945 = vrot.slane %v5943, 1
    %v5946 = vor.u32 %v5941, %v5945
    %v5948 = vshrl.u32 %v5925, 16
    %v5950 = vshll.u32 %v5925, 16
    %v5952 = vrot.slane %v5950, 1
    %v5953 = vor.u32 %v5948, %v5952
    %v5955 = vshrl.u32 %v5932, 16
    %v5957 = vshll.u32 %v5932, 16
    %v5959 = vrot.slane %v5957, 1
    %v5960 = vor.u32 %v5955, %v5959
    %v5962 = vshrl.u32 %v5939, 16
    %v5964 = vshll.u32 %v5939, 16
    %v5966 = vrot.slane %v5964, 1
    %v5967 = vor.u32 %v5962, %v5966
    %v5973 = vunpack.c.l.s4 1983009808
    %v5974 = vunpack.c.0.s8 %v5973
    %v5975 = vlaneseq
    %v5976 = vshrl.u32 %v5975, 7
    %v5977 = vsub.s32 %v5974, %v5976
    %v5978 = vrot.slane %v5879, %v5977
    %v5980 = vunpack.c.l.s4 1983009808
    %v5981 = vunpack.c.0.s8 %v5980
    %v5982 = vlaneseq
    %v5983 = vshrl.u32 %v5982, 7
    %v5984 = vsub.s32 %v5981, %v5983
    %v5985 = vrot.slane %v5880, %v5984
    %v5987 = vunpack.c.l.s4 1983009808
    %v5988 = vunpack.c.0.s8 %v5987
    %v5989 = vlaneseq
    %v5990 = vshrl.u32 %v5989, 7
    %v5991 = vsub.s32 %v5988, %v5990
    %v5992 = vrot.slane %v5881, %v5991
    %v5994 = vunpack.c.l.s4 1983009808
    %v5995 = vunpack.c.0.s8 %v5994
    %v5996 = vlaneseq
    %v5997 = vshrl.u32 %v5996, 7
    %v5998 = vsub.s32 %v5995, %v5997
    %v5999 = vrot.slane %v5882, %v5998
    %v6000 = vrot.slane %v5978, 1
    %v6001 = vrot.slane %v5985, 1
    %v6002 = vrot.slane %v5992, 1
    %v6003 = vrot.slane %v5999, 1
    %v6009 = vunpack.c.l.s4 1983009808
    %v6010 = vunpack.c.0.s8 %v6009
    %v6011 = vlaneseq
    %v6012 = vshrl.u32 %v6011, 7
    %v6013 = vsub.s32 %v6010, %v6012
    %v6014 = vrot.slane %v5887, %v6013
    %v6016 = vunpack.c.l.s4 1983009808
    %v6017 = vunpack.c.0.s8 %v6016
    %v6018 = vlaneseq
    %v6019 = vshrl.u32 %v6018, 7
    %v6020 = vsub.s32 %v6017, %v6019
    %v6021 = vrot.slane %v5888, %v6020
    %v6023 = vunpack.c.l.s4 1983009808
    %v6024 = vunpack.c.0.s8 %v6023
    %v6025 = vlaneseq
    %v6026 = vshrl.u32 %v6025, 7
    %v6027 = vsub.s32 %v6024, %v6026
    %v6028 = vrot.slane %v5889, %v6027
    %v6030 = vunpack.c.l.s4 1983009808
    %v6031 = vunpack.c.0.s8 %v6030
    %v6032 = vlaneseq
    %v6033 = vshrl.u32 %v6032, 7
    %v6034 = vsub.s32 %v6031, %v6033
    %v6035 = vrot.slane %v5890, %v6034
    %v6037 = vshrl.u32 %v6014, 16
    %v6039 = vshll.u32 %v6014, 16
    %v6041 = vrot.slane %v6039, 1
    %v6042 = vor.u32 %v6037, %v6041
    %v6044 = vshrl.u32 %v6021, 16
    %v6046 = vshll.u32 %v6021, 16
    %v6048 = vrot.slane %v6046, 1
    %v6049 = vor.u32 %v6044, %v6048
    %v6051 = vshrl.u32 %v6028, 16
    %v6053 = vshll.u32 %v6028, 16
    %v6055 = vrot.slane %v6053, 1
    %v6056 = vor.u32 %v6051, %v6055
    %v6058 = vshrl.u32 %v6035, 16
    %v6060 = vshll.u32 %v6035, 16
    %v6062 = vrot.slane %v6060, 1
    %v6063 = vor.u32 %v6058, %v6062
    %v6069 = vunpack.c.l.s4 1983009808
    %v6070 = vunpack.c.0.s8 %v6069
    %v6071 = vlaneseq
    %v6072 = vshrl.u32 %v6071, 7
    %v6073 = vsub.s32 %v6070, %v6072
    %v6074 = vrot.slane %v5891, %v6073
    %v6076 = vunpack.c.l.s4 1983009808
    %v6077 = vunpack.c.0.s8 %v6076
    %v6078 = vlaneseq
    %v6079 = vshrl.u32 %v6078, 7
    %v6080 = vsub.s32 %v6077, %v6079
    %v6081 = vrot.slane %v5892, %v6080
    %v6083 = vunpack.c.l.s4 1983009808
    %v6084 = vunpack.c.0.s8 %v6083
    %v6085 = vlaneseq
    %v6086 = vshrl.u32 %v6085, 7
    %v6087 = vsub.s32 %v6084, %v6086
    %v6088 = vrot.slane %v5893, %v6087
    %v6090 = vunpack.c.l.s4 1983009808
    %v6091 = vunpack.c.0.s8 %v6090
    %v6092 = vlaneseq
    %v6093 = vshrl.u32 %v6092, 7
    %v6094 = vsub.s32 %v6091, %v6093
    %v6095 = vrot.slane %v5894, %v6094
    %v6096 = vrot.slane %v6074, 1
    %v6097 = vrot.slane %v6081, 1
    %v6098 = vrot.slane %v6088, 1
    %v6099 = vrot.slane %v6095, 1
    %v6105 = vunpack.c.l.s4 1983009808
    %v6106 = vunpack.c.0.s8 %v6105
    %v6107 = vlaneseq
    %v6108 = vshrl.u32 %v6107, 7
    %v6109 = vsub.s32 %v6106, %v6108
    %v6110 = vrot.slane %v5900, %v6109
    %v6112 = vunpack.c.l.s4 1983009808
    %v6113 = vunpack.c.0.s8 %v6112
    %v6114 = vlaneseq
    %v6115 = vshrl.u32 %v6114, 7
    %v6116 = vsub.s32 %v6113, %v6115
    %v6117 = vrot.slane %v5901, %v6116
    %v6119 = vunpack.c.l.s4 1983009808
    %v6120 = vunpack.c.0.s8 %v6119
    %v6121 = vlaneseq
    %v6122 = vshrl.u32 %v6121, 7
    %v6123 = vsub.s32 %v6120, %v6122
    %v6124 = vrot.slane %v5902, %v6123
    %v6126 = vunpack.c.l.s4 1983009808
    %v6127 = vunpack.c.0.s8 %v6126
    %v6128 = vlaneseq
    %v6129 = vshrl.u32 %v6128, 7
    %v6130 = vsub.s32 %v6127, %v6129
    %v6131 = vrot.slane %v5903, %v6130
    %v6133 = vshrl.u32 %v6110, 16
    %v6135 = vshll.u32 %v6110, 16
    %v6137 = vrot.slane %v6135, 1
    %v6138 = vor.u32 %v6133, %v6137
    %v6140 = vshrl.u32 %v6117, 16
    %v6142 = vshll.u32 %v6117, 16
    %v6144 = vrot.slane %v6142, 1
    %v6145 = vor.u32 %v6140, %v6144
    %v6147 = vshrl.u32 %v6124, 16
    %v6149 = vshll.u32 %v6124, 16
    %v6151 = vrot.slane %v6149, 1
    %v6152 = vor.u32 %v6147, %v6151
    %v6154 = vshrl.u32 %v6131, 16
    %v6156 = vshll.u32 %v6131, 16
    %v6158 = vrot.slane %v6156, 1
    %v6159 = vor.u32 %v6154, %v6158
    %v6165 = vunpack.c.l.s4 1983009808
    %v6166 = vunpack.c.0.s8 %v6165
    %v6167 = vlaneseq
    %v6168 = vshrl.u32 %v6167, 7
    %v6169 = vsub.s32 %v6166, %v6168
    %v6170 = vrot.slane %v5904, %v6169
    %v6172 = vunpack.c.l.s4 1983009808
    %v6173 = vunpack.c.0.s8 %v6172
    %v6174 = vlaneseq
    %v6175 = vshrl.u32 %v6174, 7
    %v6176 = vsub.s32 %v6173, %v6175
    %v6177 = vrot.slane %v5905, %v6176
    %v6179 = vunpack.c.l.s4 1983009808
    %v6180 = vunpack.c.0.s8 %v6179
    %v6181 = vlaneseq
    %v6182 = vshrl.u32 %v6181, 7
    %v6183 = vsub.s32 %v6180, %v6182
    %v6184 = vrot.slane %v5906, %v6183
    %v6186 = vunpack.c.l.s4 1983009808
    %v6187 = vunpack.c.0.s8 %v6186
    %v6188 = vlaneseq
    %v6189 = vshrl.u32 %v6188, 7
    %v6190 = vsub.s32 %v6187, %v6189
    %v6191 = vrot.slane %v5907, %v6190
    %v6192 = vrot.slane %v6170, 1
    %v6193 = vrot.slane %v6177, 1
    %v6194 = vrot.slane %v6184, 1
    %v6195 = vrot.slane %v6191, 1
    %v6208 = vcombine.low %v5871, %v5946
    %v6209 = vcombine.low %v6000, %v5883
    %v6210 = vcombine.low %v6042, %v6096
    %v6211 = vcombine.low %v5896, %v6138
    %v6213 = vunpack.c.l.s4 1966171168
    %v6214 = vunpack.c.0.s8 %v6213
    %v6215 = vlaneseq
    %v6216 = vshrl.u32 %v6215, 7
    %v6217 = vsub.s32 %v6214, %v6216
    %v6218 = vrot.slane %v6208, %v6217
    %v6220 = vunpack.c.l.s4 1966171168
    %v6221 = vunpack.c.0.s8 %v6220
    %v6222 = vlaneseq
    %v6223 = vshrl.u32 %v6222, 7
    %v6224 = vsub.s32 %v6221, %v6223
    %v6225 = vrot.slane %v6209, %v6224
    %v6227 = vunpack.c.l.s4 1966171168
    %v6228 = vunpack.c.0.s8 %v6227
    %v6229 = vlaneseq
    %v6230 = vshrl.u32 %v6229, 7
    %v6231 = vsub.s32 %v6228, %v6230
    %v6232 = vrot.slane %v6210, %v6231
    %v6234 = vunpack.c.l.s4 1966171168
    %v6235 = vunpack.c.0.s8 %v6234
    %v6236 = vlaneseq
    %v6237 = vshrl.u32 %v6236, 7
    %v6238 = vsub.s32 %v6235, %v6237
    %v6239 = vrot.slane %v6211, %v6238
    %v6240 = vcombine.low %v6218, %v6225
    %v6241 = vcombine.low %v6232, %v6239
    %v6243 = vunpack.c.l.s4 1966171168
    %v6244 = vunpack.c.0.s8 %v6243
    %v6245 = vlaneseq
    %v6246 = vshrl.u32 %v6245, 7
    %v6247 = vsub.s32 %v6244, %v6246
    %v6248 = vrot.slane %v6240, %v6247
    %v6250 = vunpack.c.l.s4 1966171168
    %v6251 = vunpack.c.0.s8 %v6250
    %v6252 = vlaneseq
    %v6253 = vshrl.u32 %v6252, 7
    %v6254 = vsub.s32 %v6251, %v6253
    %v6255 = vrot.slane %v6241, %v6254
    %v6256 = vcombine.low %v6248, %v6255
    %v6258 = vunpack.c.l.s4 1966171168
    %v6259 = vunpack.c.0.s8 %v6258
    %v6260 = vlaneseq
    %v6261 = vshrl.u32 %v6260, 7
    %v6262 = vsub.s32 %v6259, %v6261
    %v6263 = vrot.slane %v6192, %v6262
    %v6265 = vunpack.c.l.s4 1966171168
    %v6266 = vunpack.c.0.s8 %v6265
    %v6267 = vlaneseq
    %v6268 = vshrl.u32 %v6267, 7
    %v6269 = vsub.s32 %v6266, %v6268
    %v6270 = vrot.slane %v6263, %v6269
    %v6271 = vcombine.low %v5872, %v5953
    %v6272 = vcombine.low %v6001, %v5884
    %v6273 = vcombine.low %v6049, %v6097
    %v6274 = vcombine.low %v5897, %v6145
    %v6276 = vunpack.c.l.s4 1966171168
    %v6277 = vunpack.c.0.s8 %v6276
    %v6278 = vlaneseq
    %v6279 = vshrl.u32 %v6278, 7
    %v6280 = vsub.s32 %v6277, %v6279
    %v6281 = vrot.slane %v6271, %v6280
    %v6283 = vunpack.c.l.s4 1966171168
    %v6284 = vunpack.c.0.s8 %v6283
    %v6285 = vlaneseq
    %v6286 = vshrl.u32 %v6285, 7
    %v6287 = vsub.s32 %v6284, %v6286
    %v6288 = vrot.slane %v6272, %v6287
    %v6290 = vunpack.c.l.s4 1966171168
    %v6291 = vunpack.c.0.s8 %v6290
    %v6292 = vlaneseq
    %v6293 = vshrl.u32 %v6292, 7
    %v6294 = vsub.s32 %v6291, %v6293
    %v6295 = vrot.slane %v6273, %v6294
    %v6297 = vunpack.c.l.s4 1966171168
    %v6298 = vunpack.c.0.s8 %v6297
    %v6299 = vlaneseq
    %v6300 = vshrl.u32 %v6299, 7
    %v6301 = vsub.s32 %v6298, %v6300
    %v6302 = vrot.slane %v6274, %v6301
    %v6303 = vcombine.low %v6281, %v6288
    %v6304 = vcombine.low %v6295, %v6302
    %v6306 = vunpack.c.l.s4 1966171168
    %v6307 = vunpack.c.0.s8 %v6306
    %v6308 = vlaneseq
    %v6309 = vshrl.u32 %v6308, 7
    %v6310 = vsub.s32 %v6307, %v6309
    %v6311 = vrot.slane %v6303, %v6310
    %v6313 = vunpack.c.l.s4 1966171168
    %v6314 = vunpack.c.0.s8 %v6313
    %v6315 = vlaneseq
    %v6316 = vshrl.u32 %v6315, 7
    %v6317 = vsub.s32 %v6314, %v6316
    %v6318 = vrot.slane %v6304, %v6317
    %v6319 = vcombine.low %v6311, %v6318
    %v6321 = vunpack.c.l.s4 1966171168
    %v6322 = vunpack.c.0.s8 %v6321
    %v6323 = vlaneseq
    %v6324 = vshrl.u32 %v6323, 7
    %v6325 = vsub.s32 %v6322, %v6324
    %v6326 = vrot.slane %v6193, %v6325
    %v6328 = vunpack.c.l.s4 1966171168
    %v6329 = vunpack.c.0.s8 %v6328
    %v6330 = vlaneseq
    %v6331 = vshrl.u32 %v6330, 7
    %v6332 = vsub.s32 %v6329, %v6331
    %v6333 = vrot.slane %v6326, %v6332
    %v6334 = vcombine.low %v5873, %v5960
    %v6335 = vcombine.low %v6002, %v5885
    %v6336 = vcombine.low %v6056, %v6098
    %v6337 = vcombine.low %v5898, %v6152
    %v6339 = vunpack.c.l.s4 1966171168
    %v6340 = vunpack.c.0.s8 %v6339
    %v6341 = vlaneseq
    %v6342 = vshrl.u32 %v6341, 7
    %v6343 = vsub.s32 %v6340, %v6342
    %v6344 = vrot.slane %v6334, %v6343
    %v6346 = vunpack.c.l.s4 1966171168
    %v6347 = vunpack.c.0.s8 %v6346
    %v6348 = vlaneseq
    %v6349 = vshrl.u32 %v6348, 7
    %v6350 = vsub.s32 %v6347, %v6349
    %v6351 = vrot.slane %v6335, %v6350
    %v6353 = vunpack.c.l.s4 1966171168
    %v6354 = vunpack.c.0.s8 %v6353
    %v6355 = vlaneseq
    %v6356 = vshrl.u32 %v6355, 7
    %v6357 = vsub.s32 %v6354, %v6356
    %v6358 = vrot.slane %v6336, %v6357
    %v6360 = vunpack.c.l.s4 1966171168
    %v6361 = vunpack.c.0.s8 %v6360
    %v6362 = vlaneseq
    %v6363 = vshrl.u32 %v6362, 7
    %v6364 = vsub.s32 %v6361, %v6363
    %v6365 = vrot.slane %v6337, %v6364
    %v6366 = vcombine.low %v6344, %v6351
    %v6367 = vcombine.low %v6358, %v6365
    %v6369 = vunpack.c.l.s4 1966171168
    %v6370 = vunpack.c.0.s8 %v6369
    %v6371 = vlaneseq
    %v6372 = vshrl.u32 %v6371, 7
    %v6373 = vsub.s32 %v6370, %v6372
    %v6374 = vrot.slane %v6366, %v6373
    %v6376 = vunpack.c.l.s4 1966171168
    %v6377 = vunpack.c.0.s8 %v6376
    %v6378 = vlaneseq
    %v6379 = vshrl.u32 %v6378, 7
    %v6380 = vsub.s32 %v6377, %v6379
    %v6381 = vrot.slane %v6367, %v6380
    %v6382 = vcombine.low %v6374, %v6381
    %v6384 = vunpack.c.l.s4 1966171168
    %v6385 = vunpack.c.0.s8 %v6384
    %v6386 = vlaneseq
    %v6387 = vshrl.u32 %v6386, 7
    %v6388 = vsub.s32 %v6385, %v6387
    %v6389 = vrot.slane %v6194, %v6388
    %v6391 = vunpack.c.l.s4 1966171168
    %v6392 = vunpack.c.0.s8 %v6391
    %v6393 = vlaneseq
    %v6394 = vshrl.u32 %v6393, 7
    %v6395 = vsub.s32 %v6392, %v6394
    %v6396 = vrot.slane %v6389, %v6395
    %v6397 = vcombine.low %v5874, %v5967
    %v6398 = vcombine.low %v6003, %v5886
    %v6399 = vcombine.low %v6063, %v6099
    %v6400 = vcombine.low %v5899, %v6159
    %v6402 = vunpack.c.l.s4 1966171168
    %v6403 = vunpack.c.0.s8 %v6402
    %v6404 = vlaneseq
    %v6405 = vshrl.u32 %v6404, 7
    %v6406 = vsub.s32 %v6403, %v6405
    %v6407 = vrot.slane %v6397, %v6406
    %v6409 = vunpack.c.l.s4 1966171168
    %v6410 = vunpack.c.0.s8 %v6409
    %v6411 = vlaneseq
    %v6412 = vshrl.u32 %v6411, 7
    %v6413 = vsub.s32 %v6410, %v6412
    %v6414 = vrot.slane %v6398, %v6413
    %v6416 = vunpack.c.l.s4 1966171168
    %v6417 = vunpack.c.0.s8 %v6416
    %v6418 = vlaneseq
    %v6419 = vshrl.u32 %v6418, 7
    %v6420 = vsub.s32 %v6417, %v6419
    %v6421 = vrot.slane %v6399, %v6420
    %v6423 = vunpack.c.l.s4 1966171168
    %v6424 = vunpack.c.0.s8 %v6423
    %v6425 = vlaneseq
    %v6426 = vshrl.u32 %v6425, 7
    %v6427 = vsub.s32 %v6424, %v6426
    %v6428 = vrot.slane %v6400, %v6427
    %v6429 = vcombine.low %v6407, %v6414
    %v6430 = vcombine.low %v6421, %v6428
    %v6432 = vunpack.c.l.s4 1966171168
    %v6433 = vunpack.c.0.s8 %v6432
    %v6434 = vlaneseq
    %v6435 = vshrl.u32 %v6434, 7
    %v6436 = vsub.s32 %v6433, %v6435
    %v6437 = vrot.slane %v6429, %v6436
    %v6439 = vunpack.c.l.s4 1966171168
    %v6440 = vunpack.c.0.s8 %v6439
    %v6441 = vlaneseq
    %v6442 = vshrl.u32 %v6441, 7
    %v6443 = vsub.s32 %v6440, %v6442
    %v6444 = vrot.slane %v6430, %v6443
    %v6445 = vcombine.low %v6437, %v6444
    %v6447 = vunpack.c.l.s4 1966171168
    %v6448 = vunpack.c.0.s8 %v6447
    %v6449 = vlaneseq
    %v6450 = vshrl.u32 %v6449, 7
    %v6451 = vsub.s32 %v6448, %v6450
    %v6452 = vrot.slane %v6195, %v6451
    %v6454 = vunpack.c.l.s4 1966171168
    %v6455 = vunpack.c.0.s8 %v6454
    %v6456 = vlaneseq
    %v6457 = vshrl.u32 %v6456, 7
    %v6458 = vsub.s32 %v6455, %v6457
    %v6459 = vrot.slane %v6452, %v6458
    %v6460 = vld [vmem:[%s5] sm:$0xf]
    %v6461 = vld [vmem:[%s5 + $0x4] sm:$0xf]
    %v6462 = vld [vmem:[%s5 + $0x8] sm:$0xf]
    %v6463 = vld [vmem:[%s5 + $0xc] sm:$0xf]
    %v6464 = vld [vmem:[%s5 + $0x10] sm:$0xf]
    %v6465 = vld [vmem:[%s5 + $0x14] sm:$0xf]
    %v6466 = vld [vmem:[%s5 + $0x18] sm:$0xf]
    %v6467 = vld [vmem:[%s5 + $0x1c] sm:$0xf]
    %v6468 = vld [vmem:[%s5 + $0x20] sm:$0xf]
    %v6469 = vld [vmem:[%s5 + $0x24] sm:$0xf]
    %v6470 = vld [vmem:[%s5 + $0x28] sm:$0xf]
    %v6471 = vld [vmem:[%s5 + $0x2c] sm:$0xf]
    %v6472 = vld [vmem:[%s5 + $0x30] sm:$0xf]
    %v6473 = vld [vmem:[%s5 + $0x34] sm:$0xf]
    %v6474 = vld [vmem:[%s5 + $0x38] sm:$0xf]
    %v6475 = vld [vmem:[%s5 + $0x3c] sm:$0xf]
    %v6476 = vld [vmem:[%s5 + $0x40] sm:$0xf]
    %v6477 = vld [vmem:[%s5 + $0x44] sm:$0xf]
    %v6478 = vld [vmem:[%s5 + $0x48] sm:$0xf]
    %v6479 = vld [vmem:[%s5 + $0x4c] sm:$0xf]
    %v6480 = vld [vmem:[%s5 + $0x50] sm:$0xf]
    %v6481 = vld [vmem:[%s5 + $0x54] sm:$0xf]
    %v6482 = vld [vmem:[%s5 + $0x58] sm:$0xf]
    %v6483 = vld [vmem:[%s5 + $0x5c] sm:$0xf]
    %v6484 = vld [vmem:[%s5 + $0x60] sm:$0xf]
    %v6485 = vld [vmem:[%s5 + $0x64] sm:$0xf]
    %v6486 = vld [vmem:[%s5 + $0x68] sm:$0xf]
    %v6487 = vld [vmem:[%s5 + $0x6c] sm:$0xf]
    %v6488 = vld [vmem:[%s5 + $0x70] sm:$0xf]
    %v6489 = vld [vmem:[%s5 + $0x74] sm:$0xf]
    %v6490 = vld [vmem:[%s5 + $0x78] sm:$0xf]
    %v6491 = vld [vmem:[%s5 + $0x7c] sm:$0xf]
    %v6492 = vld [vmem:[%s5 + $0x80] sm:$0xf]
    %v6493 = vld [vmem:[%s5 + $0x84] sm:$0xf]
    %v6494 = vld [vmem:[%s5 + $0x88] sm:$0xf]
    %v6495 = vld [vmem:[%s5 + $0x8c] sm:$0xf]
    %v6496 = vld [vmem:[%s5 + $0x90] sm:$0xf]
    %v6497 = vld [vmem:[%s5 + $0x94] sm:$0xf]
    %v6498 = vld [vmem:[%s5 + $0x98] sm:$0xf]
    %v6499 = vld [vmem:[%s5 + $0x9c] sm:$0xf]
    %v6500 = vld [vmem:[%s5 + $0xa0] sm:$0xf]
    %v6501 = vld [vmem:[%s5 + $0xa4] sm:$0xf]
    %v6502 = vld [vmem:[%s5 + $0xa8] sm:$0xf]
    %v6503 = vld [vmem:[%s5 + $0xac] sm:$0xf]
    %v6504 = vld [vmem:[%s5 + $0xb0] sm:$0xf]
    %v6505 = vld [vmem:[%s5 + $0xb4] sm:$0xf]
    %v6506 = vld [vmem:[%s5 + $0xb8] sm:$0xf]
    %v6507 = vld [vmem:[%s5 + $0xbc] sm:$0xf]
    %v6508 = vld [vmem:[%s5 + $0xc0] sm:$0xf]
    %v6509 = vld [vmem:[%s5 + $0xc4] sm:$0xf]
    %v6510 = vld [vmem:[%s5 + $0xc8] sm:$0xf]
    %v6511 = vld [vmem:[%s5 + $0xcc] sm:$0xf]
    %v6512 = vld [vmem:[%s5 + $0xd0] sm:$0xf]
    %v6513 = vld [vmem:[%s5 + $0xd4] sm:$0xf]
    %v6514 = vld [vmem:[%s5 + $0xd8] sm:$0xf]
    %v6515 = vld [vmem:[%s5 + $0xdc] sm:$0xf]
    %v6516 = vld [vmem:[%s5 + $0xe0] sm:$0xf]
    %v6517 = vld [vmem:[%s5 + $0xe4] sm:$0xf]
    %v6518 = vld [vmem:[%s5 + $0xe8] sm:$0xf]
    %v6519 = vld [vmem:[%s5 + $0xec] sm:$0xf]
    %v6520 = vld [vmem:[%s5 + $0xf0] sm:$0xf]
    %v6521 = vld [vmem:[%s5 + $0xf4] sm:$0xf]
    %v6522 = vld [vmem:[%s5 + $0xf8] sm:$0xf]
    %v6523 = vld [vmem:[%s5 + $0xfc] sm:$0xf]
    %v6524 = vld [vmem:[%s5 + $0x100] sm:$0xf]
    %v6525 = vld [vmem:[%s5 + $0x104] sm:$0xf]
    %v6526 = vld [vmem:[%s5 + $0x108] sm:$0xf]
    %v6527 = vld [vmem:[%s5 + $0x10c] sm:$0xf]
    %v6528 = vld [vmem:[%s5 + $0x110] sm:$0xf]
    %v6529 = vld [vmem:[%s5 + $0x114] sm:$0xf]
    %v6530 = vld [vmem:[%s5 + $0x118] sm:$0xf]
    %v6531 = vld [vmem:[%s5 + $0x11c] sm:$0xf]
    %v6532 = vld [vmem:[%s5 + $0x120] sm:$0xf]
    %v6533 = vld [vmem:[%s5 + $0x124] sm:$0xf]
    %v6534 = vld [vmem:[%s5 + $0x128] sm:$0xf]
    %v6535 = vld [vmem:[%s5 + $0x12c] sm:$0xf]
    %v6536 = vld [vmem:[%s5 + $0x130] sm:$0xf]
    %v6537 = vld [vmem:[%s5 + $0x134] sm:$0xf]
    %v6538 = vld [vmem:[%s5 + $0x138] sm:$0xf]
    %v6539 = vld [vmem:[%s5 + $0x13c] sm:$0xf]
    %v6540 = vld [vmem:[%s5 + $0x140] sm:$0xf]
    %v6541 = vld [vmem:[%s5 + $0x144] sm:$0xf]
    %v6542 = vld [vmem:[%s5 + $0x148] sm:$0xf]
    %v6543 = vld [vmem:[%s5 + $0x14c] sm:$0xf]
    %v6544 = vld [vmem:[%s5 + $0x150] sm:$0xf]
    %v6545 = vld [vmem:[%s5 + $0x154] sm:$0xf]
    %v6546 = vld [vmem:[%s5 + $0x158] sm:$0xf]
    %v6547 = vld [vmem:[%s5 + $0x15c] sm:$0xf]
    %v6548 = vld [vmem:[%s5 + $0x160] sm:$0xf]
    %v6549 = vld [vmem:[%s5 + $0x164] sm:$0xf]
    %v6550 = vld [vmem:[%s5 + $0x168] sm:$0xf]
    %v6551 = vld [vmem:[%s5 + $0x16c] sm:$0xf]
    %v6552 = vld [vmem:[%s5 + $0x170] sm:$0xf]
    %v6553 = vld [vmem:[%s5 + $0x174] sm:$0xf]
    %v6554 = vld [vmem:[%s5 + $0x178] sm:$0xf]
    %v6555 = vld [vmem:[%s5 + $0x17c] sm:$0xf]
    %v6556 = vld [vmem:[%s5 + $0x180] sm:$0xf]
    %v6557 = vld [vmem:[%s5 + $0x184] sm:$0xf]
    %v6558 = vld [vmem:[%s5 + $0x188] sm:$0xf]
    %v6559 = vld [vmem:[%s5 + $0x18c] sm:$0xf]
    %v6560 = vld [vmem:[%s5 + $0x190] sm:$0xf]
    %v6561 = vld [vmem:[%s5 + $0x194] sm:$0xf]
    %v6562 = vld [vmem:[%s5 + $0x198] sm:$0xf]
    %v6563 = vld [vmem:[%s5 + $0x19c] sm:$0xf]
    %v6564 = vld [vmem:[%s5 + $0x1a0] sm:$0xf]
    %v6565 = vld [vmem:[%s5 + $0x1a4] sm:$0xf]
    %v6566 = vld [vmem:[%s5 + $0x1a8] sm:$0xf]
    %v6567 = vld [vmem:[%s5 + $0x1ac] sm:$0xf]
    %v6568 = vld [vmem:[%s5 + $0x1b0] sm:$0xf]
    %v6569 = vld [vmem:[%s5 + $0x1b4] sm:$0xf]
    %v6570 = vld [vmem:[%s5 + $0x1b8] sm:$0xf]
    %v6571 = vld [vmem:[%s5 + $0x1bc] sm:$0xf]
    %v6572 = vld [vmem:[%s5 + $0x1c0] sm:$0xf]
    %v6573 = vld [vmem:[%s5 + $0x1c4] sm:$0xf]
    %v6574 = vld [vmem:[%s5 + $0x1c8] sm:$0xf]
    %v6575 = vld [vmem:[%s5 + $0x1cc] sm:$0xf]
    %v6576 = vld [vmem:[%s5 + $0x1d0] sm:$0xf]
    %v6577 = vld [vmem:[%s5 + $0x1d4] sm:$0xf]
    %v6578 = vld [vmem:[%s5 + $0x1d8] sm:$0xf]
    %v6579 = vld [vmem:[%s5 + $0x1dc] sm:$0xf]
    %v6580 = vld [vmem:[%s5 + $0x1e0] sm:$0xf]
    %v6581 = vld [vmem:[%s5 + $0x1e4] sm:$0xf]
    %v6582 = vld [vmem:[%s5 + $0x1e8] sm:$0xf]
    %v6583 = vld [vmem:[%s5 + $0x1ec] sm:$0xf]
    %v6584 = vld [vmem:[%s5 + $0x1f0] sm:$0xf]
    %v6585 = vld [vmem:[%s5 + $0x1f4] sm:$0xf]
    %v6586 = vld [vmem:[%s5 + $0x1f8] sm:$0xf]
    %v6587 = vld [vmem:[%s5 + $0x1fc] sm:$0xf]
    %v6588 = vld [vmem:[%s5 + $0x200] sm:$0xf]
    %v6589 = vld [vmem:[%s5 + $0x204] sm:$0xf]
    %v6590 = vld [vmem:[%s5 + $0x208] sm:$0xf]
    %v6591 = vld [vmem:[%s5 + $0x20c] sm:$0xf]
    %v6592 = vld [vmem:[%s5 + $0x210] sm:$0xf]
    %v6593 = vld [vmem:[%s5 + $0x214] sm:$0xf]
    %v6594 = vld [vmem:[%s5 + $0x218] sm:$0xf]
    %v6595 = vld [vmem:[%s5 + $0x21c] sm:$0xf]
    %v6596 = vld [vmem:[%s5 + $0x220] sm:$0xf]
    %v6597 = vld [vmem:[%s5 + $0x224] sm:$0xf]
    %v6598 = vld [vmem:[%s5 + $0x228] sm:$0xf]
    %v6599 = vld [vmem:[%s5 + $0x22c] sm:$0xf]
    %v6600 = vld [vmem:[%s5 + $0x230] sm:$0xf]
    %v6601 = vld [vmem:[%s5 + $0x234] sm:$0xf]
    %v6602 = vld [vmem:[%s5 + $0x238] sm:$0xf]
    %v6603 = vld [vmem:[%s5 + $0x23c] sm:$0xf]
    %v6604 = vld [vmem:[%s6] sm:$0x1]
    %v6606 = vlaneseq
    %v6607 = vshrl.u32 %v6606, 7
    %v6608 = vsub.s32 0, %v6607
    %v6609 = vrot.slane %v6604, %v6608
    %v6611 = vcombine.low %v6256, %v6319
    %v6612 = vcombine.high %v6256, %v6319
    %v6613 = vcombine.low %v6382, %v6445
    %v6614 = vcombine.high %v6382, %v6445
    %v6616 = vunpack.c.l.s4 1966171168
    %v6617 = vunpack.c.0.s8 %v6616
    %v6618 = vlaneseq
    %v6619 = vshrl.u32 %v6618, 7
    %v6620 = vsub.s32 %v6617, %v6619
    %v6621 = vrot.slane %v6611, %v6620
    %v6623 = vunpack.c.l.s4 1966171168
    %v6624 = vunpack.c.0.s8 %v6623
    %v6625 = vlaneseq
    %v6626 = vshrl.u32 %v6625, 7
    %v6627 = vsub.s32 %v6624, %v6626
    %v6628 = vrot.slane %v6612, %v6627
    %v6630 = vunpack.c.l.s4 1966171168
    %v6631 = vunpack.c.0.s8 %v6630
    %v6632 = vlaneseq
    %v6633 = vshrl.u32 %v6632, 7
    %v6634 = vsub.s32 %v6631, %v6633
    %v6635 = vrot.slane %v6613, %v6634
    %v6637 = vunpack.c.l.s4 1966171168
    %v6638 = vunpack.c.0.s8 %v6637
    %v6639 = vlaneseq
    %v6640 = vshrl.u32 %v6639, 7
    %v6641 = vsub.s32 %v6638, %v6640
    %v6642 = vrot.slane %v6614, %v6641
    %v6643 = vcombine.low %v6621, %v6635
    %v6644 = vcombine.high %v6621, %v6635
    %v6645 = vcombine.low %v6628, %v6642
    %v6646 = vcombine.high %v6628, %v6642
    %v6648 = vunpack.c.l.s4 1966171168
    %v6649 = vunpack.c.0.s8 %v6648
    %v6650 = vlaneseq
    %v6651 = vshrl.u32 %v6650, 7
    %v6652 = vsub.s32 %v6649, %v6651
    %v6653 = vrot.slane %v6643, %v6652
    %v6655 = vunpack.c.l.s4 1966171168
    %v6656 = vunpack.c.0.s8 %v6655
    %v6657 = vlaneseq
    %v6658 = vshrl.u32 %v6657, 7
    %v6659 = vsub.s32 %v6656, %v6658
    %v6660 = vrot.slane %v6645, %v6659
    %v6662 = vunpack.c.l.s4 1966171168
    %v6663 = vunpack.c.0.s8 %v6662
    %v6664 = vlaneseq
    %v6665 = vshrl.u32 %v6664, 7
    %v6666 = vsub.s32 %v6663, %v6665
    %v6667 = vrot.slane %v6644, %v6666
    %v6669 = vunpack.c.l.s4 1966171168
    %v6670 = vunpack.c.0.s8 %v6669
    %v6671 = vlaneseq
    %v6672 = vshrl.u32 %v6671, 7
    %v6673 = vsub.s32 %v6670, %v6672
    %v6674 = vrot.slane %v6646, %v6673
    %v6675 = vcombine.high %v6653, %v6653
    %v6676 = vcombine.high %v6660, %v6660
    %v6677 = vcombine.high %v6667, %v6667
    %v6678 = vcombine.high %v6674, %v6674
    %v6679 = vcombine.low %v6270, %v6333
    %v6680 = vcombine.low %v6396, %v6459
    %v6682 = vunpack.c.l.s4 1966171168
    %v6683 = vunpack.c.0.s8 %v6682
    %v6684 = vlaneseq
    %v6685 = vshrl.u32 %v6684, 7
    %v6686 = vsub.s32 %v6683, %v6685
    %v6687 = vrot.slane %v6679, %v6686
    %v6689 = vunpack.c.l.s4 1966171168
    %v6690 = vunpack.c.0.s8 %v6689
    %v6691 = vlaneseq
    %v6692 = vshrl.u32 %v6691, 7
    %v6693 = vsub.s32 %v6690, %v6692
    %v6694 = vrot.slane %v6680, %v6693
    %v6695 = vcombine.low %v6687, %v6694
    %v6697 = vunpack.c.l.s4 1966171168
    %v6698 = vunpack.c.0.s8 %v6697
    %v6699 = vlaneseq
    %v6700 = vshrl.u32 %v6699, 7
    %v6701 = vsub.s32 %v6698, %v6700
    %v6702 = vrot.slane %v6695, %v6701
    %v6856 = vunpack.c.l.b16 %v6460
    %v6857 = vunpack.c.l.b16 %v6461
    %v6858 = vunpack.c.l.b16 %v6462
    %v6859 = vunpack.c.l.b16 %v6463
    %v6860 = vunpack.c.l.b16 %v6464
    %v6861 = vunpack.c.l.b16 %v6465
    %v6862 = vunpack.c.l.b16 %v6466
    %v6863 = vunpack.c.l.b16 %v6467
    %v6864 = vunpack.c.l.b16 %v6468
    %v6865 = vunpack.c.l.b16 %v6469
    %v6866 = vunpack.c.l.b16 %v6470
    %v6867 = vunpack.c.l.b16 %v6471
    %v6868 = vunpack.c.l.b16 %v6472
    %v6869 = vunpack.c.l.b16 %v6473
    %v6870 = vunpack.c.l.b16 %v6474
    %v6871 = vunpack.c.l.b16 %v6475
    %v6872 = vunpack.c.l.b16 %v6476
    %v6873 = vunpack.c.l.b16 %v6477
    %v6874 = vunpack.c.l.b16 %v6478
    %v6875 = vunpack.c.l.b16 %v6479
    %v6876 = vunpack.c.l.b16 %v6480
    %v6877 = vunpack.c.l.b16 %v6481
    %v6878 = vunpack.c.l.b16 %v6482
    %v6879 = vunpack.c.l.b16 %v6483
    %v6880 = vunpack.c.l.b16 %v6484
    %v6881 = vunpack.c.l.b16 %v6485
    %v6882 = vunpack.c.l.b16 %v6486
    %v6883 = vunpack.c.l.b16 %v6487
    %v6884 = vunpack.c.l.b16 %v6488
    %v6885 = vunpack.c.l.b16 %v6489
    %v6886 = vunpack.c.l.b16 %v6490
    %v6887 = vunpack.c.l.b16 %v6491
    %v6888 = vunpack.c.l.b16 %v6492
    %v6889 = vunpack.c.l.b16 %v6493
    %v6890 = vunpack.c.l.b16 %v6494
    %v6891 = vunpack.c.l.b16 %v6495
    %v6892 = vunpack.c.l.b16 %v6496
    %v6893 = vunpack.c.l.b16 %v6497
    %v6894 = vunpack.c.l.b16 %v6498
    %v6895 = vunpack.c.l.b16 %v6499
    %v6896 = vunpack.c.l.b16 %v6500
    %v6897 = vunpack.c.l.b16 %v6501
    %v6898 = vunpack.c.l.b16 %v6502
    %v6899 = vunpack.c.l.b16 %v6503
    %v6900 = vunpack.c.l.b16 %v6504
    %v6901 = vunpack.c.l.b16 %v6505
    %v6902 = vunpack.c.l.b16 %v6506
    %v6903 = vunpack.c.l.b16 %v6507
    %v6904 = vunpack.c.l.b16 %v6508
    %v6905 = vunpack.c.l.b16 %v6509
    %v6906 = vunpack.c.l.b16 %v6510
    %v6907 = vunpack.c.l.b16 %v6511
    %v6908 = vunpack.c.l.b16 %v6512
    %v6909 = vunpack.c.l.b16 %v6513
    %v6910 = vunpack.c.l.b16 %v6514
    %v6911 = vunpack.c.l.b16 %v6515
    %v6912 = vunpack.c.l.b16 %v6516
    %v6913 = vunpack.c.l.b16 %v6517
    %v6914 = vunpack.c.l.b16 %v6518
    %v6915 = vunpack.c.l.b16 %v6519
    %v6916 = vunpack.c.l.b16 %v6520
    %v6917 = vunpack.c.l.b16 %v6521
    %v6918 = vunpack.c.l.b16 %v6522
    %v6919 = vunpack.c.l.b16 %v6523
    %v6920 = vunpack.c.l.b16 %v6524
    %v6921 = vunpack.c.l.b16 %v6525
    %v6922 = vunpack.c.l.b16 %v6526
    %v6923 = vunpack.c.l.b16 %v6527
    %v6924 = vunpack.c.l.b16 %v6528
    %v6925 = vunpack.c.l.b16 %v6529
    %v6926 = vunpack.c.l.b16 %v6530
    %v6927 = vunpack.c.l.b16 %v6531
    %v6928 = vunpack.c.l.b16 %v6532
    %v6929 = vunpack.c.l.b16 %v6533
    %v6930 = vunpack.c.l.b16 %v6534
    %v6931 = vunpack.c.l.b16 %v6535
    %v6932 = vunpack.c.l.b16 %v6536
    %v6933 = vunpack.c.l.b16 %v6537
    %v6934 = vunpack.c.l.b16 %v6538
    %v6935 = vunpack.c.l.b16 %v6539
    %v6936 = vunpack.c.l.b16 %v6540
    %v6937 = vunpack.c.l.b16 %v6541
    %v6938 = vunpack.c.l.b16 %v6542
    %v6939 = vunpack.c.l.b16 %v6543
    %v6940 = vunpack.c.l.b16 %v6544
    %v6941 = vunpack.c.l.b16 %v6545
    %v6942 = vunpack.c.l.b16 %v6546
    %v6943 = vunpack.c.l.b16 %v6547
    %v6944 = vunpack.c.l.b16 %v6548
    %v6945 = vunpack.c.l.b16 %v6549
    %v6946 = vunpack.c.l.b16 %v6550
    %v6947 = vunpack.c.l.b16 %v6551
    %v6948 = vunpack.c.l.b16 %v6552
    %v6949 = vunpack.c.l.b16 %v6553
    %v6950 = vunpack.c.l.b16 %v6554
    %v6951 = vunpack.c.l.b16 %v6555
    %v6952 = vunpack.c.l.b16 %v6556
    %v6953 = vunpack.c.l.b16 %v6557
    %v6954 = vunpack.c.l.b16 %v6558
    %v6955 = vunpack.c.l.b16 %v6559
    %v6956 = vunpack.c.l.b16 %v6560
    %v6957 = vunpack.c.l.b16 %v6561
    %v6958 = vunpack.c.l.b16 %v6562
    %v6959 = vunpack.c.l.b16 %v6563
    %v6960 = vunpack.c.l.b16 %v6564
    %v6961 = vunpack.c.l.b16 %v6565
    %v6962 = vunpack.c.l.b16 %v6566
    %v6963 = vunpack.c.l.b16 %v6567
    %v6964 = vunpack.c.l.b16 %v6568
    %v6965 = vunpack.c.l.b16 %v6569
    %v6966 = vunpack.c.l.b16 %v6570
    %v6967 = vunpack.c.l.b16 %v6571
    %v6968 = vunpack.c.l.b16 %v6572
    %v6969 = vunpack.c.l.b16 %v6573
    %v6970 = vunpack.c.l.b16 %v6574
    %v6971 = vunpack.c.l.b16 %v6575
    %v6972 = vunpack.c.l.b16 %v6576
    %v6973 = vunpack.c.l.b16 %v6577
    %v6974 = vunpack.c.l.b16 %v6578
    %v6975 = vunpack.c.l.b16 %v6579
    %v6976 = vunpack.c.l.b16 %v6580
    %v6977 = vunpack.c.l.b16 %v6581
    %v6978 = vunpack.c.l.b16 %v6582
    %v6979 = vunpack.c.l.b16 %v6583
    %v6980 = vunpack.c.l.b16 %v6584
    %v6981 = vunpack.c.l.b16 %v6585
    %v6982 = vunpack.c.l.b16 %v6586
    %v6983 = vunpack.c.l.b16 %v6587
    %v6984 = vunpack.c.l.b16 %v6588
    %v6985 = vunpack.c.l.b16 %v6589
    %v6986 = vunpack.c.l.b16 %v6590
    %v6987 = vunpack.c.l.b16 %v6591
    %v6988 = vunpack.c.l.b16 %v6592
    %v6989 = vunpack.c.l.b16 %v6593
    %v6990 = vunpack.c.l.b16 %v6594
    %v6991 = vunpack.c.l.b16 %v6595
    %v6992 = vunpack.c.l.b16 %v6596
    %v6993 = vunpack.c.l.b16 %v6597
    %v6994 = vunpack.c.l.b16 %v6598
    %v6995 = vunpack.c.l.b16 %v6599
    %v6996 = vunpack.c.l.b16 %v6600
    %v6997 = vunpack.c.l.b16 %v6601
    %v6998 = vunpack.c.l.b16 %v6602
    %v6999 = vunpack.c.l.b16 %v6603
    %v7000 = vpack.c.b16 %v6857, %v6856
    %v7001 = vpack.c.b16 %v6859, %v6858
    %v7002 = vpack.c.b16 %v6861, %v6860
    %v7003 = vpack.c.b16 %v6863, %v6862
    %v7004 = vpack.c.b16 %v6865, %v6864
    %v7005 = vpack.c.b16 %v6867, %v6866
    %v7006 = vpack.c.b16 %v6869, %v6868
    %v7007 = vpack.c.b16 %v6871, %v6870
    %v7008 = vpack.c.b16 %v6873, %v6872
    %v7009 = vpack.c.b16 %v6875, %v6874
    %v7010 = vpack.c.b16 %v6877, %v6876
    %v7011 = vpack.c.b16 %v6879, %v6878
    %v7012 = vpack.c.b16 %v6881, %v6880
    %v7013 = vpack.c.b16 %v6883, %v6882
    %v7014 = vpack.c.b16 %v6885, %v6884
    %v7015 = vpack.c.b16 %v6887, %v6886
    %v7016 = vpack.c.b16 %v6889, %v6888
    %v7017 = vpack.c.b16 %v6891, %v6890
    %v7018 = vpack.c.b16 %v6893, %v6892
    %v7019 = vpack.c.b16 %v6895, %v6894
    %v7020 = vpack.c.b16 %v6897, %v6896
    %v7021 = vpack.c.b16 %v6899, %v6898
    %v7022 = vpack.c.b16 %v6901, %v6900
    %v7023 = vpack.c.b16 %v6903, %v6902
    %v7024 = vpack.c.b16 %v6905, %v6904
    %v7025 = vpack.c.b16 %v6907, %v6906
    %v7026 = vpack.c.b16 %v6909, %v6908
    %v7027 = vpack.c.b16 %v6911, %v6910
    %v7028 = vpack.c.b16 %v6913, %v6912
    %v7029 = vpack.c.b16 %v6915, %v6914
    %v7030 = vpack.c.b16 %v6917, %v6916
    %v7031 = vpack.c.b16 %v6919, %v6918
    %v7032 = vpack.c.b16 %v6921, %v6920
    %v7033 = vpack.c.b16 %v6923, %v6922
    %v7034 = vpack.c.b16 %v6925, %v6924
    %v7035 = vpack.c.b16 %v6927, %v6926
    %v7036 = vpack.c.b16 %v6929, %v6928
    %v7037 = vpack.c.b16 %v6931, %v6930
    %v7038 = vpack.c.b16 %v6933, %v6932
    %v7039 = vpack.c.b16 %v6935, %v6934
    %v7040 = vpack.c.b16 %v6937, %v6936
    %v7041 = vpack.c.b16 %v6939, %v6938
    %v7042 = vpack.c.b16 %v6941, %v6940
    %v7043 = vpack.c.b16 %v6943, %v6942
    %v7044 = vpack.c.b16 %v6945, %v6944
    %v7045 = vpack.c.b16 %v6947, %v6946
    %v7046 = vpack.c.b16 %v6949, %v6948
    %v7047 = vpack.c.b16 %v6951, %v6950
    %v7048 = vpack.c.b16 %v6953, %v6952
    %v7049 = vpack.c.b16 %v6955, %v6954
    %v7050 = vpack.c.b16 %v6957, %v6956
    %v7051 = vpack.c.b16 %v6959, %v6958
    %v7052 = vpack.c.b16 %v6961, %v6960
    %v7053 = vpack.c.b16 %v6963, %v6962
    %v7054 = vpack.c.b16 %v6965, %v6964
    %v7055 = vpack.c.b16 %v6967, %v6966
    %v7056 = vpack.c.b16 %v6969, %v6968
    %v7057 = vpack.c.b16 %v6971, %v6970
    %v7058 = vpack.c.b16 %v6973, %v6972
    %v7059 = vpack.c.b16 %v6975, %v6974
    %v7060 = vpack.c.b16 %v6977, %v6976
    %v7061 = vpack.c.b16 %v6979, %v6978
    %v7062 = vpack.c.b16 %v6981, %v6980
    %v7063 = vpack.c.b16 %v6983, %v6982
    %v7064 = vpack.c.b16 %v6985, %v6984
    %v7065 = vpack.c.b16 %v6987, %v6986
    %v7066 = vpack.c.b16 %v6989, %v6988
    %v7067 = vpack.c.b16 %v6991, %v6990
    %v7068 = vpack.c.b16 %v6993, %v6992
    %v7069 = vpack.c.b16 %v6995, %v6994
    %v7070 = vpack.c.b16 %v6997, %v6996
    %v7071 = vpack.c.b16 %v6999, %v6998
    %7144 = vmatprep.subr.bf16.mxu0 0
    %7145 = vmatpush1.bf16.msra.mxu0 %v7007
    %7146 = vmatprep.subr.bf16.mxu0 0
    %7147 = vmatpush1.bf16.msra.mxu0 %v7006
    %7148 = vmatprep.subr.bf16.mxu0 0
    %7149 = vmatpush1.bf16.msra.mxu0 %v7005
    %7150 = vmatprep.subr.bf16.mxu0 0
    %7151 = vmatpush1.bf16.msra.mxu0 %v7004
    %7152 = vmatprep.subr.bf16.mxu0 0
    %7153 = vmatpush1.bf16.msra.mxu0 %v7003
    %7154 = vmatprep.subr.bf16.mxu0 0
    %7155 = vmatpush1.bf16.msra.mxu0 %v7002
    %7156 = vmatprep.subr.bf16.mxu0 0
    %7157 = vmatpush1.bf16.msra.mxu0 %v7001
    %7158 = vmatprep.subr.bf16.mxu0 0
    %7159 = vmatpush1.bf16.msra.mxu0 %v7000
    %7160 = vmatprep.subr.bf16.mxu0 0
    %7161 = vmatpush2.bf16.msra.mxu0 %v7015
    %7162 = vmatprep.subr.bf16.mxu0 0
    %7163 = vmatpush2.bf16.msra.mxu0 %v7014
    %7164 = vmatprep.subr.bf16.mxu0 0
    %7165 = vmatpush2.bf16.msra.mxu0 %v7013
    %7166 = vmatprep.subr.bf16.mxu0 0
    %7167 = vmatpush2.bf16.msra.mxu0 %v7012
    %7168 = vmatprep.subr.bf16.mxu0 0
    %7169 = vmatpush2.bf16.msra.mxu0 %v7011
    %7170 = vmatprep.subr.bf16.mxu0 0
    %7171 = vmatpush2.bf16.msra.mxu0 %v7010
    %7172 = vmatprep.subr.bf16.mxu0 0
    %7173 = vmatpush2.bf16.msra.mxu0 %v7009
    %7174 = vmatprep.subr.bf16.mxu0 0
    %7175 = vmatpush2.bf16.msra.mxu0 %v7008
    %7176 = vmatprep.mubr.bf16.mxu0 %v6667
    %7177 = vmatmul.mubr.bf16.gmra.mxu0 %v6653
    %v7178 = vpop.f32.mrf.mxu0
    %v7179 = vadd.f32 %v6609, %v7178
    %v7180 = vpop.f32.mrf.mxu0
    %v7181 = vpop.f32.mrf.mxu0
    %v7182 = vpop.f32.mrf.mxu0
    %7183 = vdwg.mxu0
    %7184 = vmatprep.subr.bf16.mxu0 0
    %7185 = vmatpush1.bf16.msra.mxu0 %v7023
    %7186 = vmatprep.subr.bf16.mxu0 0
    %7187 = vmatpush1.bf16.msra.mxu0 %v7022
    %7188 = vmatprep.subr.bf16.mxu0 0
    %7189 = vmatpush1.bf16.msra.mxu0 %v7021
    %7190 = vmatprep.subr.bf16.mxu0 0
    %7191 = vmatpush1.bf16.msra.mxu0 %v7020
    %7192 = vmatprep.subr.bf16.mxu0 0
    %7193 = vmatpush1.bf16.msra.mxu0 %v7019
    %7194 = vmatprep.subr.bf16.mxu0 0
    %7195 = vmatpush1.bf16.msra.mxu0 %v7018
    %7196 = vmatprep.subr.bf16.mxu0 0
    %7197 = vmatpush1.bf16.msra.mxu0 %v7017
    %7198 = vmatprep.subr.bf16.mxu0 0
    %7199 = vmatpush1.bf16.msra.mxu0 %v7016
    %7200 = vmatprep.subr.bf16.mxu0 0
    %7201 = vmatpush2.bf16.msra.mxu0 %v7031
    %7202 = vmatprep.subr.bf16.mxu0 0
    %7203 = vmatpush2.bf16.msra.mxu0 %v7030
    %7204 = vmatprep.subr.bf16.mxu0 0
    %7205 = vmatpush2.bf16.msra.mxu0 %v7029
    %7206 = vmatprep.subr.bf16.mxu0 0
    %7207 = vmatpush2.bf16.msra.mxu0 %v7028
    %7208 = vmatprep.subr.bf16.mxu0 0
    %7209 = vmatpush2.bf16.msra.mxu0 %v7027
    %7210 = vmatprep.subr.bf16.mxu0 0
    %7211 = vmatpush2.bf16.msra.mxu0 %v7026
    %7212 = vmatprep.subr.bf16.mxu0 0
    %7213 = vmatpush2.bf16.msra.mxu0 %v7025
    %7214 = vmatprep.subr.bf16.mxu0 0
    %7215 = vmatpush2.bf16.msra.mxu0 %v7024
    %7216 = vmatprep.mubr.bf16.mxu0 %v6677
    %7217 = vmatmul.mubr.bf16.gmra.mxu0 %v6675
    %v7218 = vpop.f32.mrf.mxu0
    %v7219 = vadd.f32 %v7179, %v7218
    %v7220 = vpop.f32.mrf.mxu0
    %v7221 = vpop.f32.mrf.mxu0
    %v7222 = vpop.f32.mrf.mxu0
    %7223 = vdwg.mxu0
    %7224 = vmatprep.subr.bf16.mxu0 0
    %7225 = vmatpush1.bf16.msra.mxu0 %v7039
    %7226 = vmatprep.subr.bf16.mxu0 0
    %7227 = vmatpush1.bf16.msra.mxu0 %v7038
    %7228 = vmatprep.subr.bf16.mxu0 0
    %7229 = vmatpush1.bf16.msra.mxu0 %v7037
    %7230 = vmatprep.subr.bf16.mxu0 0
    %7231 = vmatpush1.bf16.msra.mxu0 %v7036
    %7232 = vmatprep.subr.bf16.mxu0 0
    %7233 = vmatpush1.bf16.msra.mxu0 %v7035
    %7234 = vmatprep.subr.bf16.mxu0 0
    %7235 = vmatpush1.bf16.msra.mxu0 %v7034
    %7236 = vmatprep.subr.bf16.mxu0 0
    %7237 = vmatpush1.bf16.msra.mxu0 %v7033
    %7238 = vmatprep.subr.bf16.mxu0 0
    %7239 = vmatpush1.bf16.msra.mxu0 %v7032
    %7240 = vmatprep.subr.bf16.mxu0 0
    %7241 = vmatpush2.bf16.msra.mxu0 %v7047
    %7242 = vmatprep.subr.bf16.mxu0 0
    %7243 = vmatpush2.bf16.msra.mxu0 %v7046
    %7244 = vmatprep.subr.bf16.mxu0 0
    %7245 = vmatpush2.bf16.msra.mxu0 %v7045
    %7246 = vmatprep.subr.bf16.mxu0 0
    %7247 = vmatpush2.bf16.msra.mxu0 %v7044
    %7248 = vmatprep.subr.bf16.mxu0 0
    %7249 = vmatpush2.bf16.msra.mxu0 %v7043
    %7250 = vmatprep.subr.bf16.mxu0 0
    %7251 = vmatpush2.bf16.msra.mxu0 %v7042
    %7252 = vmatprep.subr.bf16.mxu0 0
    %7253 = vmatpush2.bf16.msra.mxu0 %v7041
    %7254 = vmatprep.subr.bf16.mxu0 0
    %7255 = vmatpush2.bf16.msra.mxu0 %v7040
    %7256 = vmatprep.mubr.bf16.mxu0 %v6674
    %7257 = vmatmul.mubr.bf16.gmra.mxu0 %v6660
    %v7258 = vpop.f32.mrf.mxu0
    %v7259 = vadd.f32 %v7219, %v7258
    %v7260 = vpop.f32.mrf.mxu0
    %v7261 = vpop.f32.mrf.mxu0
    %v7262 = vpop.f32.mrf.mxu0
    %7263 = vdwg.mxu0
    %7264 = vmatprep.subr.bf16.mxu0 0
    %7265 = vmatpush1.bf16.msra.mxu0 %v7055
    %7266 = vmatprep.subr.bf16.mxu0 0
    %7267 = vmatpush1.bf16.msra.mxu0 %v7054
    %7268 = vmatprep.subr.bf16.mxu0 0
    %7269 = vmatpush1.bf16.msra.mxu0 %v7053
    %7270 = vmatprep.subr.bf16.mxu0 0
    %7271 = vmatpush1.bf16.msra.mxu0 %v7052
    %7272 = vmatprep.subr.bf16.mxu0 0
    %7273 = vmatpush1.bf16.msra.mxu0 %v7051
    %7274 = vmatprep.subr.bf16.mxu0 0
    %7275 = vmatpush1.bf16.msra.mxu0 %v7050
    %7276 = vmatprep.subr.bf16.mxu0 0
    %7277 = vmatpush1.bf16.msra.mxu0 %v7049
    %7278 = vmatprep.subr.bf16.mxu0 0
    %7279 = vmatpush1.bf16.msra.mxu0 %v7048
    %7280 = vmatprep.subr.bf16.mxu0 0
    %7281 = vmatpush2.bf16.msra.mxu0 %v7063
    %7282 = vmatprep.subr.bf16.mxu0 0
    %7283 = vmatpush2.bf16.msra.mxu0 %v7062
    %7284 = vmatprep.subr.bf16.mxu0 0
    %7285 = vmatpush2.bf16.msra.mxu0 %v7061
    %7286 = vmatprep.subr.bf16.mxu0 0
    %7287 = vmatpush2.bf16.msra.mxu0 %v7060
    %7288 = vmatprep.subr.bf16.mxu0 0
    %7289 = vmatpush2.bf16.msra.mxu0 %v7059
    %7290 = vmatprep.subr.bf16.mxu0 0
    %7291 = vmatpush2.bf16.msra.mxu0 %v7058
    %7292 = vmatprep.subr.bf16.mxu0 0
    %7293 = vmatpush2.bf16.msra.mxu0 %v7057
    %7294 = vmatprep.subr.bf16.mxu0 0
    %7295 = vmatpush2.bf16.msra.mxu0 %v7056
    %7296 = vmatprep.mubr.bf16.mxu0 %v6678
    %7297 = vmatmul.mubr.bf16.gmra.mxu0 %v6676
    %v7298 = vpop.f32.mrf.mxu0
    %v7299 = vadd.f32 %v7259, %v7298
    %v7300 = vpop.f32.mrf.mxu0
    %v7301 = vpop.f32.mrf.mxu0
    %v7302 = vpop.f32.mrf.mxu0
    %7303 = vdwg.mxu0
    %7304 = vmatprep.subr.bf16.mxu0 0
    %7305 = vmatpush1.bf16.msra.mxu0 %v7071
    %7306 = vmatprep.subr.bf16.mxu0 0
    %7307 = vmatpush1.bf16.msra.mxu0 %v7070
    %7308 = vmatprep.subr.bf16.mxu0 0
    %7309 = vmatpush1.bf16.msra.mxu0 %v7069
    %7310 = vmatprep.subr.bf16.mxu0 0
    %7311 = vmatpush1.bf16.msra.mxu0 %v7068
    %7312 = vmatprep.subr.bf16.mxu0 0
    %7313 = vmatpush1.bf16.msra.mxu0 %v7067
    %7314 = vmatprep.subr.bf16.mxu0 0
    %7315 = vmatpush1.bf16.msra.mxu0 %v7066
    %7316 = vmatprep.subr.bf16.mxu0 0
    %7317 = vmatpush1.bf16.msra.mxu0 %v7065
    %7318 = vmatprep.subr.bf16.mxu0 0
    %7319 = vmatpush1.bf16.msra.mxu0 %v7064
    %7320 = vmatprep.subr.bf16.mxu0 0
    %7321 = vmatpush2.bf16.msra.mxu0 0
    %7322 = vmatprep.subr.bf16.mxu0 0
    %7323 = vmatpush2.bf16.msra.mxu0 0
    %7324 = vmatprep.subr.bf16.mxu0 0
    %7325 = vmatpush2.bf16.msra.mxu0 0
    %7326 = vmatprep.subr.bf16.mxu0 0
    %7327 = vmatpush2.bf16.msra.mxu0 0
    %7328 = vmatprep.subr.bf16.mxu0 0
    %7329 = vmatpush2.bf16.msra.mxu0 0
    %7330 = vmatprep.subr.bf16.mxu0 0
    %7331 = vmatpush2.bf16.msra.mxu0 0
    %7332 = vmatprep.subr.bf16.mxu0 0
    %7333 = vmatpush2.bf16.msra.mxu0 0
    %7334 = vmatprep.subr.bf16.mxu0 0
    %7335 = vmatpush2.bf16.msra.mxu0 0
    %7336 = vmatprep.mubr.bf16.mxu0 0
    %7337 = vmatmul.mubr.bf16.gmra.mxu0 %v6702
    %v7338 = vpop.f32.mrf.mxu0
    %v7339 = vadd.f32 %v7299, %v7338
    %v7340 = vpop.f32.mrf.mxu0
    %v7341 = vpop.f32.mrf.mxu0
    %v7342 = vpop.f32.mrf.mxu0
    %7343 = vdwg.mxu0
    %v7344 = vmax.f32 %v7339, 0.0
    %v7346 = vcombine.high %v7344, %v7344
    %v7348 = vunpack.c.l.s4 1983009808
    %v7349 = vunpack.c.0.s8 %v7348
    %v7350 = vlaneseq
    %v7351 = vshrl.u32 %v7350, 7
    %v7352 = vsub.s32 %v7349, %v7351
    %v7353 = vrot.slane %v7344, %v7352
    %v7355 = vunpack.c.l.s4 1983009808
    %v7356 = vunpack.c.0.s8 %v7355
    %v7357 = vlaneseq
    %v7358 = vshrl.u32 %v7357, 7
    %v7359 = vsub.s32 %v7356, %v7358
    %v7360 = vrot.slane %v7346, %v7359
    %v7361 = vcombine.high %v7353, %v7353
    %v7362 = vcombine.high %v7360, %v7360
    %v7367 = vsel %vm2942, %v7353, -inf
    %v7368 = vrot.slane %v7367, 4
    %v7369 = vmax.f32 %v7367, %v7368
    %v7370 = vrot.slane %v7369, 2
    %v7371 = vmax.f32 %v7369, %v7370
    %v7372 = vrot.slane %v7371, 1
    %v7373 = vmax.f32 %v7371, %v7372
    %v7374 = vsel %vm2942, %v7361, -inf
    %v7375 = vrot.slane %v7374, 4
    %v7376 = vmax.f32 %v7374, %v7375
    %v7377 = vrot.slane %v7376, 2
    %v7378 = vmax.f32 %v7376, %v7377
    %v7379 = vrot.slane %v7378, 1
    %v7380 = vmax.f32 %v7378, %v7379
    %v7381 = vsel %vm2942, %v7360, -inf
    %v7382 = vrot.slane %v7381, 4
    %v7383 = vmax.f32 %v7381, %v7382
    %v7384 = vrot.slane %v7383, 2
    %v7385 = vmax.f32 %v7383, %v7384
    %v7386 = vrot.slane %v7385, 1
    %v7387 = vmax.f32 %v7385, %v7386
    %v7388 = vsel %vm2942, %v7362, -inf
    %v7389 = vrot.slane %v7388, 4
    %v7390 = vmax.f32 %v7388, %v7389
    %v7391 = vrot.slane %v7390, 2
    %v7392 = vmax.f32 %v7390, %v7391
    %v7393 = vrot.slane %v7392, 1
    %v7394 = vmax.f32 %v7392, %v7393
    %v7395 = vmax.f32 %v7373, %v7380
    %v7396 = vmax.f32 %v7387, %v7394
    %v7397 = vpack.c.bf16 %v7395, %v7395
    %v7398 = vpack.c.bf16 %v7396, %v7396
    %v7399 = vld [vmem:[%s7] sm:$0xf]
    %v7400 = vld [vmem:[%s7 + $0x4] sm:$0xf]
    %v7401 = vld [vmem:[%s7 + $0x8] sm:$0xf]
    %v7402 = vld [vmem:[%s7 + $0xc] sm:$0xf]
    %v7403 = vld [vmem:[%s7 + $0x10] sm:$0xf]
    %v7404 = vld [vmem:[%s7 + $0x14] sm:$0xf]
    %v7405 = vld [vmem:[%s7 + $0x18] sm:$0xf]
    %v7406 = vld [vmem:[%s7 + $0x1c] sm:$0xf]
    %v7407 = vld [vmem:[%s7 + $0x20] sm:$0xf]
    %v7408 = vld [vmem:[%s7 + $0x24] sm:$0xf]
    %v7409 = vld [vmem:[%s7 + $0x28] sm:$0xf]
    %v7410 = vld [vmem:[%s7 + $0x2c] sm:$0xf]
    %v7411 = vld [vmem:[%s7 + $0x30] sm:$0xf]
    %v7412 = vld [vmem:[%s7 + $0x34] sm:$0xf]
    %v7413 = vld [vmem:[%s7 + $0x38] sm:$0xf]
    %v7414 = vld [vmem:[%s7 + $0x3c] sm:$0xf]
    %v7415 = vld [vmem:[%s8] sm:$0x1]
    %v7417 = vlaneseq
    %v7418 = vshrl.u32 %v7417, 7
    %v7419 = vsub.s32 0, %v7418
    %v7420 = vrot.slane %v7415, %v7419
    %v7424 = vunpack.c.l.b16 %v7397
    %v7425 = vunpack.c.l.b16 %v7398
    %vm7426 = vcmask 1041409
    %v7427 = vsel %vm7426, %v7425, %v7424
    %v7428 = vpack.c.b16 %v7427, %v7427
    %v7446 = vunpack.c.l.b16 %v7399
    %v7447 = vunpack.c.l.b16 %v7400
    %v7448 = vunpack.c.l.b16 %v7401
    %v7449 = vunpack.c.l.b16 %v7402
    %v7450 = vunpack.c.l.b16 %v7403
    %v7451 = vunpack.c.l.b16 %v7404
    %v7452 = vunpack.c.l.b16 %v7405
    %v7453 = vunpack.c.l.b16 %v7406
    %v7454 = vunpack.c.l.b16 %v7407
    %v7455 = vunpack.c.l.b16 %v7408
    %v7456 = vunpack.c.l.b16 %v7409
    %v7457 = vunpack.c.l.b16 %v7410
    %v7458 = vunpack.c.l.b16 %v7411
    %v7459 = vunpack.c.l.b16 %v7412
    %v7460 = vunpack.c.l.b16 %v7413
    %v7461 = vunpack.c.l.b16 %v7414
    %v7462 = vpack.c.b16 %v7447, %v7446
    %v7463 = vpack.c.b16 %v7449, %v7448
    %v7464 = vpack.c.b16 %v7451, %v7450
    %v7465 = vpack.c.b16 %v7453, %v7452
    %v7466 = vpack.c.b16 %v7455, %v7454
    %v7467 = vpack.c.b16 %v7457, %v7456
    %v7468 = vpack.c.b16 %v7459, %v7458
    %v7469 = vpack.c.b16 %v7461, %v7460
    %7478 = vmatprep.subr.bf16.mxu0 0
    %7479 = vmatpush1.bf16.msra.mxu0 %v7469
    %7480 = vmatprep.subr.bf16.mxu0 0
    %7481 = vmatpush1.bf16.msra.mxu0 %v7468
    %7482 = vmatprep.subr.bf16.mxu0 0
    %7483 = vmatpush1.bf16.msra.mxu0 %v7467
    %7484 = vmatprep.subr.bf16.mxu0 0
    %7485 = vmatpush1.bf16.msra.mxu0 %v7466
    %7486 = vmatprep.subr.bf16.mxu0 0
    %7487 = vmatpush1.bf16.msra.mxu0 %v7465
    %7488 = vmatprep.subr.bf16.mxu0 0
    %7489 = vmatpush1.bf16.msra.mxu0 %v7464
    %7490 = vmatprep.subr.bf16.mxu0 0
    %7491 = vmatpush1.bf16.msra.mxu0 %v7463
    %7492 = vmatprep.subr.bf16.mxu0 0
    %7493 = vmatpush1.bf16.msra.mxu0 %v7462
    %7494 = vmatprep.subr.bf16.mxu0 0
    %7495 = vmatpush2.bf16.msra.mxu0 0
    %7496 = vmatprep.subr.bf16.mxu0 0
    %7497 = vmatpush2.bf16.msra.mxu0 0
    %7498 = vmatprep.subr.bf16.mxu0 0
    %7499 = vmatpush2.bf16.msra.mxu0 0
    %7500 = vmatprep.subr.bf16.mxu0 0
    %7501 = vmatpush2.bf16.msra.mxu0 0
    %7502 = vmatprep.subr.bf16.mxu0 0
    %7503 = vmatpush2.bf16.msra.mxu0 0
    %7504 = vmatprep.subr.bf16.mxu0 0
    %7505 = vmatpush2.bf16.msra.mxu0 0
    %7506 = vmatprep.subr.bf16.mxu0 0
    %7507 = vmatpush2.bf16.msra.mxu0 0
    %7508 = vmatprep.subr.bf16.mxu0 0
    %7509 = vmatpush2.bf16.msra.mxu0 0
    %7510 = vmatprep.mubr.bf16.mxu0 0
    %7511 = vmatmul.mubr.bf16.gmra.mxu0 %v7428
    %v7512 = vpop.f32.mrf.mxu0
    %v7513 = vadd.f32 %v7420, %v7512
    %v7514 = vpop.f32.mrf.mxu0
    %v7515 = vpop.f32.mrf.mxu0
    %v7516 = vpop.f32.mrf.mxu0
    %7517 = vdwg.mxu0
    %7518 = vst [vmem:[#allocation5] sm:$0x3] %v7513
    // Predicated region
    $region38: #{svhn_forward.1} parent=1 // pred_check
      _
    $region39: #{svhn_forward.1} parent=1 // pred_check_branch
      %7520 = sbr.rel (0) target = $region41
    $region40: #{svhn_forward.1} parent=1 // pred_region
      %s7522 = ssub.s32 32, 32
      %7523 = vsyncadd [#allocation6], %s7522
      %s7525 = sshll.u32 [#allocation5], 4
      %s7526 = int_to_ptr.vmem [resolvable:$true] %s7525
      %7528 = dma.vmem_to_hbm [thread:$0]  %s7526, 32, %s9, [#allocation6]
    $region41: #{svhn_forward.1} parent=1 // pred_fallthru
      _
    // Predicated region
    $region42: #{svhn_forward.1} parent=1 // pred_check
      _
    $region43: #{svhn_forward.1} parent=1 // pred_check_branch
      %7530 = sbr.rel (0) target = $region45
    $region44: #{svhn_forward.1} parent=1 // pred_region
      %7531 = dma.done [#allocation6], 32
    $region45: #{svhn_forward.1} parent=1 // pred_fallthru
      _
    %7532 = vsyncpa [#allocation6], 1

</llo_original>
